<compile_context>
chip_gen: v7x
topology: tpu7x:2x2x1
jax: 0.10.0
libtpu: 0.0.40
codegen_flags: <defaults>
</compile_context>

<pallas_src>
import math
from functools import partial

import jax
import jax.numpy as jnp
from jax.experimental import pallas as pl
from jax.experimental.pallas import tpu as pltpu

LN_EPS = 1e-12   # layer_norm_eps from BertConfig
LANE = 128


def _ru(n, m=LANE):
    return ((n + m - 1) // m) * m


def _pick_tb(B, S, max_rows=1024):
    """Largest batch tile TB (divisor of B) keeping TB*S rows modest and
    sublane-aligned (or equal to the full batch)."""
    for tb in range(min(B, max(1, max_rows // max(S, 1))), 0, -1):
        if B % tb == 0 and (tb == B or (tb * S) % 8 == 0):
            return tb
    return B


# ---------------------------------------------------------------------------
# Fused forward kernel: embedding + L encoder layers + dense head.
# grid = (B//TB, L); activation resident in VMEM scratch across the layer axis.
# ---------------------------------------------------------------------------
def _fused_forward_kernel(nh, dh, H, S, TB,
                          x_ref, ew_ref, eb_ref,
                          wq_ref, bq_ref, wk_ref, bk_ref, wv_ref, bv_ref,
                          wo_ref, bo_ref, g1_ref, be1_ref,
                          wi_ref, bi_ref, w2_ref, b2_ref, g2_ref, be2_ref,
                          dw_ref, db_ref,
                          o_ref, acc_ref, ctx_ref):
    l = pl.program_id(1)
    Hp = acc_ref.shape[-1]

    # --- first layer step: embedding Linear into the resident activation
    @pl.when(l == 0)
    def _():
        acc_ref[...] = (
            jnp.dot(x_ref[...], ew_ref[...], preferred_element_type=jnp.float32)
            + eb_ref[...]
        )

    x = acc_ref[...]                                            # (TB*S, Hp)

    lane = jax.lax.broadcasted_iota(jnp.int32, (1, Hp), 1)
    ln_mask = (lane < H).astype(jnp.float32)                    # valid-H lanes
    inv_h = 1.0 / H

    def layernorm(y, gamma, beta):
        # statistics over the true H lanes only (padding lanes are zero)
        mu = jnp.sum(y * ln_mask, axis=-1, keepdims=True) * inv_h
        c = (y - mu) * ln_mask
        var = jnp.sum(c * c, axis=-1, keepdims=True) * inv_h
        return c * jax.lax.rsqrt(var + LN_EPS) * gamma + beta   # pad lanes stay 0

    # --- multi-head self-attention (attention_mask defaults to all-ones -> +0.0)
    scale = 1.0 / math.sqrt(dh)
    q = (jnp.dot(x, wq_ref[0], preferred_element_type=jnp.float32)
         + bq_ref[0]) * scale                                   # fold 1/sqrt(dh) once
    k = jnp.dot(x, wk_ref[0], preferred_element_type=jnp.float32) + bk_ref[0]
    v = jnp.dot(x, wv_ref[0], preferred_element_type=jnp.float32) + bv_ref[0]

    head_masks = [((lane >= h * dh) & (lane < (h + 1) * dh)).astype(jnp.float32)
                  for h in range(nh)]

    for b in range(TB):                                         # static, unrolled
        r0 = b * S
        qb = q[r0:r0 + S, :]
        kb = k[r0:r0 + S, :]
        vb = v[r0:r0 + S, :]
        ctx_b = jnp.zeros((S, Hp), jnp.float32)
        for h in range(nh):                                     # static, unrolled
            hm = head_masks[h]
            # scores with full-width K=Hp contraction (other-head lanes zeroed)
            s = jax.lax.dot_general(qb * hm, kb, (((1,), (1,)), ((), ())),
                                    preferred_element_type=jnp.float32)
            s = s - jnp.max(s, axis=-1, keepdims=True)
            p = jnp.exp(s)
            p = p * pl.reciprocal(jnp.sum(p, axis=-1, keepdims=True), approx=True)
            # context lands in this head's contiguous lanes
            ctx_b = ctx_b + jnp.dot(p, vb * hm, preferred_element_type=jnp.float32)
        ctx_ref[pl.ds(r0, S), :] = ctx_b

    # concat-of-heads @ Wo as ONE K=Hp matmul over all TB*S rows
    attn = jnp.dot(ctx_ref[...], wo_ref[0], preferred_element_type=jnp.float32) + bo_ref[0]
    h1 = layernorm(x + attn, g1_ref[0], be1_ref[0])

    # --- FFN
    inter = jnp.dot(h1, wi_ref[0], preferred_element_type=jnp.float32) + bi_ref[0]
    # TODO(synk): HF BERT "gelu" is erf-based; tanh-approximate GELU used here.
    inter = jax.nn.gelu(inter, approximate=True)
    ffn = jnp.dot(inter, w2_ref[0], preferred_element_type=jnp.float32) + b2_ref[0]
    h2 = layernorm(h1 + ffn, g2_ref[0], be2_ref[0])

    acc_ref[...] = h2                                           # carry to next layer

    # --- last layer step: dense head (pooler unused; dropout is eval identity)
    @pl.when(l == pl.num_programs(1) - 1)
    def _():
        o_ref[...] = (jnp.dot(h2, dw_ref[...], preferred_element_type=jnp.float32)
                      + db_ref[...])


# ---------------------------------------------------------------------------
# Wrapper: pad to lane-dense shapes, stack per-layer weights, one pallas_call.
# ---------------------------------------------------------------------------
def scbert_word_forward(params, input_ids, num_heads):
    B, S, C3 = input_ids.shape
    H = params["emb_w"].shape[1]
    V = params["dense_w"].shape[1]
    layers = params["layers"]
    L = len(layers)
    I = layers[0]["wi"].shape[1]
    dh = H // num_heads

    C3p, Hp, Ip, Vp = _ru(C3), _ru(H), _ru(I), _ru(V)
    TB = _pick_tb(B, S)
    R = TB * S

    def p2(a, r, c):
        return jnp.pad(a, ((0, r - a.shape[0]), (0, c - a.shape[1])))

    def p1(a, c):
        return jnp.pad(a, ((0, c - a.shape[0]),)).reshape(1, c)

    x_pad = jnp.pad(input_ids.astype(jnp.float32),
                    ((0, 0), (0, 0), (0, C3p - C3))).reshape(B * S, C3p)

    ew = p2(params["emb_w"], C3p, Hp)
    eb = p1(params["emb_b"], Hp)
    dw = p2(params["dense_w"], Hp, Vp)
    db = p1(params["dense_b"], Vp)

    def stack2(name, r, c):
        return jnp.stack([p2(lp[name], r, c) for lp in layers])   # (L, r, c)

    def stack1(name, c):
        return jnp.stack([p1(lp[name], c) for lp in layers])      # (L, 1, c)

    layer_args = [
        stack2("wq", Hp, Hp), stack1("bq", Hp),
        stack2("wk", Hp, Hp), stack1("bk", Hp),
        stack2("wv", Hp, Hp), stack1("bv", Hp),
        stack2("wo", Hp, Hp), stack1("bo", Hp),
        stack1("ln1_g", Hp), stack1("ln1_b", Hp),
        stack2("wi", Hp, Ip), stack1("bi", Ip),
        stack2("w2", Ip, Hp), stack1("b2", Hp),
        stack1("ln2_g", Hp), stack1("ln2_b", Hp),
    ]

    def cspec(a):                    # constant across the whole grid
        zeros = (0,) * a.ndim
        return pl.BlockSpec(a.shape, lambda bt, l: zeros)

    def lspec(a):                    # indexed by the layer grid axis
        tail = (0,) * (a.ndim - 1)
        return pl.BlockSpec((1,) + a.shape[1:], lambda bt, l: (l,) + tail)

    in_specs = (
        [pl.BlockSpec((R, C3p), lambda bt, l: (bt, 0)), cspec(ew), cspec(eb)]
        + [lspec(a) for a in layer_args]
        + [cspec(dw), cspec(db)]
    )
    out_spec = pl.BlockSpec((R, Vp), lambda bt, l: (bt, 0))

    logits_pad = pl.pallas_call(
        partial(_fused_forward_kernel, num_heads, dh, H, S, TB),
        out_shape=jax.ShapeDtypeStruct((B * S, Vp), jnp.float32),
        grid_spec=pltpu.PrefetchScalarGridSpec(
            num_scalar_prefetch=0,
            grid=(B // TB, L),
            in_specs=in_specs,
            out_specs=out_spec,
            scratch_shapes=[pltpu.VMEM((R, Hp), jnp.float32),   # resident activation
                            pltpu.VMEM((R, Hp), jnp.float32)],  # concat-head context
        ),
        compiler_params=pltpu.CompilerParams(
            dimension_semantics=("parallel", "arbitrary")),
    )(x_pad, ew, eb, *layer_args, dw, db)

    return logits_pad.reshape(B, S, Vp)[:, :, :V]


# ---------------------------------------------------------------------------
# Deterministic parameter init (matches nn.Linear layout: y = x @ W + b)
# ---------------------------------------------------------------------------
def init_params(key, in_dim, H, I, V, num_layers):
    keys = jax.random.split(key, num_layers + 2)

    def w(k, fi, fo):
        return jax.random.normal(k, (fi, fo), jnp.float32) * 0.02  # initializer_range

    params = {
        "emb_w": w(keys[0], in_dim, H), "emb_b": jnp.zeros((H,), jnp.float32),
        "dense_w": w(keys[1], H, V), "dense_b": jnp.zeros((V,), jnp.float32),
        "layers": [],
    }
    for l in range(num_layers):
        ks = jax.random.split(keys[2 + l], 6)
        params["layers"].append({
            "wq": w(ks[0], H, H), "bq": jnp.zeros((H,), jnp.float32),
            "wk": w(ks[1], H, H), "bk": jnp.zeros((H,), jnp.float32),
            "wv": w(ks[2], H, H), "bv": jnp.zeros((H,), jnp.float32),
            "wo": w(ks[3], H, H), "bo": jnp.zeros((H,), jnp.float32),
            "ln1_g": jnp.ones((H,), jnp.float32), "ln1_b": jnp.zeros((H,), jnp.float32),
            "wi": w(ks[4], H, I), "bi": jnp.zeros((I,), jnp.float32),
            "w2": w(ks[5], I, H), "b2": jnp.zeros((H,), jnp.float32),
            "ln2_g": jnp.ones((H,), jnp.float32), "ln2_b": jnp.zeros((H,), jnp.float32),
        })
    return params


if __name__ == "__main__":
    CHAR_VOCAB = 10          # args.char_vocab_size -> input dim = 3 * 10 = 30
    HIDDEN = 32              # args.hidden_size
    LAYERS = 2               # args.num_hidden_layers
    HEADS = 4                # args.num_attention_heads
    INTER = 64               # args.intermediate_size
    WORD_VOCAB = 16          # args.word_vocab_size (output_dim)
    B, S = 2, 8

    key = jax.random.PRNGKey(0)
    k_p, k_x = jax.random.split(key)
    params = init_params(k_p, 3 * CHAR_VOCAB, HIDDEN, INTER, WORD_VOCAB, LAYERS)
    input_ids = jax.random.normal(k_x, (B, S, 3 * CHAR_VOCAB), jnp.float32)

    fwd = jax.jit(partial(scbert_word_forward, num_heads=HEADS))
    logits = fwd(params, input_ids)
    jax.block_until_ready(logits)
    assert logits.shape == (B, S, WORD_VOCAB)
    print("KERNEL_OK")
</pallas_src>

<mosaic_0001>
module attributes {stable_mosaic.version = 11 : i64} {
  func.func @_fused_forward_kernel(%arg0: i32, %arg1: i32, %arg2: memref<16x128xf32, #tpu.memory_space<vmem>>, %arg3: memref<128x128xf32, #tpu.memory_space<vmem>>, %arg4: memref<1x128xf32, #tpu.memory_space<vmem>>, %arg5: memref<1x128x128xf32, #tpu.memory_space<vmem>>, %arg6: memref<1x1x128xf32, #tpu.memory_space<vmem>>, %arg7: memref<1x128x128xf32, #tpu.memory_space<vmem>>, %arg8: memref<1x1x128xf32, #tpu.memory_space<vmem>>, %arg9: memref<1x128x128xf32, #tpu.memory_space<vmem>>, %arg10: memref<1x1x128xf32, #tpu.memory_space<vmem>>, %arg11: memref<1x128x128xf32, #tpu.memory_space<vmem>>, %arg12: memref<1x1x128xf32, #tpu.memory_space<vmem>>, %arg13: memref<1x1x128xf32, #tpu.memory_space<vmem>>, %arg14: memref<1x1x128xf32, #tpu.memory_space<vmem>>, %arg15: memref<1x128x128xf32, #tpu.memory_space<vmem>>, %arg16: memref<1x1x128xf32, #tpu.memory_space<vmem>>, %arg17: memref<1x128x128xf32, #tpu.memory_space<vmem>>, %arg18: memref<1x1x128xf32, #tpu.memory_space<vmem>>, %arg19: memref<1x1x128xf32, #tpu.memory_space<vmem>>, %arg20: memref<1x1x128xf32, #tpu.memory_space<vmem>>, %arg21: memref<128x128xf32, #tpu.memory_space<vmem>>, %arg22: memref<1x128xf32, #tpu.memory_space<vmem>>, %arg23: memref<16x128xf32, #tpu.memory_space<vmem>>, %arg24: memref<16x128xf32, #tpu.memory_space<vmem>>, %arg25: memref<16x128xf32, #tpu.memory_space<vmem>>) attributes {dimension_semantics = [#tpu.dimension_semantics<parallel>, #tpu.dimension_semantics<arbitrary>], iteration_bounds = array<i64: 1, 2>, scalar_prefetch = 0 : i64, scratch_operands = 2 : i64, tpu.core_type = #tpu.core_type<tc>, window_params = [{transform_indices = @transform_0, window_bounds = array<i64: 16, 128>}, {pipeline_mode = #tpu.pipeline_mode<synchronous>, transform_indices = @transform_1, window_bounds = array<i64: 128, 128>}, {pipeline_mode = #tpu.pipeline_mode<synchronous>, transform_indices = @transform_2, window_bounds = array<i64: 1, 128>}, {transform_indices = @transform_3, window_bounds = array<i64: 1, 128, 128>}, {transform_indices = @transform_4, window_bounds = array<i64: 1, 1, 128>}, {transform_indices = @transform_5, window_bounds = array<i64: 1, 128, 128>}, {transform_indices = @transform_6, window_bounds = array<i64: 1, 1, 128>}, {transform_indices = @transform_7, window_bounds = array<i64: 1, 128, 128>}, {transform_indices = @transform_8, window_bounds = array<i64: 1, 1, 128>}, {transform_indices = @transform_9, window_bounds = array<i64: 1, 128, 128>}, {transform_indices = @transform_10, window_bounds = array<i64: 1, 1, 128>}, {transform_indices = @transform_11, window_bounds = array<i64: 1, 1, 128>}, {transform_indices = @transform_12, window_bounds = array<i64: 1, 1, 128>}, {transform_indices = @transform_13, window_bounds = array<i64: 1, 128, 128>}, {transform_indices = @transform_14, window_bounds = array<i64: 1, 1, 128>}, {transform_indices = @transform_15, window_bounds = array<i64: 1, 128, 128>}, {transform_indices = @transform_16, window_bounds = array<i64: 1, 1, 128>}, {transform_indices = @transform_17, window_bounds = array<i64: 1, 1, 128>}, {transform_indices = @transform_18, window_bounds = array<i64: 1, 1, 128>}, {pipeline_mode = #tpu.pipeline_mode<synchronous>, transform_indices = @transform_19, window_bounds = array<i64: 128, 128>}, {pipeline_mode = #tpu.pipeline_mode<synchronous>, transform_indices = @transform_20, window_bounds = array<i64: 1, 128>}, {transform_indices = @transform_21, window_bounds = array<i64: 16, 128>}]} {
    %c0_i32 = arith.constant 0 : i32
    %0 = arith.cmpi eq, %arg1, %c0_i32 : i32
    %1 = arith.extui %0 : i1 to i32
    %c0_i32_0 = arith.constant 0 : i32
    %2 = arith.cmpi ne, %1, %c0_i32_0 : i32
    scf.if %2 {
      %c0_117 = arith.constant 0 : index
      %c0_118 = arith.constant 0 : index
      %303 = vector.load %arg2[%c0_117, %c0_118] : memref<16x128xf32, #tpu.memory_space<vmem>>, vector<16x128xf32>
      %c0_119 = arith.constant 0 : index
      %c0_120 = arith.constant 0 : index
      %304 = vector.load %arg3[%c0_119, %c0_120] : memref<128x128xf32, #tpu.memory_space<vmem>>, vector<128x128xf32>
      %cst_121 = arith.constant dense<0.000000e+00> : vector<16x128xf32>
      %305 = tpu.matmul %303, %304, %cst_121 {dimension_numbers = #tpu.dot_dimension_numbers<[1], [0], [0], [1], [0, 0, 1, 1], [], []>} : vector<16x128xf32>, vector<128x128xf32>, vector<16x128xf32> -> vector<16x128xf32>
      %c0_122 = arith.constant 0 : index
      %c0_123 = arith.constant 0 : index
      %306 = vector.load %arg4[%c0_122, %c0_123] : memref<1x128xf32, #tpu.memory_space<vmem>>, vector<1x128xf32>
      %307 = vector.broadcast %306 : vector<1x128xf32> to vector<16x128xf32>
      %308 = arith.addf %305, %307 : vector<16x128xf32>
      %c0_124 = arith.constant 0 : index
      %c0_125 = arith.constant 0 : index
      %309 = vector.load %arg24[%c0_124, %c0_125] : memref<16x128xf32, #tpu.memory_space<vmem>>, vector<16x128xf32>
      tpu.vector_store %arg24[%c0_124, %c0_125], %308 {strides = array<i32>} : memref<16x128xf32, #tpu.memory_space<vmem>>, vector<16x128xf32>,
    } else {
    }
    %c0 = arith.constant 0 : index
    %c0_1 = arith.constant 0 : index
    %3 = vector.load %arg24[%c0, %c0_1] : memref<16x128xf32, #tpu.memory_space<vmem>>, vector<16x128xf32>
    %4 = tpu.iota {dimensions = array<i32: 1>} : vector<1x128xi32>
    %c32_i32 = arith.constant 32 : i32
    %5 = vector.broadcast %c32_i32 : i32 to vector<1x128xi32>
    %6 = arith.cmpi slt, %4, %5 : vector<1x128xi32>
    %7 = arith.extui %6 : vector<1x128xi1> to vector<1x128xi32>
    %8 = arith.sitofp %7 : vector<1x128xi32> to vector<1x128xf32>
    %c0_2 = arith.constant 0 : index
    %c0_3 = arith.constant 0 : index
    %c0_4 = arith.constant 0 : index
    %9 = vector.load %arg5[%c0_2, %c0_3, %c0_4] : memref<1x128x128xf32, #tpu.memory_space<vmem>>, vector<1x128x128xf32>
    %10 = vector.shape_cast %9 : vector<1x128x128xf32> to vector<128x128xf32>
    %cst = arith.constant dense<0.000000e+00> : vector<16x128xf32>
    %11 = tpu.matmul %3, %10, %cst {dimension_numbers = #tpu.dot_dimension_numbers<[1], [0], [0], [1], [0, 0, 1, 1], [], []>} : vector<16x128xf32>, vector<128x128xf32>, vector<16x128xf32> -> vector<16x128xf32>
    %c0_5 = arith.constant 0 : index
    %c0_6 = arith.constant 0 : index
    %c0_7 = arith.constant 0 : index
    %12 = vector.load %arg6[%c0_5, %c0_6, %c0_7] : memref<1x1x128xf32, #tpu.memory_space<vmem>>, vector<1x1x128xf32>
    %13 = vector.shape_cast %12 : vector<1x1x128xf32> to vector<1x128xf32>
    %14 = vector.broadcast %13 : vector<1x128xf32> to vector<16x128xf32>
    %15 = arith.addf %11, %14 : vector<16x128xf32>
    %cst_8 = arith.constant 0.353553385 : f32
    %16 = vector.broadcast %cst_8 : f32 to vector<16x128xf32>
    %17 = arith.mulf %15, %16 : vector<16x128xf32>
    %c0_9 = arith.constant 0 : index
    %c0_10 = arith.constant 0 : index
    %c0_11 = arith.constant 0 : index
    %18 = vector.load %arg7[%c0_9, %c0_10, %c0_11] : memref<1x128x128xf32, #tpu.memory_space<vmem>>, vector<1x128x128xf32>
    %19 = vector.shape_cast %18 : vector<1x128x128xf32> to vector<128x128xf32>
    %cst_12 = arith.constant dense<0.000000e+00> : vector<16x128xf32>
    %20 = tpu.matmul %3, %19, %cst_12 {dimension_numbers = #tpu.dot_dimension_numbers<[1], [0], [0], [1], [0, 0, 1, 1], [], []>} : vector<16x128xf32>, vector<128x128xf32>, vector<16x128xf32> -> vector<16x128xf32>
    %c0_13 = arith.constant 0 : index
    %c0_14 = arith.constant 0 : index
    %c0_15 = arith.constant 0 : index
    %21 = vector.load %arg8[%c0_13, %c0_14, %c0_15] : memref<1x1x128xf32, #tpu.memory_space<vmem>>, vector<1x1x128xf32>
    %22 = vector.shape_cast %21 : vector<1x1x128xf32> to vector<1x128xf32>
    %23 = vector.broadcast %22 : vector<1x128xf32> to vector<16x128xf32>
    %24 = arith.addf %20, %23 : vector<16x128xf32>
    %c0_16 = arith.constant 0 : index
    %c0_17 = arith.constant 0 : index
    %c0_18 = arith.constant 0 : index
    %25 = vector.load %arg9[%c0_16, %c0_17, %c0_18] : memref<1x128x128xf32, #tpu.memory_space<vmem>>, vector<1x128x128xf32>
    %26 = vector.shape_cast %25 : vector<1x128x128xf32> to vector<128x128xf32>
    %cst_19 = arith.constant dense<0.000000e+00> : vector<16x128xf32>
    %27 = tpu.matmul %3, %26, %cst_19 {dimension_numbers = #tpu.dot_dimension_numbers<[1], [0], [0], [1], [0, 0, 1, 1], [], []>} : vector<16x128xf32>, vector<128x128xf32>, vector<16x128xf32> -> vector<16x128xf32>
    %c0_20 = arith.constant 0 : index
    %c0_21 = arith.constant 0 : index
    %c0_22 = arith.constant 0 : index
    %28 = vector.load %arg10[%c0_20, %c0_21, %c0_22] : memref<1x1x128xf32, #tpu.memory_space<vmem>>, vector<1x1x128xf32>
    %29 = vector.shape_cast %28 : vector<1x1x128xf32> to vector<1x128xf32>
    %30 = vector.broadcast %29 : vector<1x128xf32> to vector<16x128xf32>
    %31 = arith.addf %27, %30 : vector<16x128xf32>
    %c0_i32_23 = arith.constant 0 : i32
    %32 = vector.broadcast %c0_i32_23 : i32 to vector<1x128xi32>
    %33 = arith.cmpi sge, %4, %32 : vector<1x128xi32>
    %c8_i32 = arith.constant 8 : i32
    %34 = vector.broadcast %c8_i32 : i32 to vector<1x128xi32>
    %35 = arith.cmpi slt, %4, %34 : vector<1x128xi32>
    %36 = arith.andi %33, %35 : vector<1x128xi1>
    %37 = arith.extui %36 : vector<1x128xi1> to vector<1x128xi32>
    %38 = arith.sitofp %37 : vector<1x128xi32> to vector<1x128xf32>
    %c8_i32_24 = arith.constant 8 : i32
    %39 = vector.broadcast %c8_i32_24 : i32 to vector<1x128xi32>
    %40 = arith.cmpi sge, %4, %39 : vector<1x128xi32>
    %c16_i32 = arith.constant 16 : i32
    %41 = vector.broadcast %c16_i32 : i32 to vector<1x128xi32>
    %42 = arith.cmpi slt, %4, %41 : vector<1x128xi32>
    %43 = arith.andi %40, %42 : vector<1x128xi1>
    %44 = arith.extui %43 : vector<1x128xi1> to vector<1x128xi32>
    %45 = arith.sitofp %44 : vector<1x128xi32> to vector<1x128xf32>
    %c16_i32_25 = arith.constant 16 : i32
    %46 = vector.broadcast %c16_i32_25 : i32 to vector<1x128xi32>
    %47 = arith.cmpi sge, %4, %46 : vector<1x128xi32>
    %c24_i32 = arith.constant 24 : i32
    %48 = vector.broadcast %c24_i32 : i32 to vector<1x128xi32>
    %49 = arith.cmpi slt, %4, %48 : vector<1x128xi32>
    %50 = arith.andi %47, %49 : vector<1x128xi1>
    %51 = arith.extui %50 : vector<1x128xi1> to vector<1x128xi32>
    %52 = arith.sitofp %51 : vector<1x128xi32> to vector<1x128xf32>
    %c24_i32_26 = arith.constant 24 : i32
    %53 = vector.broadcast %c24_i32_26 : i32 to vector<1x128xi32>
    %54 = arith.cmpi sge, %4, %53 : vector<1x128xi32>
    %c32_i32_27 = arith.constant 32 : i32
    %55 = vector.broadcast %c32_i32_27 : i32 to vector<1x128xi32>
    %56 = arith.cmpi slt, %4, %55 : vector<1x128xi32>
    %57 = arith.andi %54, %56 : vector<1x128xi1>
    %58 = arith.extui %57 : vector<1x128xi1> to vector<1x128xi32>
    %59 = arith.sitofp %58 : vector<1x128xi32> to vector<1x128xf32>
    %60 = vector.extract_strided_slice %17 {offsets = [0, 0], sizes = [8, 128], strides = [1, 1]} : vector<16x128xf32> to vector<8x128xf32>
    %61 = vector.extract_strided_slice %24 {offsets = [0, 0], sizes = [8, 128], strides = [1, 1]} : vector<16x128xf32> to vector<8x128xf32>
    %62 = vector.extract_strided_slice %31 {offsets = [0, 0], sizes = [8, 128], strides = [1, 1]} : vector<16x128xf32> to vector<8x128xf32>
    %cst_28 = arith.constant 0.000000e+00 : f32
    %63 = vector.broadcast %cst_28 : f32 to vector<8x128xf32>
    %64 = vector.broadcast %38 : vector<1x128xf32> to vector<8x128xf32>
    %65 = arith.mulf %60, %64 : vector<8x128xf32>
    %cst_29 = arith.constant dense<0.000000e+00> : vector<8x8xf32>
    %66 = tpu.matmul %65, %61, %cst_29 {dimension_numbers = #tpu.dot_dimension_numbers<[1], [1], [0], [0], [0, 0, 1, 0], [], []>} : vector<8x128xf32>, vector<8x128xf32>, vector<8x8xf32> -> vector<8x8xf32>
    %cst_30 = arith.constant dense<0xFF800000> : vector<8xf32>
    %67 = vector.multi_reduction <maximumf>, %66, %cst_30 [1] : vector<8x8xf32> to vector<8xf32>
    %68 = vector.shape_cast %67 : vector<8xf32> to vector<8x1xf32>
    %69 = vector.broadcast %68 : vector<8x1xf32> to vector<8x8xf32>
    %70 = arith.subf %66, %69 : vector<8x8xf32>
    %71 = math.exp %70 : vector<8x8xf32>
    %cst_31 = arith.constant dense<0.000000e+00> : vector<8xf32>
    %72 = vector.multi_reduction <add>, %71, %cst_31 [1] : vector<8x8xf32> to vector<8xf32>
    %73 = vector.shape_cast %72 : vector<8xf32> to vector<8x1xf32>
    %74 = tpu.reciprocal %73 {approx = true} : vector<8x1xf32> -> vector<8x1xf32>
    %75 = vector.broadcast %74 : vector<8x1xf32> to vector<8x8xf32>
    %76 = arith.mulf %71, %75 : vector<8x8xf32>
    %77 = vector.broadcast %38 : vector<1x128xf32> to vector<8x128xf32>
    %78 = arith.mulf %62, %77 : vector<8x128xf32>
    %cst_32 = arith.constant dense<0.000000e+00> : vector<8x128xf32>
    %79 = tpu.matmul %76, %78, %cst_32 {dimension_numbers = #tpu.dot_dimension_numbers<[1], [0], [0], [1], [0, 0, 1, 1], [], []>} : vector<8x8xf32>, vector<8x128xf32>, vector<8x128xf32> -> vector<8x128xf32>
    %80 = arith.addf %63, %79 : vector<8x128xf32>
    %81 = vector.broadcast %45 : vector<1x128xf32> to vector<8x128xf32>
    %82 = arith.mulf %60, %81 : vector<8x128xf32>
    %cst_33 = arith.constant dense<0.000000e+00> : vector<8x8xf32>
    %83 = tpu.matmul %82, %61, %cst_33 {dimension_numbers = #tpu.dot_dimension_numbers<[1], [1], [0], [0], [0, 0, 1, 0], [], []>} : vector<8x128xf32>, vector<8x128xf32>, vector<8x8xf32> -> vector<8x8xf32>
    %cst_34 = arith.constant dense<0xFF800000> : vector<8xf32>
    %84 = vector.multi_reduction <maximumf>, %83, %cst_34 [1] : vector<8x8xf32> to vector<8xf32>
    %85 = vector.shape_cast %84 : vector<8xf32> to vector<8x1xf32>
    %86 = vector.broadcast %85 : vector<8x1xf32> to vector<8x8xf32>
    %87 = arith.subf %83, %86 : vector<8x8xf32>
    %88 = math.exp %87 : vector<8x8xf32>
    %cst_35 = arith.constant dense<0.000000e+00> : vector<8xf32>
    %89 = vector.multi_reduction <add>, %88, %cst_35 [1] : vector<8x8xf32> to vector<8xf32>
    %90 = vector.shape_cast %89 : vector<8xf32> to vector<8x1xf32>
    %91 = tpu.reciprocal %90 {approx = true} : vector<8x1xf32> -> vector<8x1xf32>
    %92 = vector.broadcast %91 : vector<8x1xf32> to vector<8x8xf32>
    %93 = arith.mulf %88, %92 : vector<8x8xf32>
    %94 = vector.broadcast %45 : vector<1x128xf32> to vector<8x128xf32>
    %95 = arith.mulf %62, %94 : vector<8x128xf32>
    %cst_36 = arith.constant dense<0.000000e+00> : vector<8x128xf32>
    %96 = tpu.matmul %93, %95, %cst_36 {dimension_numbers = #tpu.dot_dimension_numbers<[1], [0], [0], [1], [0, 0, 1, 1], [], []>} : vector<8x8xf32>, vector<8x128xf32>, vector<8x128xf32> -> vector<8x128xf32>
    %97 = arith.addf %80, %96 : vector<8x128xf32>
    %98 = vector.broadcast %52 : vector<1x128xf32> to vector<8x128xf32>
    %99 = arith.mulf %60, %98 : vector<8x128xf32>
    %cst_37 = arith.constant dense<0.000000e+00> : vector<8x8xf32>
    %100 = tpu.matmul %99, %61, %cst_37 {dimension_numbers = #tpu.dot_dimension_numbers<[1], [1], [0], [0], [0, 0, 1, 0], [], []>} : vector<8x128xf32>, vector<8x128xf32>, vector<8x8xf32> -> vector<8x8xf32>
    %cst_38 = arith.constant dense<0xFF800000> : vector<8xf32>
    %101 = vector.multi_reduction <maximumf>, %100, %cst_38 [1] : vector<8x8xf32> to vector<8xf32>
    %102 = vector.shape_cast %101 : vector<8xf32> to vector<8x1xf32>
    %103 = vector.broadcast %102 : vector<8x1xf32> to vector<8x8xf32>
    %104 = arith.subf %100, %103 : vector<8x8xf32>
    %105 = math.exp %104 : vector<8x8xf32>
    %cst_39 = arith.constant dense<0.000000e+00> : vector<8xf32>
    %106 = vector.multi_reduction <add>, %105, %cst_39 [1] : vector<8x8xf32> to vector<8xf32>
    %107 = vector.shape_cast %106 : vector<8xf32> to vector<8x1xf32>
    %108 = tpu.reciprocal %107 {approx = true} : vector<8x1xf32> -> vector<8x1xf32>
    %109 = vector.broadcast %108 : vector<8x1xf32> to vector<8x8xf32>
    %110 = arith.mulf %105, %109 : vector<8x8xf32>
    %111 = vector.broadcast %52 : vector<1x128xf32> to vector<8x128xf32>
    %112 = arith.mulf %62, %111 : vector<8x128xf32>
    %cst_40 = arith.constant dense<0.000000e+00> : vector<8x128xf32>
    %113 = tpu.matmul %110, %112, %cst_40 {dimension_numbers = #tpu.dot_dimension_numbers<[1], [0], [0], [1], [0, 0, 1, 1], [], []>} : vector<8x8xf32>, vector<8x128xf32>, vector<8x128xf32> -> vector<8x128xf32>
    %114 = arith.addf %97, %113 : vector<8x128xf32>
    %115 = vector.broadcast %59 : vector<1x128xf32> to vector<8x128xf32>
    %116 = arith.mulf %60, %115 : vector<8x128xf32>
    %cst_41 = arith.constant dense<0.000000e+00> : vector<8x8xf32>
    %117 = tpu.matmul %116, %61, %cst_41 {dimension_numbers = #tpu.dot_dimension_numbers<[1], [1], [0], [0], [0, 0, 1, 0], [], []>} : vector<8x128xf32>, vector<8x128xf32>, vector<8x8xf32> -> vector<8x8xf32>
    %cst_42 = arith.constant dense<0xFF800000> : vector<8xf32>
    %118 = vector.multi_reduction <maximumf>, %117, %cst_42 [1] : vector<8x8xf32> to vector<8xf32>
    %119 = vector.shape_cast %118 : vector<8xf32> to vector<8x1xf32>
    %120 = vector.broadcast %119 : vector<8x1xf32> to vector<8x8xf32>
    %121 = arith.subf %117, %120 : vector<8x8xf32>
    %122 = math.exp %121 : vector<8x8xf32>
    %cst_43 = arith.constant dense<0.000000e+00> : vector<8xf32>
    %123 = vector.multi_reduction <add>, %122, %cst_43 [1] : vector<8x8xf32> to vector<8xf32>
    %124 = vector.shape_cast %123 : vector<8xf32> to vector<8x1xf32>
    %125 = tpu.reciprocal %124 {approx = true} : vector<8x1xf32> -> vector<8x1xf32>
    %126 = vector.broadcast %125 : vector<8x1xf32> to vector<8x8xf32>
    %127 = arith.mulf %122, %126 : vector<8x8xf32>
    %128 = vector.broadcast %59 : vector<1x128xf32> to vector<8x128xf32>
    %129 = arith.mulf %62, %128 : vector<8x128xf32>
    %cst_44 = arith.constant dense<0.000000e+00> : vector<8x128xf32>
    %130 = tpu.matmul %127, %129, %cst_44 {dimension_numbers = #tpu.dot_dimension_numbers<[1], [0], [0], [1], [0, 0, 1, 1], [], []>} : vector<8x8xf32>, vector<8x128xf32>, vector<8x128xf32> -> vector<8x128xf32>
    %131 = arith.addf %114, %130 : vector<8x128xf32>
    %c0_45 = arith.constant 0 : index
    %c0_46 = arith.constant 0 : index
    %132 = vector.load %arg25[%c0_45, %c0_46] : memref<16x128xf32, #tpu.memory_space<vmem>>, vector<8x128xf32>
    tpu.vector_store %arg25[%c0_45, %c0_46], %131 {strides = array<i32>} : memref<16x128xf32, #tpu.memory_space<vmem>>, vector<8x128xf32>,
    %133 = vector.extract_strided_slice %17 {offsets = [8, 0], sizes = [8, 128], strides = [1, 1]} : vector<16x128xf32> to vector<8x128xf32>
    %134 = vector.extract_strided_slice %24 {offsets = [8, 0], sizes = [8, 128], strides = [1, 1]} : vector<16x128xf32> to vector<8x128xf32>
    %135 = vector.extract_strided_slice %31 {offsets = [8, 0], sizes = [8, 128], strides = [1, 1]} : vector<16x128xf32> to vector<8x128xf32>
    %cst_47 = arith.constant 0.000000e+00 : f32
    %136 = vector.broadcast %cst_47 : f32 to vector<8x128xf32>
    %137 = vector.broadcast %38 : vector<1x128xf32> to vector<8x128xf32>
    %138 = arith.mulf %133, %137 : vector<8x128xf32>
    %cst_48 = arith.constant dense<0.000000e+00> : vector<8x8xf32>
    %139 = tpu.matmul %138, %134, %cst_48 {dimension_numbers = #tpu.dot_dimension_numbers<[1], [1], [0], [0], [0, 0, 1, 0], [], []>} : vector<8x128xf32>, vector<8x128xf32>, vector<8x8xf32> -> vector<8x8xf32>
    %cst_49 = arith.constant dense<0xFF800000> : vector<8xf32>
    %140 = vector.multi_reduction <maximumf>, %139, %cst_49 [1] : vector<8x8xf32> to vector<8xf32>
    %141 = vector.shape_cast %140 : vector<8xf32> to vector<8x1xf32>
    %142 = vector.broadcast %141 : vector<8x1xf32> to vector<8x8xf32>
    %143 = arith.subf %139, %142 : vector<8x8xf32>
    %144 = math.exp %143 : vector<8x8xf32>
    %cst_50 = arith.constant dense<0.000000e+00> : vector<8xf32>
    %145 = vector.multi_reduction <add>, %144, %cst_50 [1] : vector<8x8xf32> to vector<8xf32>
    %146 = vector.shape_cast %145 : vector<8xf32> to vector<8x1xf32>
    %147 = tpu.reciprocal %146 {approx = true} : vector<8x1xf32> -> vector<8x1xf32>
    %148 = vector.broadcast %147 : vector<8x1xf32> to vector<8x8xf32>
    %149 = arith.mulf %144, %148 : vector<8x8xf32>
    %150 = vector.broadcast %38 : vector<1x128xf32> to vector<8x128xf32>
    %151 = arith.mulf %135, %150 : vector<8x128xf32>
    %cst_51 = arith.constant dense<0.000000e+00> : vector<8x128xf32>
    %152 = tpu.matmul %149, %151, %cst_51 {dimension_numbers = #tpu.dot_dimension_numbers<[1], [0], [0], [1], [0, 0, 1, 1], [], []>} : vector<8x8xf32>, vector<8x128xf32>, vector<8x128xf32> -> vector<8x128xf32>
    %153 = arith.addf %136, %152 : vector<8x128xf32>
    %154 = vector.broadcast %45 : vector<1x128xf32> to vector<8x128xf32>
    %155 = arith.mulf %133, %154 : vector<8x128xf32>
    %cst_52 = arith.constant dense<0.000000e+00> : vector<8x8xf32>
    %156 = tpu.matmul %155, %134, %cst_52 {dimension_numbers = #tpu.dot_dimension_numbers<[1], [1], [0], [0], [0, 0, 1, 0], [], []>} : vector<8x128xf32>, vector<8x128xf32>, vector<8x8xf32> -> vector<8x8xf32>
    %cst_53 = arith.constant dense<0xFF800000> : vector<8xf32>
    %157 = vector.multi_reduction <maximumf>, %156, %cst_53 [1] : vector<8x8xf32> to vector<8xf32>
    %158 = vector.shape_cast %157 : vector<8xf32> to vector<8x1xf32>
    %159 = vector.broadcast %158 : vector<8x1xf32> to vector<8x8xf32>
    %160 = arith.subf %156, %159 : vector<8x8xf32>
    %161 = math.exp %160 : vector<8x8xf32>
    %cst_54 = arith.constant dense<0.000000e+00> : vector<8xf32>
    %162 = vector.multi_reduction <add>, %161, %cst_54 [1] : vector<8x8xf32> to vector<8xf32>
    %163 = vector.shape_cast %162 : vector<8xf32> to vector<8x1xf32>
    %164 = tpu.reciprocal %163 {approx = true} : vector<8x1xf32> -> vector<8x1xf32>
    %165 = vector.broadcast %164 : vector<8x1xf32> to vector<8x8xf32>
    %166 = arith.mulf %161, %165 : vector<8x8xf32>
    %167 = vector.broadcast %45 : vector<1x128xf32> to vector<8x128xf32>
    %168 = arith.mulf %135, %167 : vector<8x128xf32>
    %cst_55 = arith.constant dense<0.000000e+00> : vector<8x128xf32>
    %169 = tpu.matmul %166, %168, %cst_55 {dimension_numbers = #tpu.dot_dimension_numbers<[1], [0], [0], [1], [0, 0, 1, 1], [], []>} : vector<8x8xf32>, vector<8x128xf32>, vector<8x128xf32> -> vector<8x128xf32>
    %170 = arith.addf %153, %169 : vector<8x128xf32>
    %171 = vector.broadcast %52 : vector<1x128xf32> to vector<8x128xf32>
    %172 = arith.mulf %133, %171 : vector<8x128xf32>
    %cst_56 = arith.constant dense<0.000000e+00> : vector<8x8xf32>
    %173 = tpu.matmul %172, %134, %cst_56 {dimension_numbers = #tpu.dot_dimension_numbers<[1], [1], [0], [0], [0, 0, 1, 0], [], []>} : vector<8x128xf32>, vector<8x128xf32>, vector<8x8xf32> -> vector<8x8xf32>
    %cst_57 = arith.constant dense<0xFF800000> : vector<8xf32>
    %174 = vector.multi_reduction <maximumf>, %173, %cst_57 [1] : vector<8x8xf32> to vector<8xf32>
    %175 = vector.shape_cast %174 : vector<8xf32> to vector<8x1xf32>
    %176 = vector.broadcast %175 : vector<8x1xf32> to vector<8x8xf32>
    %177 = arith.subf %173, %176 : vector<8x8xf32>
    %178 = math.exp %177 : vector<8x8xf32>
    %cst_58 = arith.constant dense<0.000000e+00> : vector<8xf32>
    %179 = vector.multi_reduction <add>, %178, %cst_58 [1] : vector<8x8xf32> to vector<8xf32>
    %180 = vector.shape_cast %179 : vector<8xf32> to vector<8x1xf32>
    %181 = tpu.reciprocal %180 {approx = true} : vector<8x1xf32> -> vector<8x1xf32>
    %182 = vector.broadcast %181 : vector<8x1xf32> to vector<8x8xf32>
    %183 = arith.mulf %178, %182 : vector<8x8xf32>
    %184 = vector.broadcast %52 : vector<1x128xf32> to vector<8x128xf32>
    %185 = arith.mulf %135, %184 : vector<8x128xf32>
    %cst_59 = arith.constant dense<0.000000e+00> : vector<8x128xf32>
    %186 = tpu.matmul %183, %185, %cst_59 {dimension_numbers = #tpu.dot_dimension_numbers<[1], [0], [0], [1], [0, 0, 1, 1], [], []>} : vector<8x8xf32>, vector<8x128xf32>, vector<8x128xf32> -> vector<8x128xf32>
    %187 = arith.addf %170, %186 : vector<8x128xf32>
    %188 = vector.broadcast %59 : vector<1x128xf32> to vector<8x128xf32>
    %189 = arith.mulf %133, %188 : vector<8x128xf32>
    %cst_60 = arith.constant dense<0.000000e+00> : vector<8x8xf32>
    %190 = tpu.matmul %189, %134, %cst_60 {dimension_numbers = #tpu.dot_dimension_numbers<[1], [1], [0], [0], [0, 0, 1, 0], [], []>} : vector<8x128xf32>, vector<8x128xf32>, vector<8x8xf32> -> vector<8x8xf32>
    %cst_61 = arith.constant dense<0xFF800000> : vector<8xf32>
    %191 = vector.multi_reduction <maximumf>, %190, %cst_61 [1] : vector<8x8xf32> to vector<8xf32>
    %192 = vector.shape_cast %191 : vector<8xf32> to vector<8x1xf32>
    %193 = vector.broadcast %192 : vector<8x1xf32> to vector<8x8xf32>
    %194 = arith.subf %190, %193 : vector<8x8xf32>
    %195 = math.exp %194 : vector<8x8xf32>
    %cst_62 = arith.constant dense<0.000000e+00> : vector<8xf32>
    %196 = vector.multi_reduction <add>, %195, %cst_62 [1] : vector<8x8xf32> to vector<8xf32>
    %197 = vector.shape_cast %196 : vector<8xf32> to vector<8x1xf32>
    %198 = tpu.reciprocal %197 {approx = true} : vector<8x1xf32> -> vector<8x1xf32>
    %199 = vector.broadcast %198 : vector<8x1xf32> to vector<8x8xf32>
    %200 = arith.mulf %195, %199 : vector<8x8xf32>
    %201 = vector.broadcast %59 : vector<1x128xf32> to vector<8x128xf32>
    %202 = arith.mulf %135, %201 : vector<8x128xf32>
    %cst_63 = arith.constant dense<0.000000e+00> : vector<8x128xf32>
    %203 = tpu.matmul %200, %202, %cst_63 {dimension_numbers = #tpu.dot_dimension_numbers<[1], [0], [0], [1], [0, 0, 1, 1], [], []>} : vector<8x8xf32>, vector<8x128xf32>, vector<8x128xf32> -> vector<8x128xf32>
    %204 = arith.addf %187, %203 : vector<8x128xf32>
    %c8 = arith.constant 8 : index
    %c0_64 = arith.constant 0 : index
    %205 = vector.load %arg25[%c8, %c0_64] : memref<16x128xf32, #tpu.memory_space<vmem>>, vector<8x128xf32>
    tpu.vector_store %arg25[%c8, %c0_64], %204 {strides = array<i32>} : memref<16x128xf32, #tpu.memory_space<vmem>>, vector<8x128xf32>,
    %c0_65 = arith.constant 0 : index
    %c0_66 = arith.constant 0 : index
    %206 = vector.load %arg25[%c0_65, %c0_66] : memref<16x128xf32, #tpu.memory_space<vmem>>, vector<16x128xf32>
    %c0_67 = arith.constant 0 : index
    %c0_68 = arith.constant 0 : index
    %c0_69 = arith.constant 0 : index
    %207 = vector.load %arg11[%c0_67, %c0_68, %c0_69] : memref<1x128x128xf32, #tpu.memory_space<vmem>>, vector<1x128x128xf32>
    %208 = vector.shape_cast %207 : vector<1x128x128xf32> to vector<128x128xf32>
    %cst_70 = arith.constant dense<0.000000e+00> : vector<16x128xf32>
    %209 = tpu.matmul %206, %208, %cst_70 {dimension_numbers = #tpu.dot_dimension_numbers<[1], [0], [0], [1], [0, 0, 1, 1], [], []>} : vector<16x128xf32>, vector<128x128xf32>, vector<16x128xf32> -> vector<16x128xf32>
    %c0_71 = arith.constant 0 : index
    %c0_72 = arith.constant 0 : index
    %c0_73 = arith.constant 0 : index
    %210 = vector.load %arg12[%c0_71, %c0_72, %c0_73] : memref<1x1x128xf32, #tpu.memory_space<vmem>>, vector<1x1x128xf32>
    %211 = vector.shape_cast %210 : vector<1x1x128xf32> to vector<1x128xf32>
    %212 = vector.broadcast %211 : vector<1x128xf32> to vector<16x128xf32>
    %213 = arith.addf %209, %212 : vector<16x128xf32>
    %214 = arith.addf %3, %213 : vector<16x128xf32>
    %c0_74 = arith.constant 0 : index
    %c0_75 = arith.constant 0 : index
    %c0_76 = arith.constant 0 : index
    %215 = vector.load %arg13[%c0_74, %c0_75, %c0_76] : memref<1x1x128xf32, #tpu.memory_space<vmem>>, vector<1x1x128xf32>
    %216 = vector.shape_cast %215 : vector<1x1x128xf32> to vector<1x128xf32>
    %c0_77 = arith.constant 0 : index
    %c0_78 = arith.constant 0 : index
    %c0_79 = arith.constant 0 : index
    %217 = vector.load %arg14[%c0_77, %c0_78, %c0_79] : memref<1x1x128xf32, #tpu.memory_space<vmem>>, vector<1x1x128xf32>
    %218 = vector.shape_cast %217 : vector<1x1x128xf32> to vector<1x128xf32>
    %219 = vector.broadcast %8 : vector<1x128xf32> to vector<16x128xf32>
    %220 = arith.mulf %214, %219 : vector<16x128xf32>
    %cst_80 = arith.constant dense<0.000000e+00> : vector<16xf32>
    %221 = vector.multi_reduction <add>, %220, %cst_80 [1] : vector<16x128xf32> to vector<16xf32>
    %222 = vector.shape_cast %221 : vector<16xf32> to vector<16x1xf32>
    %cst_81 = arith.constant 3.125000e-02 : f32
    %223 = vector.broadcast %cst_81 : f32 to vector<16x1xf32>
    %224 = arith.mulf %222, %223 : vector<16x1xf32>
    %225 = vector.broadcast %224 : vector<16x1xf32> to vector<16x128xf32>
    %226 = arith.subf %214, %225 : vector<16x128xf32>
    %227 = vector.broadcast %8 : vector<1x128xf32> to vector<16x128xf32>
    %228 = arith.mulf %226, %227 : vector<16x128xf32>
    %229 = arith.mulf %228, %228 : vector<16x128xf32>
    %cst_82 = arith.constant dense<0.000000e+00> : vector<16xf32>
    %230 = vector.multi_reduction <add>, %229, %cst_82 [1] : vector<16x128xf32> to vector<16xf32>
    %231 = vector.shape_cast %230 : vector<16xf32> to vector<16x1xf32>
    %cst_83 = arith.constant 3.125000e-02 : f32
    %232 = vector.broadcast %cst_83 : f32 to vector<16x1xf32>
    %233 = arith.mulf %231, %232 : vector<16x1xf32>
    %cst_84 = arith.constant 9.99999996E-13 : f32
    %234 = vector.broadcast %cst_84 : f32 to vector<16x1xf32>
    %235 = arith.addf %233, %234 : vector<16x1xf32>
    %236 = math.rsqrt %235 : vector<16x1xf32>
    %237 = vector.broadcast %236 : vector<16x1xf32> to vector<16x128xf32>
    %238 = arith.mulf %228, %237 : vector<16x128xf32>
    %239 = vector.broadcast %216 : vector<1x128xf32> to vector<16x128xf32>
    %240 = arith.mulf %238, %239 : vector<16x128xf32>
    %241 = vector.broadcast %218 : vector<1x128xf32> to vector<16x128xf32>
    %242 = arith.addf %240, %241 : vector<16x128xf32>
    %c0_85 = arith.constant 0 : index
    %c0_86 = arith.constant 0 : index
    %c0_87 = arith.constant 0 : index
    %243 = vector.load %arg15[%c0_85, %c0_86, %c0_87] : memref<1x128x128xf32, #tpu.memory_space<vmem>>, vector<1x128x128xf32>
    %244 = vector.shape_cast %243 : vector<1x128x128xf32> to vector<128x128xf32>
    %cst_88 = arith.constant dense<0.000000e+00> : vector<16x128xf32>
    %245 = tpu.matmul %242, %244, %cst_88 {dimension_numbers = #tpu.dot_dimension_numbers<[1], [0], [0], [1], [0, 0, 1, 1], [], []>} : vector<16x128xf32>, vector<128x128xf32>, vector<16x128xf32> -> vector<16x128xf32>
    %c0_89 = arith.constant 0 : index
    %c0_90 = arith.constant 0 : index
    %c0_91 = arith.constant 0 : index
    %246 = vector.load %arg16[%c0_89, %c0_90, %c0_91] : memref<1x1x128xf32, #tpu.memory_space<vmem>>, vector<1x1x128xf32>
    %247 = vector.shape_cast %246 : vector<1x1x128xf32> to vector<1x128xf32>
    %248 = vector.broadcast %247 : vector<1x128xf32> to vector<16x128xf32>
    %249 = arith.addf %245, %248 : vector<16x128xf32>
    %250 = arith.mulf %249, %249 : vector<16x128xf32>
    %251 = arith.mulf %249, %250 : vector<16x128xf32>
    %cst_92 = arith.constant 4.471500e-02 : f32
    %252 = vector.broadcast %cst_92 : f32 to vector<16x128xf32>
    %253 = arith.mulf %252, %251 : vector<16x128xf32>
    %254 = arith.addf %249, %253 : vector<16x128xf32>
    %cst_93 = arith.constant 0.797884583 : f32
    %255 = vector.broadcast %cst_93 : f32 to vector<16x128xf32>
    %256 = arith.mulf %255, %254 : vector<16x128xf32>
    %257 = math.tanh %256 : vector<16x128xf32>
    %cst_94 = arith.constant 1.000000e+00 : f32
    %258 = vector.broadcast %cst_94 : f32 to vector<16x128xf32>
    %259 = arith.addf %258, %257 : vector<16x128xf32>
    %cst_95 = arith.constant 5.000000e-01 : f32
    %260 = vector.broadcast %cst_95 : f32 to vector<16x128xf32>
    %261 = arith.mulf %260, %259 : vector<16x128xf32>
    %262 = arith.mulf %249, %261 : vector<16x128xf32>
    %c0_96 = arith.constant 0 : index
    %c0_97 = arith.constant 0 : index
    %c0_98 = arith.constant 0 : index
    %263 = vector.load %arg17[%c0_96, %c0_97, %c0_98] : memref<1x128x128xf32, #tpu.memory_space<vmem>>, vector<1x128x128xf32>
    %264 = vector.shape_cast %263 : vector<1x128x128xf32> to vector<128x128xf32>
    %cst_99 = arith.constant dense<0.000000e+00> : vector<16x128xf32>
    %265 = tpu.matmul %262, %264, %cst_99 {dimension_numbers = #tpu.dot_dimension_numbers<[1], [0], [0], [1], [0, 0, 1, 1], [], []>} : vector<16x128xf32>, vector<128x128xf32>, vector<16x128xf32> -> vector<16x128xf32>
    %c0_100 = arith.constant 0 : index
    %c0_101 = arith.constant 0 : index
    %c0_102 = arith.constant 0 : index
    %266 = vector.load %arg18[%c0_100, %c0_101, %c0_102] : memref<1x1x128xf32, #tpu.memory_space<vmem>>, vector<1x1x128xf32>
    %267 = vector.shape_cast %266 : vector<1x1x128xf32> to vector<1x128xf32>
    %268 = vector.broadcast %267 : vector<1x128xf32> to vector<16x128xf32>
    %269 = arith.addf %265, %268 : vector<16x128xf32>
    %270 = arith.addf %242, %269 : vector<16x128xf32>
    %c0_103 = arith.constant 0 : index
    %c0_104 = arith.constant 0 : index
    %c0_105 = arith.constant 0 : index
    %271 = vector.load %arg19[%c0_103, %c0_104, %c0_105] : memref<1x1x128xf32, #tpu.memory_space<vmem>>, vector<1x1x128xf32>
    %272 = vector.shape_cast %271 : vector<1x1x128xf32> to vector<1x128xf32>
    %c0_106 = arith.constant 0 : index
    %c0_107 = arith.constant 0 : index
    %c0_108 = arith.constant 0 : index
    %273 = vector.load %arg20[%c0_106, %c0_107, %c0_108] : memref<1x1x128xf32, #tpu.memory_space<vmem>>, vector<1x1x128xf32>
    %274 = vector.shape_cast %273 : vector<1x1x128xf32> to vector<1x128xf32>
    %275 = vector.broadcast %8 : vector<1x128xf32> to vector<16x128xf32>
    %276 = arith.mulf %270, %275 : vector<16x128xf32>
    %cst_109 = arith.constant dense<0.000000e+00> : vector<16xf32>
    %277 = vector.multi_reduction <add>, %276, %cst_109 [1] : vector<16x128xf32> to vector<16xf32>
    %278 = vector.shape_cast %277 : vector<16xf32> to vector<16x1xf32>
    %cst_110 = arith.constant 3.125000e-02 : f32
    %279 = vector.broadcast %cst_110 : f32 to vector<16x1xf32>
    %280 = arith.mulf %278, %279 : vector<16x1xf32>
    %281 = vector.broadcast %280 : vector<16x1xf32> to vector<16x128xf32>
    %282 = arith.subf %270, %281 : vector<16x128xf32>
    %283 = vector.broadcast %8 : vector<1x128xf32> to vector<16x128xf32>
    %284 = arith.mulf %282, %283 : vector<16x128xf32>
    %285 = arith.mulf %284, %284 : vector<16x128xf32>
    %cst_111 = arith.constant dense<0.000000e+00> : vector<16xf32>
    %286 = vector.multi_reduction <add>, %285, %cst_111 [1] : vector<16x128xf32> to vector<16xf32>
    %287 = vector.shape_cast %286 : vector<16xf32> to vector<16x1xf32>
    %cst_112 = arith.constant 3.125000e-02 : f32
    %288 = vector.broadcast %cst_112 : f32 to vector<16x1xf32>
    %289 = arith.mulf %287, %288 : vector<16x1xf32>
    %cst_113 = arith.constant 9.99999996E-13 : f32
    %290 = vector.broadcast %cst_113 : f32 to vector<16x1xf32>
    %291 = arith.addf %289, %290 : vector<16x1xf32>
    %292 = math.rsqrt %291 : vector<16x1xf32>
    %293 = vector.broadcast %292 : vector<16x1xf32> to vector<16x128xf32>
    %294 = arith.mulf %284, %293 : vector<16x128xf32>
    %295 = vector.broadcast %272 : vector<1x128xf32> to vector<16x128xf32>
    %296 = arith.mulf %294, %295 : vector<16x128xf32>
    %297 = vector.broadcast %274 : vector<1x128xf32> to vector<16x128xf32>
    %298 = arith.addf %296, %297 : vector<16x128xf32>
    %c0_114 = arith.constant 0 : index
    %c0_115 = arith.constant 0 : index
    %299 = vector.load %arg24[%c0_114, %c0_115] : memref<16x128xf32, #tpu.memory_space<vmem>>, vector<16x128xf32>
    tpu.vector_store %arg24[%c0_114, %c0_115], %298 {strides = array<i32>} : memref<16x128xf32, #tpu.memory_space<vmem>>, vector<16x128xf32>,
    %c1_i32 = arith.constant 1 : i32
    %300 = arith.cmpi eq, %arg1, %c1_i32 : i32
    %301 = arith.extui %300 : i1 to i32
    %c0_i32_116 = arith.constant 0 : i32
    %302 = arith.cmpi ne, %301, %c0_i32_116 : i32
    scf.if %302 {
      %c0_117 = arith.constant 0 : index
      %c0_118 = arith.constant 0 : index
      %303 = vector.load %arg21[%c0_117, %c0_118] : memref<128x128xf32, #tpu.memory_space<vmem>>, vector<128x128xf32>
      %cst_119 = arith.constant dense<0.000000e+00> : vector<16x128xf32>
      %304 = tpu.matmul %298, %303, %cst_119 {dimension_numbers = #tpu.dot_dimension_numbers<[1], [0], [0], [1], [0, 0, 1, 1], [], []>} : vector<16x128xf32>, vector<128x128xf32>, vector<16x128xf32> -> vector<16x128xf32>
      %c0_120 = arith.constant 0 : index
      %c0_121 = arith.constant 0 : index
      %305 = vector.load %arg22[%c0_120, %c0_121] : memref<1x128xf32, #tpu.memory_space<vmem>>, vector<1x128xf32>
      %306 = vector.broadcast %305 : vector<1x128xf32> to vector<16x128xf32>
      %307 = arith.addf %304, %306 : vector<16x128xf32>
      %c0_122 = arith.constant 0 : index
      %c0_123 = arith.constant 0 : index
      %308 = vector.load %arg23[%c0_122, %c0_123] : memref<16x128xf32, #tpu.memory_space<vmem>>, vector<16x128xf32>
      tpu.vector_store %arg23[%c0_122, %c0_123], %307 {strides = array<i32>} : memref<16x128xf32, #tpu.memory_space<vmem>>, vector<16x128xf32>,
    } else {
    }
    return
  }
  func.func @transform_0(%arg0: i32, %arg1: i32) -> (i32, i32) {
    %c0_i32 = arith.constant 0 : i32
    %c0_i32_0 = arith.constant 0 : i32
    return %arg0, %c0_i32 : i32, i32
  }
  func.func @transform_1(%arg0: i32, %arg1: i32) -> (i32, i32) {
    %c0_i32 = arith.constant 0 : i32
    %c0_i32_0 = arith.constant 0 : i32
    %c0_i32_1 = arith.constant 0 : i32
    return %c0_i32, %c0_i32_0 : i32, i32
  }
  func.func @transform_2(%arg0: i32, %arg1: i32) -> (i32, i32) {
    %c0_i32 = arith.constant 0 : i32
    %c0_i32_0 = arith.constant 0 : i32
    %c0_i32_1 = arith.constant 0 : i32
    return %c0_i32, %c0_i32_0 : i32, i32
  }
  func.func @transform_3(%arg0: i32, %arg1: i32) -> (i32, i32, i32) {
    %c0_i32 = arith.constant 0 : i32
    %c0_i32_0 = arith.constant 0 : i32
    %c0_i32_1 = arith.constant 0 : i32
    return %arg1, %c0_i32, %c0_i32_0 : i32, i32, i32
  }
  func.func @transform_4(%arg0: i32, %arg1: i32) -> (i32, i32, i32) {
    %c0_i32 = arith.constant 0 : i32
    %c0_i32_0 = arith.constant 0 : i32
    %c0_i32_1 = arith.constant 0 : i32
    return %arg1, %c0_i32, %c0_i32_0 : i32, i32, i32
  }
  func.func @transform_5(%arg0: i32, %arg1: i32) -> (i32, i32, i32) {
    %c0_i32 = arith.constant 0 : i32
    %c0_i32_0 = arith.constant 0 : i32
    %c0_i32_1 = arith.constant 0 : i32
    return %arg1, %c0_i32, %c0_i32_0 : i32, i32, i32
  }
  func.func @transform_6(%arg0: i32, %arg1: i32) -> (i32, i32, i32) {
    %c0_i32 = arith.constant 0 : i32
    %c0_i32_0 = arith.constant 0 : i32
    %c0_i32_1 = arith.constant 0 : i32
    return %arg1, %c0_i32, %c0_i32_0 : i32, i32, i32
  }
  func.func @transform_7(%arg0: i32, %arg1: i32) -> (i32, i32, i32) {
    %c0_i32 = arith.constant 0 : i32
    %c0_i32_0 = arith.constant 0 : i32
    %c0_i32_1 = arith.constant 0 : i32
    return %arg1, %c0_i32, %c0_i32_0 : i32, i32, i32
  }
  func.func @transform_8(%arg0: i32, %arg1: i32) -> (i32, i32, i32) {
    %c0_i32 = arith.constant 0 : i32
    %c0_i32_0 = arith.constant 0 : i32
    %c0_i32_1 = arith.constant 0 : i32
    return %arg1, %c0_i32, %c0_i32_0 : i32, i32, i32
  }
  func.func @transform_9(%arg0: i32, %arg1: i32) -> (i32, i32, i32) {
    %c0_i32 = arith.constant 0 : i32
    %c0_i32_0 = arith.constant 0 : i32
    %c0_i32_1 = arith.constant 0 : i32
    return %arg1, %c0_i32, %c0_i32_0 : i32, i32, i32
  }
  func.func @transform_10(%arg0: i32, %arg1: i32) -> (i32, i32, i32) {
    %c0_i32 = arith.constant 0 : i32
    %c0_i32_0 = arith.constant 0 : i32
    %c0_i32_1 = arith.constant 0 : i32
    return %arg1, %c0_i32, %c0_i32_0 : i32, i32, i32
  }
  func.func @transform_11(%arg0: i32, %arg1: i32) -> (i32, i32, i32) {
    %c0_i32 = arith.constant 0 : i32
    %c0_i32_0 = arith.constant 0 : i32
    %c0_i32_1 = arith.constant 0 : i32
    return %arg1, %c0_i32, %c0_i32_0 : i32, i32, i32
  }
  func.func @transform_12(%arg0: i32, %arg1: i32) -> (i32, i32, i32) {
    %c0_i32 = arith.constant 0 : i32
    %c0_i32_0 = arith.constant 0 : i32
    %c0_i32_1 = arith.constant 0 : i32
    return %arg1, %c0_i32, %c0_i32_0 : i32, i32, i32
  }
  func.func @transform_13(%arg0: i32, %arg1: i32) -> (i32, i32, i32) {
    %c0_i32 = arith.constant 0 : i32
    %c0_i32_0 = arith.constant 0 : i32
    %c0_i32_1 = arith.constant 0 : i32
    return %arg1, %c0_i32, %c0_i32_0 : i32, i32, i32
  }
  func.func @transform_14(%arg0: i32, %arg1: i32) -> (i32, i32, i32) {
    %c0_i32 = arith.constant 0 : i32
    %c0_i32_0 = arith.constant 0 : i32
    %c0_i32_1 = arith.constant 0 : i32
    return %arg1, %c0_i32, %c0_i32_0 : i32, i32, i32
  }
  func.func @transform_15(%arg0: i32, %arg1: i32) -> (i32, i32, i32) {
    %c0_i32 = arith.constant 0 : i32
    %c0_i32_0 = arith.constant 0 : i32
    %c0_i32_1 = arith.constant 0 : i32
    return %arg1, %c0_i32, %c0_i32_0 : i32, i32, i32
  }
  func.func @transform_16(%arg0: i32, %arg1: i32) -> (i32, i32, i32) {
    %c0_i32 = arith.constant 0 : i32
    %c0_i32_0 = arith.constant 0 : i32
    %c0_i32_1 = arith.constant 0 : i32
    return %arg1, %c0_i32, %c0_i32_0 : i32, i32, i32
  }
  func.func @transform_17(%arg0: i32, %arg1: i32) -> (i32, i32, i32) {
    %c0_i32 = arith.constant 0 : i32
    %c0_i32_0 = arith.constant 0 : i32
    %c0_i32_1 = arith.constant 0 : i32
    return %arg1, %c0_i32, %c0_i32_0 : i32, i32, i32
  }
  func.func @transform_18(%arg0: i32, %arg1: i32) -> (i32, i32, i32) {
    %c0_i32 = arith.constant 0 : i32
    %c0_i32_0 = arith.constant 0 : i32
    %c0_i32_1 = arith.constant 0 : i32
    return %arg1, %c0_i32, %c0_i32_0 : i32, i32, i32
  }
  func.func @transform_19(%arg0: i32, %arg1: i32) -> (i32, i32) {
    %c0_i32 = arith.constant 0 : i32
    %c0_i32_0 = arith.constant 0 : i32
    %c0_i32_1 = arith.constant 0 : i32
    return %c0_i32, %c0_i32_0 : i32, i32
  }
  func.func @transform_20(%arg0: i32, %arg1: i32) -> (i32, i32) {
    %c0_i32 = arith.constant 0 : i32
    %c0_i32_0 = arith.constant 0 : i32
    %c0_i32_1 = arith.constant 0 : i32
    return %c0_i32, %c0_i32_0 : i32, i32
  }
  func.func @transform_21(%arg0: i32, %arg1: i32) -> (i32, i32) {
    %c0_i32 = arith.constant 0 : i32
    %c0_i32_0 = arith.constant 0 : i32
    return %arg0, %c0_i32 : i32, i32
  }
}

</mosaic_0001>

<llo_original>
// kernel: scbert_word_forward.1
$region0: #{scbert_word_forward.1}
  #allocation0 [shape = 'u32[]', space=smem, size = 0x4, offset = 0x4, fixed_abs, tag = 'smem constant byte address 0x4 - core index']
  #allocation1 [shape = 'u32[144,128]{1,0:T(1,128)}', space=vmem, size = 0x12000, scoped, tag = 'internal scratch']
  #allocation2 [shape = 'f32[16,128]{1,0:T(8,128)}', space=vmem, size = 0x2000, scoped, tag = 'scratch operand']
  #allocation3 [shape = 'f32[16,128]{1,0:T(8,128)}', space=vmem, size = 0x2000, scoped, tag = 'scratch operand']
  %s0 = inlined_call_operand.vmem [shape: f32[16,128], index: 0, kind: input, shape index: {}]
  %s1 = inlined_call_operand.vmem [shape: f32[128,128], index: 1, kind: input, shape index: {}]
  %s2 = inlined_call_operand.vmem [shape: f32[1,128], index: 2, kind: input, shape index: {}]
  %s3 = inlined_call_operand.vmem [shape: f32[2,128,128], index: 3, kind: input, shape index: {}]
  %s4 = inlined_call_operand.vmem [shape: f32[2,1,128], index: 4, kind: input, shape index: {}]
  %s5 = inlined_call_operand.vmem [shape: f32[2,128,128], index: 5, kind: input, shape index: {}]
  %s6 = inlined_call_operand.vmem [shape: f32[2,1,128], index: 6, kind: input, shape index: {}]
  %s7 = inlined_call_operand.vmem [shape: f32[2,128,128], index: 7, kind: input, shape index: {}]
  %s8 = inlined_call_operand.vmem [shape: f32[2,1,128], index: 8, kind: input, shape index: {}]
  %s9 = inlined_call_operand.vmem [shape: f32[2,128,128], index: 9, kind: input, shape index: {}]
  %s10 = inlined_call_operand.vmem [shape: f32[2,1,128], index: 10, kind: input, shape index: {}]
  %s11 = inlined_call_operand.vmem [shape: f32[2,1,128], index: 11, kind: input, shape index: {}]
  %s12 = inlined_call_operand.vmem [shape: f32[2,1,128], index: 12, kind: input, shape index: {}]
  %s13 = inlined_call_operand.vmem [shape: f32[2,128,128], index: 13, kind: input, shape index: {}]
  %s14 = inlined_call_operand.vmem [shape: f32[2,1,128], index: 14, kind: input, shape index: {}]
  %s15 = inlined_call_operand.vmem [shape: f32[2,128,128], index: 15, kind: input, shape index: {}]
  %s16 = inlined_call_operand.vmem [shape: f32[2,1,128], index: 16, kind: input, shape index: {}]
  %s17 = inlined_call_operand.vmem [shape: f32[2,1,128], index: 17, kind: input, shape index: {}]
  %s18 = inlined_call_operand.vmem [shape: f32[2,1,128], index: 18, kind: input, shape index: {}]
  %s19 = inlined_call_operand.vmem [shape: f32[128,128], index: 19, kind: input, shape index: {}]
  %s20 = inlined_call_operand.vmem [shape: f32[1,128], index: 20, kind: input, shape index: {}]
  %s21 = inlined_call_operand.hbm [shape: f32[16,128], index: 21, kind: output, shape index: {}]
  %s22 = sld [smem:[#allocation0]]
  $region125: #{scbert_word_forward.1} parent=0
    _
  %s24 = ssub.s32 1, %s22
  %s25 = scalar_select 0, %s24, %s22
  $region1: #{scbert_word_forward.1} parent=0
    #allocation4 [shape = 'u8[8192]{0}', space=vmem, size = 0x2000, scoped, tag = 'output window, operand 0, single buffered']
    #allocation5 [shape = 's32[2]{0}', space=sflag, size = 0x8, scoped, tag = 'scoped memory for scbert_word_forward.1']
    %26 = vsyncpa [#allocation5], 0
    loop: start=0, step=1, limit=4
    $region2: #{scbert_word_forward.1} parent=1 // loop_pre_header
      _
    $region3: #{scbert_word_forward.1} parent=1 // loop_header
      %s28 = sphi 0, %s32
      %p29 = scmp.ge.s32.totalorder %s28, 4
      %s35 = sphi 0, %s47
      %s36 = sphi 0, %s43
      %s37 = sphi 0, %s35
      %s38 = sphi 0, %s36
      %s39 = sphi 0, %s37
      %s40 = sphi 0, %s38
      %s50 = sphi 0, %s52
      %s53 = sphi 0, %s50
      %s54 = sphi 0, %s53
      %s70 = sphi 0, %s54
      %s74 = sphi 0, %s74
      %s76 = sphi 0, %s74
      %s77 = sphi 0, %s76
      %s91 = sphi 0, %s77
      %s95 = sphi 0, %s95
      %s97 = sphi 0, %s95
      %s98 = sphi 0, %s97
      %s112 = sphi 0, %s98
      %s118 = sphi 0, %s120
      %s121 = sphi 0, %s118
      %s122 = sphi 0, %s121
      %s138 = sphi 0, %s122
      %s144 = sphi 0, %s146
      %s147 = sphi 0, %s144
      %s148 = sphi 0, %s147
      %s164 = sphi 0, %s148
      %s170 = sphi 0, %s172
      %s173 = sphi 0, %s170
      %s174 = sphi 0, %s173
      %s190 = sphi 0, %s174
      %s196 = sphi 0, %s198
      %s199 = sphi 0, %s196
      %s200 = sphi 0, %s199
      %s216 = sphi 0, %s200
      %s222 = sphi 0, %s224
      %s225 = sphi 0, %s222
      %s226 = sphi 0, %s225
      %s242 = sphi 0, %s226
      %s248 = sphi 0, %s250
      %s251 = sphi 0, %s248
      %s252 = sphi 0, %s251
      %s268 = sphi 0, %s252
      %s274 = sphi 0, %s276
      %s277 = sphi 0, %s274
      %s278 = sphi 0, %s277
      %s294 = sphi 0, %s278
      %s300 = sphi 0, %s302
      %s303 = sphi 0, %s300
      %s304 = sphi 0, %s303
      %s320 = sphi 0, %s304
      %s326 = sphi 0, %s328
      %s329 = sphi 0, %s326
      %s330 = sphi 0, %s329
      %s346 = sphi 0, %s330
      %s352 = sphi 0, %s354
      %s355 = sphi 0, %s352
      %s356 = sphi 0, %s355
      %s372 = sphi 0, %s356
      %s378 = sphi 0, %s380
      %s381 = sphi 0, %s378
      %s382 = sphi 0, %s381
      %s398 = sphi 0, %s382
      %s404 = sphi 0, %s406
      %s407 = sphi 0, %s404
      %s408 = sphi 0, %s407
      %s424 = sphi 0, %s408
      %s430 = sphi 0, %s432
      %s433 = sphi 0, %s430
      %s434 = sphi 0, %s433
      %s450 = sphi 0, %s434
      %s456 = sphi 0, %s458
      %s459 = sphi 0, %s456
      %s460 = sphi 0, %s459
      %s476 = sphi 0, %s460
      %s482 = sphi 0, %s484
      %s485 = sphi 0, %s482
      %s486 = sphi 0, %s485
      %s502 = sphi 0, %s486
      %s508 = sphi 0, %s510
      %s511 = sphi 0, %s508
      %s512 = sphi 0, %s511
      %s528 = sphi 0, %s512
      %s532 = sphi 0, %s532
      %s534 = sphi 0, %s532
      %s535 = sphi 0, %s534
      %s549 = sphi 0, %s535
      %s553 = sphi 0, %s553
      %s555 = sphi 0, %s553
      %s556 = sphi 0, %s555
      %s570 = sphi 0, %s556
      %s576 = sphi 0, %s578
      %s579 = sphi 0, %s576
      %s580 = sphi 0, %s579
      %s596 = sphi 0, %s580
    $region4: #{scbert_word_forward.1} parent=1 // loop_header_branch
      %31 = sbr.rel (%p29) target = $region8
    $region5: #{scbert_word_forward.1} parent=1 // loop_body
      %s33 = ssub.s32 %s28, 1
      %s34 = ssub.s32 %s28, 2
      %s41 = sadd.s32 1, %s36
      %p42 = scmp.ge.s32.totalorder %s41, 2
      %s43 = scalar_select %p42, 0, %s41
      %s44 = sadd.s32 1, %s35
      %s45 = scalar_select %p42, %s44, %s35
      %p46 = scmp.ge.s32.totalorder %s45, 1
      %s47 = scalar_select %p46, 0, %s45
      %s48 = ssub.s32 %s35, %s47
      %p49 = scmp.eq.s32.totalorder %s48, 0
      %s51 = sadd.s32 %s50, 1
      %s52 = scalar_select %p49, %s50, %s51
      %p55 = pneg %p49
      %p56 = scmp.eq.s32.totalorder %s28, 1
      %p57 = por %p55, %p56
      %p58 = scmp.ne.s32.totalorder %s50, %s53
      %p59 = scmp.eq.s32.totalorder %s28, 0
      %p60 = por %p58, %p59
      %p61 = scmp.ne.s32.totalorder %s50, %s53
      %p62 = scmp.eq.s32.totalorder %s33, 1
      %p63 = por %p61, %p62
      %p64 = scmp.ne.s32.totalorder %s53, %s54
      %p65 = scmp.eq.s32.totalorder %s33, 0
      %p66 = por %p64, %p65
      %p67 = scmp.ne.s32.totalorder %s53, %s54
      %p68 = scmp.eq.s32.totalorder %s34, 1
      %p69 = por %p67, %p68
      %p71 = scmp.ne.s32.totalorder %s54, %s70
      %p72 = scmp.eq.s32.totalorder %s34, 0
      %p73 = por %p71, %p72
      %s75 = sadd.s32 %s74, 1
      %p78 = scmp.eq.s32.totalorder %s28, 1
      %p79 = scmp.ne.s32.totalorder %s74, %s76
      %p80 = scmp.eq.s32.totalorder %s28, 0
      %p81 = por %p79, %p80
      %p82 = scmp.ne.s32.totalorder %s74, %s76
      %p83 = scmp.eq.s32.totalorder %s33, 1
      %p84 = por %p82, %p83
      %p85 = scmp.ne.s32.totalorder %s76, %s77
      %p86 = scmp.eq.s32.totalorder %s33, 0
      %p87 = por %p85, %p86
      %p88 = scmp.ne.s32.totalorder %s76, %s77
      %p89 = scmp.eq.s32.totalorder %s34, 1
      %p90 = por %p88, %p89
      %p92 = scmp.ne.s32.totalorder %s77, %s91
      %p93 = scmp.eq.s32.totalorder %s34, 0
      %p94 = por %p92, %p93
      %s96 = sadd.s32 %s95, 1
      %p99 = scmp.eq.s32.totalorder %s28, 1
      %p100 = scmp.ne.s32.totalorder %s95, %s97
      %p101 = scmp.eq.s32.totalorder %s28, 0
      %p102 = por %p100, %p101
      %p103 = scmp.ne.s32.totalorder %s95, %s97
      %p104 = scmp.eq.s32.totalorder %s33, 1
      %p105 = por %p103, %p104
      %p106 = scmp.ne.s32.totalorder %s97, %s98
      %p107 = scmp.eq.s32.totalorder %s33, 0
      %p108 = por %p106, %p107
      %p109 = scmp.ne.s32.totalorder %s97, %s98
      %p110 = scmp.eq.s32.totalorder %s34, 1
      %p111 = por %p109, %p110
      %p113 = scmp.ne.s32.totalorder %s98, %s112
      %p114 = scmp.eq.s32.totalorder %s34, 0
      %p115 = por %p113, %p114
      %s116 = ssub.s32 %s36, %s43
      %p117 = scmp.eq.s32.totalorder %s116, 0
      %s119 = sadd.s32 %s118, 1
      %s120 = scalar_select %p117, %s118, %s119
      %p123 = pneg %p117
      %p124 = scmp.eq.s32.totalorder %s28, 1
      %p125 = por %p123, %p124
      %p126 = scmp.ne.s32.totalorder %s118, %s121
      %p127 = scmp.eq.s32.totalorder %s28, 0
      %p128 = por %p126, %p127
      %p129 = scmp.ne.s32.totalorder %s118, %s121
      %p130 = scmp.eq.s32.totalorder %s33, 1
      %p131 = por %p129, %p130
      %p132 = scmp.ne.s32.totalorder %s121, %s122
      %p133 = scmp.eq.s32.totalorder %s33, 0
      %p134 = por %p132, %p133
      %p135 = scmp.ne.s32.totalorder %s121, %s122
      %p136 = scmp.eq.s32.totalorder %s34, 1
      %p137 = por %p135, %p136
      %p139 = scmp.ne.s32.totalorder %s122, %s138
      %p140 = scmp.eq.s32.totalorder %s34, 0
      %p141 = por %p139, %p140
      %s142 = ssub.s32 %s36, %s43
      %p143 = scmp.eq.s32.totalorder %s142, 0
      %s145 = sadd.s32 %s144, 1
      %s146 = scalar_select %p143, %s144, %s145
      %p149 = pneg %p143
      %p150 = scmp.eq.s32.totalorder %s28, 1
      %p151 = por %p149, %p150
      %p152 = scmp.ne.s32.totalorder %s144, %s147
      %p153 = scmp.eq.s32.totalorder %s28, 0
      %p154 = por %p152, %p153
      %p155 = scmp.ne.s32.totalorder %s144, %s147
      %p156 = scmp.eq.s32.totalorder %s33, 1
      %p157 = por %p155, %p156
      %p158 = scmp.ne.s32.totalorder %s147, %s148
      %p159 = scmp.eq.s32.totalorder %s33, 0
      %p160 = por %p158, %p159
      %p161 = scmp.ne.s32.totalorder %s147, %s148
      %p162 = scmp.eq.s32.totalorder %s34, 1
      %p163 = por %p161, %p162
      %p165 = scmp.ne.s32.totalorder %s148, %s164
      %p166 = scmp.eq.s32.totalorder %s34, 0
      %p167 = por %p165, %p166
      %s168 = ssub.s32 %s36, %s43
      %p169 = scmp.eq.s32.totalorder %s168, 0
      %s171 = sadd.s32 %s170, 1
      %s172 = scalar_select %p169, %s170, %s171
      %p175 = pneg %p169
      %p176 = scmp.eq.s32.totalorder %s28, 1
      %p177 = por %p175, %p176
      %p178 = scmp.ne.s32.totalorder %s170, %s173
      %p179 = scmp.eq.s32.totalorder %s28, 0
      %p180 = por %p178, %p179
      %p181 = scmp.ne.s32.totalorder %s170, %s173
      %p182 = scmp.eq.s32.totalorder %s33, 1
      %p183 = por %p181, %p182
      %p184 = scmp.ne.s32.totalorder %s173, %s174
      %p185 = scmp.eq.s32.totalorder %s33, 0
      %p186 = por %p184, %p185
      %p187 = scmp.ne.s32.totalorder %s173, %s174
      %p188 = scmp.eq.s32.totalorder %s34, 1
      %p189 = por %p187, %p188
      %p191 = scmp.ne.s32.totalorder %s174, %s190
      %p192 = scmp.eq.s32.totalorder %s34, 0
      %p193 = por %p191, %p192
      %s194 = ssub.s32 %s36, %s43
      %p195 = scmp.eq.s32.totalorder %s194, 0
      %s197 = sadd.s32 %s196, 1
      %s198 = scalar_select %p195, %s196, %s197
      %p201 = pneg %p195
      %p202 = scmp.eq.s32.totalorder %s28, 1
      %p203 = por %p201, %p202
      %p204 = scmp.ne.s32.totalorder %s196, %s199
      %p205 = scmp.eq.s32.totalorder %s28, 0
      %p206 = por %p204, %p205
      %p207 = scmp.ne.s32.totalorder %s196, %s199
      %p208 = scmp.eq.s32.totalorder %s33, 1
      %p209 = por %p207, %p208
      %p210 = scmp.ne.s32.totalorder %s199, %s200
      %p211 = scmp.eq.s32.totalorder %s33, 0
      %p212 = por %p210, %p211
      %p213 = scmp.ne.s32.totalorder %s199, %s200
      %p214 = scmp.eq.s32.totalorder %s34, 1
      %p215 = por %p213, %p214
      %p217 = scmp.ne.s32.totalorder %s200, %s216
      %p218 = scmp.eq.s32.totalorder %s34, 0
      %p219 = por %p217, %p218
      %s220 = ssub.s32 %s36, %s43
      %p221 = scmp.eq.s32.totalorder %s220, 0
      %s223 = sadd.s32 %s222, 1
      %s224 = scalar_select %p221, %s222, %s223
      %p227 = pneg %p221
      %p228 = scmp.eq.s32.totalorder %s28, 1
      %p229 = por %p227, %p228
      %p230 = scmp.ne.s32.totalorder %s222, %s225
      %p231 = scmp.eq.s32.totalorder %s28, 0
      %p232 = por %p230, %p231
      %p233 = scmp.ne.s32.totalorder %s222, %s225
      %p234 = scmp.eq.s32.totalorder %s33, 1
      %p235 = por %p233, %p234
      %p236 = scmp.ne.s32.totalorder %s225, %s226
      %p237 = scmp.eq.s32.totalorder %s33, 0
      %p238 = por %p236, %p237
      %p239 = scmp.ne.s32.totalorder %s225, %s226
      %p240 = scmp.eq.s32.totalorder %s34, 1
      %p241 = por %p239, %p240
      %p243 = scmp.ne.s32.totalorder %s226, %s242
      %p244 = scmp.eq.s32.totalorder %s34, 0
      %p245 = por %p243, %p244
      %s246 = ssub.s32 %s36, %s43
      %p247 = scmp.eq.s32.totalorder %s246, 0
      %s249 = sadd.s32 %s248, 1
      %s250 = scalar_select %p247, %s248, %s249
      %p253 = pneg %p247
      %p254 = scmp.eq.s32.totalorder %s28, 1
      %p255 = por %p253, %p254
      %p256 = scmp.ne.s32.totalorder %s248, %s251
      %p257 = scmp.eq.s32.totalorder %s28, 0
      %p258 = por %p256, %p257
      %p259 = scmp.ne.s32.totalorder %s248, %s251
      %p260 = scmp.eq.s32.totalorder %s33, 1
      %p261 = por %p259, %p260
      %p262 = scmp.ne.s32.totalorder %s251, %s252
      %p263 = scmp.eq.s32.totalorder %s33, 0
      %p264 = por %p262, %p263
      %p265 = scmp.ne.s32.totalorder %s251, %s252
      %p266 = scmp.eq.s32.totalorder %s34, 1
      %p267 = por %p265, %p266
      %p269 = scmp.ne.s32.totalorder %s252, %s268
      %p270 = scmp.eq.s32.totalorder %s34, 0
      %p271 = por %p269, %p270
      %s272 = ssub.s32 %s36, %s43
      %p273 = scmp.eq.s32.totalorder %s272, 0
      %s275 = sadd.s32 %s274, 1
      %s276 = scalar_select %p273, %s274, %s275
      %p279 = pneg %p273
      %p280 = scmp.eq.s32.totalorder %s28, 1
      %p281 = por %p279, %p280
      %p282 = scmp.ne.s32.totalorder %s274, %s277
      %p283 = scmp.eq.s32.totalorder %s28, 0
      %p284 = por %p282, %p283
      %p285 = scmp.ne.s32.totalorder %s274, %s277
      %p286 = scmp.eq.s32.totalorder %s33, 1
      %p287 = por %p285, %p286
      %p288 = scmp.ne.s32.totalorder %s277, %s278
      %p289 = scmp.eq.s32.totalorder %s33, 0
      %p290 = por %p288, %p289
      %p291 = scmp.ne.s32.totalorder %s277, %s278
      %p292 = scmp.eq.s32.totalorder %s34, 1
      %p293 = por %p291, %p292
      %p295 = scmp.ne.s32.totalorder %s278, %s294
      %p296 = scmp.eq.s32.totalorder %s34, 0
      %p297 = por %p295, %p296
      %s298 = ssub.s32 %s36, %s43
      %p299 = scmp.eq.s32.totalorder %s298, 0
      %s301 = sadd.s32 %s300, 1
      %s302 = scalar_select %p299, %s300, %s301
      %p305 = pneg %p299
      %p306 = scmp.eq.s32.totalorder %s28, 1
      %p307 = por %p305, %p306
      %p308 = scmp.ne.s32.totalorder %s300, %s303
      %p309 = scmp.eq.s32.totalorder %s28, 0
      %p310 = por %p308, %p309
      %p311 = scmp.ne.s32.totalorder %s300, %s303
      %p312 = scmp.eq.s32.totalorder %s33, 1
      %p313 = por %p311, %p312
      %p314 = scmp.ne.s32.totalorder %s303, %s304
      %p315 = scmp.eq.s32.totalorder %s33, 0
      %p316 = por %p314, %p315
      %p317 = scmp.ne.s32.totalorder %s303, %s304
      %p318 = scmp.eq.s32.totalorder %s34, 1
      %p319 = por %p317, %p318
      %p321 = scmp.ne.s32.totalorder %s304, %s320
      %p322 = scmp.eq.s32.totalorder %s34, 0
      %p323 = por %p321, %p322
      %s324 = ssub.s32 %s36, %s43
      %p325 = scmp.eq.s32.totalorder %s324, 0
      %s327 = sadd.s32 %s326, 1
      %s328 = scalar_select %p325, %s326, %s327
      %p331 = pneg %p325
      %p332 = scmp.eq.s32.totalorder %s28, 1
      %p333 = por %p331, %p332
      %p334 = scmp.ne.s32.totalorder %s326, %s329
      %p335 = scmp.eq.s32.totalorder %s28, 0
      %p336 = por %p334, %p335
      %p337 = scmp.ne.s32.totalorder %s326, %s329
      %p338 = scmp.eq.s32.totalorder %s33, 1
      %p339 = por %p337, %p338
      %p340 = scmp.ne.s32.totalorder %s329, %s330
      %p341 = scmp.eq.s32.totalorder %s33, 0
      %p342 = por %p340, %p341
      %p343 = scmp.ne.s32.totalorder %s329, %s330
      %p344 = scmp.eq.s32.totalorder %s34, 1
      %p345 = por %p343, %p344
      %p347 = scmp.ne.s32.totalorder %s330, %s346
      %p348 = scmp.eq.s32.totalorder %s34, 0
      %p349 = por %p347, %p348
      %s350 = ssub.s32 %s36, %s43
      %p351 = scmp.eq.s32.totalorder %s350, 0
      %s353 = sadd.s32 %s352, 1
      %s354 = scalar_select %p351, %s352, %s353
      %p357 = pneg %p351
      %p358 = scmp.eq.s32.totalorder %s28, 1
      %p359 = por %p357, %p358
      %p360 = scmp.ne.s32.totalorder %s352, %s355
      %p361 = scmp.eq.s32.totalorder %s28, 0
      %p362 = por %p360, %p361
      %p363 = scmp.ne.s32.totalorder %s352, %s355
      %p364 = scmp.eq.s32.totalorder %s33, 1
      %p365 = por %p363, %p364
      %p366 = scmp.ne.s32.totalorder %s355, %s356
      %p367 = scmp.eq.s32.totalorder %s33, 0
      %p368 = por %p366, %p367
      %p369 = scmp.ne.s32.totalorder %s355, %s356
      %p370 = scmp.eq.s32.totalorder %s34, 1
      %p371 = por %p369, %p370
      %p373 = scmp.ne.s32.totalorder %s356, %s372
      %p374 = scmp.eq.s32.totalorder %s34, 0
      %p375 = por %p373, %p374
      %s376 = ssub.s32 %s36, %s43
      %p377 = scmp.eq.s32.totalorder %s376, 0
      %s379 = sadd.s32 %s378, 1
      %s380 = scalar_select %p377, %s378, %s379
      %p383 = pneg %p377
      %p384 = scmp.eq.s32.totalorder %s28, 1
      %p385 = por %p383, %p384
      %p386 = scmp.ne.s32.totalorder %s378, %s381
      %p387 = scmp.eq.s32.totalorder %s28, 0
      %p388 = por %p386, %p387
      %p389 = scmp.ne.s32.totalorder %s378, %s381
      %p390 = scmp.eq.s32.totalorder %s33, 1
      %p391 = por %p389, %p390
      %p392 = scmp.ne.s32.totalorder %s381, %s382
      %p393 = scmp.eq.s32.totalorder %s33, 0
      %p394 = por %p392, %p393
      %p395 = scmp.ne.s32.totalorder %s381, %s382
      %p396 = scmp.eq.s32.totalorder %s34, 1
      %p397 = por %p395, %p396
      %p399 = scmp.ne.s32.totalorder %s382, %s398
      %p400 = scmp.eq.s32.totalorder %s34, 0
      %p401 = por %p399, %p400
      %s402 = ssub.s32 %s36, %s43
      %p403 = scmp.eq.s32.totalorder %s402, 0
      %s405 = sadd.s32 %s404, 1
      %s406 = scalar_select %p403, %s404, %s405
      %p409 = pneg %p403
      %p410 = scmp.eq.s32.totalorder %s28, 1
      %p411 = por %p409, %p410
      %p412 = scmp.ne.s32.totalorder %s404, %s407
      %p413 = scmp.eq.s32.totalorder %s28, 0
      %p414 = por %p412, %p413
      %p415 = scmp.ne.s32.totalorder %s404, %s407
      %p416 = scmp.eq.s32.totalorder %s33, 1
      %p417 = por %p415, %p416
      %p418 = scmp.ne.s32.totalorder %s407, %s408
      %p419 = scmp.eq.s32.totalorder %s33, 0
      %p420 = por %p418, %p419
      %p421 = scmp.ne.s32.totalorder %s407, %s408
      %p422 = scmp.eq.s32.totalorder %s34, 1
      %p423 = por %p421, %p422
      %p425 = scmp.ne.s32.totalorder %s408, %s424
      %p426 = scmp.eq.s32.totalorder %s34, 0
      %p427 = por %p425, %p426
      %s428 = ssub.s32 %s36, %s43
      %p429 = scmp.eq.s32.totalorder %s428, 0
      %s431 = sadd.s32 %s430, 1
      %s432 = scalar_select %p429, %s430, %s431
      %p435 = pneg %p429
      %p436 = scmp.eq.s32.totalorder %s28, 1
      %p437 = por %p435, %p436
      %p438 = scmp.ne.s32.totalorder %s430, %s433
      %p439 = scmp.eq.s32.totalorder %s28, 0
      %p440 = por %p438, %p439
      %p441 = scmp.ne.s32.totalorder %s430, %s433
      %p442 = scmp.eq.s32.totalorder %s33, 1
      %p443 = por %p441, %p442
      %p444 = scmp.ne.s32.totalorder %s433, %s434
      %p445 = scmp.eq.s32.totalorder %s33, 0
      %p446 = por %p444, %p445
      %p447 = scmp.ne.s32.totalorder %s433, %s434
      %p448 = scmp.eq.s32.totalorder %s34, 1
      %p449 = por %p447, %p448
      %p451 = scmp.ne.s32.totalorder %s434, %s450
      %p452 = scmp.eq.s32.totalorder %s34, 0
      %p453 = por %p451, %p452
      %s454 = ssub.s32 %s36, %s43
      %p455 = scmp.eq.s32.totalorder %s454, 0
      %s457 = sadd.s32 %s456, 1
      %s458 = scalar_select %p455, %s456, %s457
      %p461 = pneg %p455
      %p462 = scmp.eq.s32.totalorder %s28, 1
      %p463 = por %p461, %p462
      %p464 = scmp.ne.s32.totalorder %s456, %s459
      %p465 = scmp.eq.s32.totalorder %s28, 0
      %p466 = por %p464, %p465
      %p467 = scmp.ne.s32.totalorder %s456, %s459
      %p468 = scmp.eq.s32.totalorder %s33, 1
      %p469 = por %p467, %p468
      %p470 = scmp.ne.s32.totalorder %s459, %s460
      %p471 = scmp.eq.s32.totalorder %s33, 0
      %p472 = por %p470, %p471
      %p473 = scmp.ne.s32.totalorder %s459, %s460
      %p474 = scmp.eq.s32.totalorder %s34, 1
      %p475 = por %p473, %p474
      %p477 = scmp.ne.s32.totalorder %s460, %s476
      %p478 = scmp.eq.s32.totalorder %s34, 0
      %p479 = por %p477, %p478
      %s480 = ssub.s32 %s36, %s43
      %p481 = scmp.eq.s32.totalorder %s480, 0
      %s483 = sadd.s32 %s482, 1
      %s484 = scalar_select %p481, %s482, %s483
      %p487 = pneg %p481
      %p488 = scmp.eq.s32.totalorder %s28, 1
      %p489 = por %p487, %p488
      %p490 = scmp.ne.s32.totalorder %s482, %s485
      %p491 = scmp.eq.s32.totalorder %s28, 0
      %p492 = por %p490, %p491
      %p493 = scmp.ne.s32.totalorder %s482, %s485
      %p494 = scmp.eq.s32.totalorder %s33, 1
      %p495 = por %p493, %p494
      %p496 = scmp.ne.s32.totalorder %s485, %s486
      %p497 = scmp.eq.s32.totalorder %s33, 0
      %p498 = por %p496, %p497
      %p499 = scmp.ne.s32.totalorder %s485, %s486
      %p500 = scmp.eq.s32.totalorder %s34, 1
      %p501 = por %p499, %p500
      %p503 = scmp.ne.s32.totalorder %s486, %s502
      %p504 = scmp.eq.s32.totalorder %s34, 0
      %p505 = por %p503, %p504
      %s506 = ssub.s32 %s36, %s43
      %p507 = scmp.eq.s32.totalorder %s506, 0
      %s509 = sadd.s32 %s508, 1
      %s510 = scalar_select %p507, %s508, %s509
      %p513 = pneg %p507
      %p514 = scmp.eq.s32.totalorder %s28, 1
      %p515 = por %p513, %p514
      %p516 = scmp.ne.s32.totalorder %s508, %s511
      %p517 = scmp.eq.s32.totalorder %s28, 0
      %p518 = por %p516, %p517
      %p519 = scmp.ne.s32.totalorder %s508, %s511
      %p520 = scmp.eq.s32.totalorder %s33, 1
      %p521 = por %p519, %p520
      %p522 = scmp.ne.s32.totalorder %s511, %s512
      %p523 = scmp.eq.s32.totalorder %s33, 0
      %p524 = por %p522, %p523
      %p525 = scmp.ne.s32.totalorder %s511, %s512
      %p526 = scmp.eq.s32.totalorder %s34, 1
      %p527 = por %p525, %p526
      %p529 = scmp.ne.s32.totalorder %s512, %s528
      %p530 = scmp.eq.s32.totalorder %s34, 0
      %p531 = por %p529, %p530
      %s533 = sadd.s32 %s532, 1
      %p536 = scmp.eq.s32.totalorder %s28, 1
      %p537 = scmp.ne.s32.totalorder %s532, %s534
      %p538 = scmp.eq.s32.totalorder %s28, 0
      %p539 = por %p537, %p538
      %p540 = scmp.ne.s32.totalorder %s532, %s534
      %p541 = scmp.eq.s32.totalorder %s33, 1
      %p542 = por %p540, %p541
      %p543 = scmp.ne.s32.totalorder %s534, %s535
      %p544 = scmp.eq.s32.totalorder %s33, 0
      %p545 = por %p543, %p544
      %p546 = scmp.ne.s32.totalorder %s534, %s535
      %p547 = scmp.eq.s32.totalorder %s34, 1
      %p548 = por %p546, %p547
      %p550 = scmp.ne.s32.totalorder %s535, %s549
      %p551 = scmp.eq.s32.totalorder %s34, 0
      %p552 = por %p550, %p551
      %s554 = sadd.s32 %s553, 1
      %p557 = scmp.eq.s32.totalorder %s28, 1
      %p558 = scmp.ne.s32.totalorder %s553, %s555
      %p559 = scmp.eq.s32.totalorder %s28, 0
      %p560 = por %p558, %p559
      %p561 = scmp.ne.s32.totalorder %s553, %s555
      %p562 = scmp.eq.s32.totalorder %s33, 1
      %p563 = por %p561, %p562
      %p564 = scmp.ne.s32.totalorder %s555, %s556
      %p565 = scmp.eq.s32.totalorder %s33, 0
      %p566 = por %p564, %p565
      %p567 = scmp.ne.s32.totalorder %s555, %s556
      %p568 = scmp.eq.s32.totalorder %s34, 1
      %p569 = por %p567, %p568
      %p571 = scmp.ne.s32.totalorder %s556, %s570
      %p572 = scmp.eq.s32.totalorder %s34, 0
      %p573 = por %p571, %p572
      %s574 = ssub.s32 %s35, %s47
      %p575 = scmp.eq.s32.totalorder %s574, 0
      %s577 = sadd.s32 %s576, 1
      %s578 = scalar_select %p575, %s576, %s577
      %p581 = pneg %p575
      %p582 = scmp.eq.s32.totalorder %s28, 1
      %p583 = por %p581, %p582
      %p584 = scmp.ne.s32.totalorder %s576, %s579
      %p585 = scmp.eq.s32.totalorder %s28, 0
      %p586 = por %p584, %p585
      %p587 = scmp.ne.s32.totalorder %s576, %s579
      %p588 = scmp.eq.s32.totalorder %s33, 1
      %p589 = por %p587, %p588
      %p590 = scmp.ne.s32.totalorder %s579, %s580
      %p591 = scmp.eq.s32.totalorder %s33, 0
      %p592 = por %p590, %p591
      %p593 = scmp.ne.s32.totalorder %s579, %s580
      %p594 = scmp.eq.s32.totalorder %s34, 1
      %p595 = por %p593, %p594
      %p597 = scmp.ne.s32.totalorder %s580, %s596
      %p598 = scmp.eq.s32.totalorder %s34, 0
      %p599 = por %p597, %p598
      %p600 = scmp.le.s32.totalorder 1, %s28
      %p601 = scmp.lt.s32.totalorder %s28, 3
      %p602 = pnand %p600, %p601
      %p603 = pneg %p602
      // Predicated region
      $region9: #{scbert_word_forward.1} parent=5 // pred_check
        _
      $region10: #{scbert_word_forward.1} parent=5 // pred_check_branch
        %605 = sbr.rel (%p602) target = $region12
      $region11: #{scbert_word_forward.1} parent=5 // pred_region
        %s606 = ssub.s32 %s28, 1
        // Predicated region
        $region13: #{scbert_word_forward.1} parent=11 // pred_check
          %p607 = pneg %p66
        $region14: #{scbert_word_forward.1} parent=11 // pred_check_branch
          %609 = sbr.rel (%p607) target = $region16
        $region15: #{scbert_word_forward.1} parent=11 // pred_region
          %s610 = smul.u32 2, %s37
          %p611 = scmp.lt.s32.totalorder %s610, 1
          %s612 = scalar_select %p611, %s610, 1
          %s613 = smul.addr %s612, 8
          %s614 = scalar_lea.vmem %s0, %s613
          %s615 = smul.u32 2, %s37
        $region16: #{scbert_word_forward.1} parent=11 // pred_fallthru
          _
        // Predicated region
        $region17: #{scbert_word_forward.1} parent=11 // pred_check
          %p616 = pneg %p87
        $region18: #{scbert_word_forward.1} parent=11 // pred_check_branch
          %618 = sbr.rel (%p616) target = $region20
        $region19: #{scbert_word_forward.1} parent=11 // pred_region
          _
        $region20: #{scbert_word_forward.1} parent=11 // pred_fallthru
          _
        // Predicated region
        $region21: #{scbert_word_forward.1} parent=11 // pred_check
          %p619 = pneg %p108
        $region22: #{scbert_word_forward.1} parent=11 // pred_check_branch
          %621 = sbr.rel (%p619) target = $region24
        $region23: #{scbert_word_forward.1} parent=11 // pred_region
          _
        $region24: #{scbert_word_forward.1} parent=11 // pred_fallthru
          _
        // Predicated region
        $region25: #{scbert_word_forward.1} parent=11 // pred_check
          %p622 = pneg %p545
        $region26: #{scbert_word_forward.1} parent=11 // pred_check_branch
          %624 = sbr.rel (%p622) target = $region28
        $region27: #{scbert_word_forward.1} parent=11 // pred_region
          _
        $region28: #{scbert_word_forward.1} parent=11 // pred_fallthru
          _
        // Predicated region
        $region29: #{scbert_word_forward.1} parent=11 // pred_check
          %p625 = pneg %p566
        $region30: #{scbert_word_forward.1} parent=11 // pred_check_branch
          %627 = sbr.rel (%p625) target = $region32
        $region31: #{scbert_word_forward.1} parent=11 // pred_region
          _
        $region32: #{scbert_word_forward.1} parent=11 // pred_fallthru
          _
      $region12: #{scbert_word_forward.1} parent=5 // pred_fallthru
        _
      %p628 = scmp.lt.s32.totalorder %s28, 2
      // Predicated region
      $region33: #{scbert_word_forward.1} parent=5 // pred_check
        %p629 = pneg %p628
      $region34: #{scbert_word_forward.1} parent=5 // pred_check_branch
        %631 = sbr.rel (%p629) target = $region36
      $region35: #{scbert_word_forward.1} parent=5 // pred_region
        // Predicated region
        $region37: #{scbert_word_forward.1} parent=35 // pred_check
          %p632 = pneg %p128
        $region38: #{scbert_word_forward.1} parent=35 // pred_check_branch
          %634 = sbr.rel (%p632) target = $region40
        $region39: #{scbert_word_forward.1} parent=35 // pred_region
          %p635 = scmp.lt.s32.totalorder %s36, 1
          %s636 = scalar_select %p635, %s36, 1
          %s637 = smul.addr %s636, 16
          %s638 = smul.addr %s637, 8
          %s639 = scalar_lea.vmem %s3, %s638
        $region40: #{scbert_word_forward.1} parent=35 // pred_fallthru
          _
        // Predicated region
        $region41: #{scbert_word_forward.1} parent=35 // pred_check
          %p640 = pneg %p154
        $region42: #{scbert_word_forward.1} parent=35 // pred_check_branch
          %642 = sbr.rel (%p640) target = $region44
        $region43: #{scbert_word_forward.1} parent=35 // pred_region
          %p643 = scmp.lt.s32.totalorder %s36, 1
          %s644 = scalar_select %p643, %s36, 1
          %s645 = scalar_lea.vmem %s4, %s644
        $region44: #{scbert_word_forward.1} parent=35 // pred_fallthru
          _
        // Predicated region
        $region45: #{scbert_word_forward.1} parent=35 // pred_check
          %p646 = pneg %p180
        $region46: #{scbert_word_forward.1} parent=35 // pred_check_branch
          %648 = sbr.rel (%p646) target = $region48
        $region47: #{scbert_word_forward.1} parent=35 // pred_region
          %p649 = scmp.lt.s32.totalorder %s36, 1
          %s650 = scalar_select %p649, %s36, 1
          %s651 = smul.addr %s650, 16
          %s652 = smul.addr %s651, 8
          %s653 = scalar_lea.vmem %s5, %s652
        $region48: #{scbert_word_forward.1} parent=35 // pred_fallthru
          _
        // Predicated region
        $region49: #{scbert_word_forward.1} parent=35 // pred_check
          %p654 = pneg %p206
        $region50: #{scbert_word_forward.1} parent=35 // pred_check_branch
          %656 = sbr.rel (%p654) target = $region52
        $region51: #{scbert_word_forward.1} parent=35 // pred_region
          %p657 = scmp.lt.s32.totalorder %s36, 1
          %s658 = scalar_select %p657, %s36, 1
          %s659 = scalar_lea.vmem %s6, %s658
        $region52: #{scbert_word_forward.1} parent=35 // pred_fallthru
          _
        // Predicated region
        $region53: #{scbert_word_forward.1} parent=35 // pred_check
          %p660 = pneg %p232
        $region54: #{scbert_word_forward.1} parent=35 // pred_check_branch
          %662 = sbr.rel (%p660) target = $region56
        $region55: #{scbert_word_forward.1} parent=35 // pred_region
          %p663 = scmp.lt.s32.totalorder %s36, 1
          %s664 = scalar_select %p663, %s36, 1
          %s665 = smul.addr %s664, 16
          %s666 = smul.addr %s665, 8
          %s667 = scalar_lea.vmem %s7, %s666
        $region56: #{scbert_word_forward.1} parent=35 // pred_fallthru
          _
        // Predicated region
        $region57: #{scbert_word_forward.1} parent=35 // pred_check
          %p668 = pneg %p258
        $region58: #{scbert_word_forward.1} parent=35 // pred_check_branch
          %670 = sbr.rel (%p668) target = $region60
        $region59: #{scbert_word_forward.1} parent=35 // pred_region
          %p671 = scmp.lt.s32.totalorder %s36, 1
          %s672 = scalar_select %p671, %s36, 1
          %s673 = scalar_lea.vmem %s8, %s672
        $region60: #{scbert_word_forward.1} parent=35 // pred_fallthru
          _
        // Predicated region
        $region61: #{scbert_word_forward.1} parent=35 // pred_check
          %p674 = pneg %p284
        $region62: #{scbert_word_forward.1} parent=35 // pred_check_branch
          %676 = sbr.rel (%p674) target = $region64
        $region63: #{scbert_word_forward.1} parent=35 // pred_region
          %p677 = scmp.lt.s32.totalorder %s36, 1
          %s678 = scalar_select %p677, %s36, 1
          %s679 = smul.addr %s678, 16
          %s680 = smul.addr %s679, 8
          %s681 = scalar_lea.vmem %s9, %s680
        $region64: #{scbert_word_forward.1} parent=35 // pred_fallthru
          _
        // Predicated region
        $region65: #{scbert_word_forward.1} parent=35 // pred_check
          %p682 = pneg %p310
        $region66: #{scbert_word_forward.1} parent=35 // pred_check_branch
          %684 = sbr.rel (%p682) target = $region68
        $region67: #{scbert_word_forward.1} parent=35 // pred_region
          %p685 = scmp.lt.s32.totalorder %s36, 1
          %s686 = scalar_select %p685, %s36, 1
          %s687 = scalar_lea.vmem %s10, %s686
        $region68: #{scbert_word_forward.1} parent=35 // pred_fallthru
          _
        // Predicated region
        $region69: #{scbert_word_forward.1} parent=35 // pred_check
          %p688 = pneg %p336
        $region70: #{scbert_word_forward.1} parent=35 // pred_check_branch
          %690 = sbr.rel (%p688) target = $region72
        $region71: #{scbert_word_forward.1} parent=35 // pred_region
          %p691 = scmp.lt.s32.totalorder %s36, 1
          %s692 = scalar_select %p691, %s36, 1
          %s693 = scalar_lea.vmem %s11, %s692
        $region72: #{scbert_word_forward.1} parent=35 // pred_fallthru
          _
        // Predicated region
        $region73: #{scbert_word_forward.1} parent=35 // pred_check
          %p694 = pneg %p362
        $region74: #{scbert_word_forward.1} parent=35 // pred_check_branch
          %696 = sbr.rel (%p694) target = $region76
        $region75: #{scbert_word_forward.1} parent=35 // pred_region
          %p697 = scmp.lt.s32.totalorder %s36, 1
          %s698 = scalar_select %p697, %s36, 1
          %s699 = scalar_lea.vmem %s12, %s698
        $region76: #{scbert_word_forward.1} parent=35 // pred_fallthru
          _
        // Predicated region
        $region77: #{scbert_word_forward.1} parent=35 // pred_check
          %p700 = pneg %p388
        $region78: #{scbert_word_forward.1} parent=35 // pred_check_branch
          %702 = sbr.rel (%p700) target = $region80
        $region79: #{scbert_word_forward.1} parent=35 // pred_region
          %p703 = scmp.lt.s32.totalorder %s36, 1
          %s704 = scalar_select %p703, %s36, 1
          %s705 = smul.addr %s704, 16
          %s706 = smul.addr %s705, 8
          %s707 = scalar_lea.vmem %s13, %s706
        $region80: #{scbert_word_forward.1} parent=35 // pred_fallthru
          _
        // Predicated region
        $region81: #{scbert_word_forward.1} parent=35 // pred_check
          %p708 = pneg %p414
        $region82: #{scbert_word_forward.1} parent=35 // pred_check_branch
          %710 = sbr.rel (%p708) target = $region84
        $region83: #{scbert_word_forward.1} parent=35 // pred_region
          %p711 = scmp.lt.s32.totalorder %s36, 1
          %s712 = scalar_select %p711, %s36, 1
          %s713 = scalar_lea.vmem %s14, %s712
        $region84: #{scbert_word_forward.1} parent=35 // pred_fallthru
          _
        // Predicated region
        $region85: #{scbert_word_forward.1} parent=35 // pred_check
          %p714 = pneg %p440
        $region86: #{scbert_word_forward.1} parent=35 // pred_check_branch
          %716 = sbr.rel (%p714) target = $region88
        $region87: #{scbert_word_forward.1} parent=35 // pred_region
          %p717 = scmp.lt.s32.totalorder %s36, 1
          %s718 = scalar_select %p717, %s36, 1
          %s719 = smul.addr %s718, 16
          %s720 = smul.addr %s719, 8
          %s721 = scalar_lea.vmem %s15, %s720
        $region88: #{scbert_word_forward.1} parent=35 // pred_fallthru
          _
        // Predicated region
        $region89: #{scbert_word_forward.1} parent=35 // pred_check
          %p722 = pneg %p466
        $region90: #{scbert_word_forward.1} parent=35 // pred_check_branch
          %724 = sbr.rel (%p722) target = $region92
        $region91: #{scbert_word_forward.1} parent=35 // pred_region
          %p725 = scmp.lt.s32.totalorder %s36, 1
          %s726 = scalar_select %p725, %s36, 1
          %s727 = scalar_lea.vmem %s16, %s726
        $region92: #{scbert_word_forward.1} parent=35 // pred_fallthru
          _
        // Predicated region
        $region93: #{scbert_word_forward.1} parent=35 // pred_check
          %p728 = pneg %p492
        $region94: #{scbert_word_forward.1} parent=35 // pred_check_branch
          %730 = sbr.rel (%p728) target = $region96
        $region95: #{scbert_word_forward.1} parent=35 // pred_region
          %p731 = scmp.lt.s32.totalorder %s36, 1
          %s732 = scalar_select %p731, %s36, 1
          %s733 = scalar_lea.vmem %s17, %s732
        $region96: #{scbert_word_forward.1} parent=35 // pred_fallthru
          _
        // Predicated region
        $region97: #{scbert_word_forward.1} parent=35 // pred_check
          %p734 = pneg %p518
        $region98: #{scbert_word_forward.1} parent=35 // pred_check_branch
          %736 = sbr.rel (%p734) target = $region100
        $region99: #{scbert_word_forward.1} parent=35 // pred_region
          %p737 = scmp.lt.s32.totalorder %s36, 1
          %s738 = scalar_select %p737, %s36, 1
          %s739 = scalar_lea.vmem %s18, %s738
        $region100: #{scbert_word_forward.1} parent=35 // pred_fallthru
          _
      $region36: #{scbert_word_forward.1} parent=5 // pred_fallthru
        _
      %p740 = scmp.le.s32.totalorder 1, %s28
      %p741 = scmp.lt.s32.totalorder %s28, 3
      %p742 = pnand %p740, %p741
      %p743 = pneg %p742
      // Predicated region
      $region101: #{scbert_word_forward.1} parent=5 // pred_check
        _
      $region102: #{scbert_word_forward.1} parent=5 // pred_check_branch
        %745 = sbr.rel (%p742) target = $region104
      $region103: #{scbert_word_forward.1} parent=5 // pred_region
        %s746 = ssub.s32 %s28, 1
        %s747 = smul.u32 2, %s37
        %p748 = scmp.lt.s32.totalorder %s747, 1
        %s749 = scalar_select %p748, %s747, 1
        %s750 = smul.addr %s749, 8
        %s751 = scalar_lea.vmem %s0, %s750
        %p752 = pneg %p66
        %p753 = pneg %p63
        %p754 = pneg %p87
        %p755 = pneg %p84
        %p756 = pneg %p108
        %p757 = pneg %p105
        %p758 = scmp.lt.s32.totalorder %s38, 1
        %s759 = scalar_select %p758, %s38, 1
        %s760 = smul.addr %s759, 16
        %s761 = smul.addr %s760, 8
        %s762 = scalar_lea.vmem %s3, %s761
        %p763 = pneg %p134
        %p764 = pneg %p131
        %p765 = scmp.lt.s32.totalorder %s38, 1
        %s766 = scalar_select %p765, %s38, 1
        %s767 = scalar_lea.vmem %s4, %s766
        %p768 = pneg %p160
        %p769 = pneg %p157
        %p770 = scmp.lt.s32.totalorder %s38, 1
        %s771 = scalar_select %p770, %s38, 1
        %s772 = smul.addr %s771, 16
        %s773 = smul.addr %s772, 8
        %s774 = scalar_lea.vmem %s5, %s773
        %p775 = pneg %p186
        %p776 = pneg %p183
        %p777 = scmp.lt.s32.totalorder %s38, 1
        %s778 = scalar_select %p777, %s38, 1
        %s779 = scalar_lea.vmem %s6, %s778
        %p780 = pneg %p212
        %p781 = pneg %p209
        %p782 = scmp.lt.s32.totalorder %s38, 1
        %s783 = scalar_select %p782, %s38, 1
        %s784 = smul.addr %s783, 16
        %s785 = smul.addr %s784, 8
        %s786 = scalar_lea.vmem %s7, %s785
        %p787 = pneg %p238
        %p788 = pneg %p235
        %p789 = scmp.lt.s32.totalorder %s38, 1
        %s790 = scalar_select %p789, %s38, 1
        %s791 = scalar_lea.vmem %s8, %s790
        %p792 = pneg %p264
        %p793 = pneg %p261
        %p794 = scmp.lt.s32.totalorder %s38, 1
        %s795 = scalar_select %p794, %s38, 1
        %s796 = smul.addr %s795, 16
        %s797 = smul.addr %s796, 8
        %s798 = scalar_lea.vmem %s9, %s797
        %p799 = pneg %p290
        %p800 = pneg %p287
        %p801 = scmp.lt.s32.totalorder %s38, 1
        %s802 = scalar_select %p801, %s38, 1
        %s803 = scalar_lea.vmem %s10, %s802
        %p804 = pneg %p316
        %p805 = pneg %p313
        %p806 = scmp.lt.s32.totalorder %s38, 1
        %s807 = scalar_select %p806, %s38, 1
        %s808 = scalar_lea.vmem %s11, %s807
        %p809 = pneg %p342
        %p810 = pneg %p339
        %p811 = scmp.lt.s32.totalorder %s38, 1
        %s812 = scalar_select %p811, %s38, 1
        %s813 = scalar_lea.vmem %s12, %s812
        %p814 = pneg %p368
        %p815 = pneg %p365
        %p816 = scmp.lt.s32.totalorder %s38, 1
        %s817 = scalar_select %p816, %s38, 1
        %s818 = smul.addr %s817, 16
        %s819 = smul.addr %s818, 8
        %s820 = scalar_lea.vmem %s13, %s819
        %p821 = pneg %p394
        %p822 = pneg %p391
        %p823 = scmp.lt.s32.totalorder %s38, 1
        %s824 = scalar_select %p823, %s38, 1
        %s825 = scalar_lea.vmem %s14, %s824
        %p826 = pneg %p420
        %p827 = pneg %p417
        %p828 = scmp.lt.s32.totalorder %s38, 1
        %s829 = scalar_select %p828, %s38, 1
        %s830 = smul.addr %s829, 16
        %s831 = smul.addr %s830, 8
        %s832 = scalar_lea.vmem %s15, %s831
        %p833 = pneg %p446
        %p834 = pneg %p443
        %p835 = scmp.lt.s32.totalorder %s38, 1
        %s836 = scalar_select %p835, %s38, 1
        %s837 = scalar_lea.vmem %s16, %s836
        %p838 = pneg %p472
        %p839 = pneg %p469
        %p840 = scmp.lt.s32.totalorder %s38, 1
        %s841 = scalar_select %p840, %s38, 1
        %s842 = scalar_lea.vmem %s17, %s841
        %p843 = pneg %p498
        %p844 = pneg %p495
        %p845 = scmp.lt.s32.totalorder %s38, 1
        %s846 = scalar_select %p845, %s38, 1
        %s847 = scalar_lea.vmem %s18, %s846
        %p848 = pneg %p524
        %p849 = pneg %p521
        %p850 = pneg %p545
        %p851 = pneg %p542
        %p852 = pneg %p566
        %p853 = pneg %p563
        %p854 = pneg %p592
        %p855 = pneg %p589
        %s856 = smul.u32 2, %s37
        %p857 = scmp.lt.s32.totalorder %s856, 1
        %s858 = scalar_select %p857, %s856, 1
        %s859 = smul.addr %s858, 8
        %s860 = scalar_lea.vmem %s0, %s859
        %s861 = smul.u32 2, %s37
        %p862 = scmp.lt.s32.totalorder %s38, 1
        %s863 = scalar_select %p862, %s38, 1
        %s864 = smul.addr %s863, 16
        %s865 = smul.addr %s864, 8
        %s866 = scalar_lea.vmem %s3, %s865
        %p867 = scmp.lt.s32.totalorder %s38, 1
        %s868 = scalar_select %p867, %s38, 1
        %s869 = scalar_lea.vmem %s4, %s868
        %p870 = scmp.lt.s32.totalorder %s38, 1
        %s871 = scalar_select %p870, %s38, 1
        %s872 = smul.addr %s871, 16
        %s873 = smul.addr %s872, 8
        %s874 = scalar_lea.vmem %s5, %s873
        %p875 = scmp.lt.s32.totalorder %s38, 1
        %s876 = scalar_select %p875, %s38, 1
        %s877 = scalar_lea.vmem %s6, %s876
        %p878 = scmp.lt.s32.totalorder %s38, 1
        %s879 = scalar_select %p878, %s38, 1
        %s880 = smul.addr %s879, 16
        %s881 = smul.addr %s880, 8
        %s882 = scalar_lea.vmem %s7, %s881
        %p883 = scmp.lt.s32.totalorder %s38, 1
        %s884 = scalar_select %p883, %s38, 1
        %s885 = scalar_lea.vmem %s8, %s884
        %p886 = scmp.lt.s32.totalorder %s38, 1
        %s887 = scalar_select %p886, %s38, 1
        %s888 = smul.addr %s887, 16
        %s889 = smul.addr %s888, 8
        %s890 = scalar_lea.vmem %s9, %s889
        %p891 = scmp.lt.s32.totalorder %s38, 1
        %s892 = scalar_select %p891, %s38, 1
        %s893 = scalar_lea.vmem %s10, %s892
        %p894 = scmp.lt.s32.totalorder %s38, 1
        %s895 = scalar_select %p894, %s38, 1
        %s896 = scalar_lea.vmem %s11, %s895
        %p897 = scmp.lt.s32.totalorder %s38, 1
        %s898 = scalar_select %p897, %s38, 1
        %s899 = scalar_lea.vmem %s12, %s898
        %p900 = scmp.lt.s32.totalorder %s38, 1
        %s901 = scalar_select %p900, %s38, 1
        %s902 = smul.addr %s901, 16
        %s903 = smul.addr %s902, 8
        %s904 = scalar_lea.vmem %s13, %s903
        %p905 = scmp.lt.s32.totalorder %s38, 1
        %s906 = scalar_select %p905, %s38, 1
        %s907 = scalar_lea.vmem %s14, %s906
        %p908 = scmp.lt.s32.totalorder %s38, 1
        %s909 = scalar_select %p908, %s38, 1
        %s910 = smul.addr %s909, 16
        %s911 = smul.addr %s910, 8
        %s912 = scalar_lea.vmem %s15, %s911
        %p913 = scmp.lt.s32.totalorder %s38, 1
        %s914 = scalar_select %p913, %s38, 1
        %s915 = scalar_lea.vmem %s16, %s914
        %p916 = scmp.lt.s32.totalorder %s38, 1
        %s917 = scalar_select %p916, %s38, 1
        %s918 = scalar_lea.vmem %s17, %s917
        %p919 = scmp.lt.s32.totalorder %s38, 1
        %s920 = scalar_select %p919, %s38, 1
        %s921 = scalar_lea.vmem %s18, %s920
        %s922 = smul.u32 2, %s37
        %p923 = scmp.eq.s32.totalorder %s38, 0
        // Predicated region
        $region105: #{scbert_word_forward.1} parent=103 // pred_check
          %p924 = pneg %p923
        $region106: #{scbert_word_forward.1} parent=103 // pred_check_branch
          %926 = sbr.rel (%p924) target = $region108
        $region107: #{scbert_word_forward.1} parent=103 // pred_region
          %v927 = vld [vmem:[%s860] sm:$0xff]
          %v928 = vld [vmem:[%s860 + $0x8] sm:$0xff]
          %v929 = vld [vmem:[%s1] sm:$0xff]
          %v930 = vld [vmem:[%s1 + $0x8] sm:$0xff]
          %v931 = vld [vmem:[%s1 + $0x10] sm:$0xff]
          %v932 = vld [vmem:[%s1 + $0x18] sm:$0xff]
          %v933 = vld [vmem:[%s1 + $0x20] sm:$0xff]
          %v934 = vld [vmem:[%s1 + $0x28] sm:$0xff]
          %v935 = vld [vmem:[%s1 + $0x30] sm:$0xff]
          %v936 = vld [vmem:[%s1 + $0x38] sm:$0xff]
          %v937 = vld [vmem:[%s1 + $0x40] sm:$0xff]
          %v938 = vld [vmem:[%s1 + $0x48] sm:$0xff]
          %v939 = vld [vmem:[%s1 + $0x50] sm:$0xff]
          %v940 = vld [vmem:[%s1 + $0x58] sm:$0xff]
          %v941 = vld [vmem:[%s1 + $0x60] sm:$0xff]
          %v942 = vld [vmem:[%s1 + $0x68] sm:$0xff]
          %v943 = vld [vmem:[%s1 + $0x70] sm:$0xff]
          %v944 = vld [vmem:[%s1 + $0x78] sm:$0xff]
          %v945 = vld [vmem:[%s2] sm:$0x1]
          %v947 = vlaneseq
          %v948 = vshrl.u32 %v947, 7
          %v949 = vsub.s32 0, %v948
          %v950 = vrot.slane %v945, %v949
          %952 = vmatprep.subr.mxu0 0.0
          %953 = vmatpush1.msra.mxu0 %v929
          %954 = vmatprep.subr.mxu0 0.0
          %955 = vmatpush1.msra.mxu0 %v930
          %956 = vmatprep.subr.mxu0 0.0
          %957 = vmatpush1.msra.mxu0 %v931
          %958 = vmatprep.subr.mxu0 0.0
          %959 = vmatpush1.msra.mxu0 %v932
          %960 = vmatprep.subr.mxu0 0.0
          %961 = vmatpush1.msra.mxu0 %v933
          %962 = vmatprep.subr.mxu0 0.0
          %963 = vmatpush1.msra.mxu0 %v934
          %964 = vmatprep.subr.mxu0 0.0
          %965 = vmatpush1.msra.mxu0 %v935
          %966 = vmatprep.subr.mxu0 0.0
          %967 = vmatpush1.msra.mxu0 %v936
          %968 = vmatprep.subr.mxu0 0.0
          %969 = vmatpush1.msra.mxu0 %v937
          %970 = vmatprep.subr.mxu0 0.0
          %971 = vmatpush1.msra.mxu0 %v938
          %972 = vmatprep.subr.mxu0 0.0
          %973 = vmatpush1.msra.mxu0 %v939
          %974 = vmatprep.subr.mxu0 0.0
          %975 = vmatpush1.msra.mxu0 %v940
          %976 = vmatprep.subr.mxu0 0.0
          %977 = vmatpush1.msra.mxu0 %v941
          %978 = vmatprep.subr.mxu0 0.0
          %979 = vmatpush1.msra.mxu0 %v942
          %980 = vmatprep.subr.mxu0 0.0
          %981 = vmatpush1.msra.mxu0 %v943
          %982 = vmatprep.subr.mxu0 0.0
          %983 = vmatpush1.msra.mxu0 %v944
          %984 = vmatprep.subr.mxu0 0.0
          %985 = vmatpush1.msra.mxu0 0.0
          %986 = vmatprep.subr.mxu0 0.0
          %987 = vmatpush1.msra.mxu0 0.0
          %988 = vmatprep.subr.mxu0 0.0
          %989 = vmatpush1.msra.mxu0 0.0
          %990 = vmatprep.subr.mxu0 0.0
          %991 = vmatpush1.msra.mxu0 0.0
          %992 = vmatprep.subr.mxu0 0.0
          %993 = vmatpush1.msra.mxu0 0.0
          %994 = vmatprep.subr.mxu0 0.0
          %995 = vmatpush1.msra.mxu0 0.0
          %996 = vmatprep.subr.mxu0 0.0
          %997 = vmatpush1.msra.mxu0 0.0
          %998 = vmatprep.subr.mxu0 0.0
          %999 = vmatpush1.msra.mxu0 0.0
          %1000 = vmatprep.subr.mxu0 0.0
          %1001 = vmatpush1.msra.mxu0 0.0
          %1002 = vmatprep.subr.mxu0 0.0
          %1003 = vmatpush1.msra.mxu0 0.0
          %1004 = vmatprep.subr.mxu0 0.0
          %1005 = vmatpush1.msra.mxu0 0.0
          %1006 = vmatprep.subr.mxu0 0.0
          %1007 = vmatpush1.msra.mxu0 0.0
          %1008 = vmatprep.subr.mxu0 0.0
          %1009 = vmatpush1.msra.mxu0 0.0
          %1010 = vmatprep.subr.mxu0 0.0
          %1011 = vmatpush1.msra.mxu0 0.0
          %1012 = vmatprep.subr.mxu0 0.0
          %1013 = vmatpush1.msra.mxu0 0.0
          %1014 = vmatprep.subr.mxu0 0.0
          %1015 = vmatpush1.msra.mxu0 0.0
          %1016 = vmatprep.mubr.f32.mxu0 0.0
          %1017 = vmatmul.mubr.f32.gmra.mrb[0].mxu0 %v927
          %v1018 = vpop.f32.mrb[0].mxu0
          %v1019 = vadd.f32 %v950, %v1018
          %v1020 = vpop.f32.mrb[0].mxu0
          %1021 = vmatprep.mubr.f32.mxu0 0.0
          %1022 = vmatmul.mubr.f32.gmra.mrb[0].mxu0 %v928
          %v1023 = vpop.f32.mrb[0].mxu0
          %v1024 = vadd.f32 %v950, %v1023
          %v1025 = vpop.f32.mrb[0].mxu0
          %1026 = vdwg.mxu0
          %1027 = vst [vmem:[#allocation2] sm:$0xff] %v1019
          %1028 = vst [vmem:[#allocation2 + $0x8] sm:$0xff] %v1024
        $region108: #{scbert_word_forward.1} parent=103 // pred_fallthru
          _
        %v1029 = vld [vmem:[#allocation2] sm:$0xff]
        %v1030 = vld [vmem:[#allocation2 + $0x8] sm:$0xff]
        %v1031 = vlaneseq
        %v1032 = vand.u32 %v1031, 127
        %vm1033 = vcmp.lt.s32.totalorder %v1032, 32
        %v1034 = vsel %vm1033, 1, 0
        %v1035 = vcvt.s32.f32 %v1034
        %v1036 = vld [vmem:[%s866] sm:$0xff]
        %v1037 = vld [vmem:[%s866 + $0x8] sm:$0xff]
        %v1038 = vld [vmem:[%s866 + $0x10] sm:$0xff]
        %v1039 = vld [vmem:[%s866 + $0x18] sm:$0xff]
        %v1040 = vld [vmem:[%s866 + $0x20] sm:$0xff]
        %v1041 = vld [vmem:[%s866 + $0x28] sm:$0xff]
        %v1042 = vld [vmem:[%s866 + $0x30] sm:$0xff]
        %v1043 = vld [vmem:[%s866 + $0x38] sm:$0xff]
        %v1044 = vld [vmem:[%s866 + $0x40] sm:$0xff]
        %v1045 = vld [vmem:[%s866 + $0x48] sm:$0xff]
        %v1046 = vld [vmem:[%s866 + $0x50] sm:$0xff]
        %v1047 = vld [vmem:[%s866 + $0x58] sm:$0xff]
        %v1048 = vld [vmem:[%s866 + $0x60] sm:$0xff]
        %v1049 = vld [vmem:[%s866 + $0x68] sm:$0xff]
        %v1050 = vld [vmem:[%s866 + $0x70] sm:$0xff]
        %v1051 = vld [vmem:[%s866 + $0x78] sm:$0xff]
        %v1052 = vld [vmem:[%s869] sm:$0x1]
        %v1054 = vlaneseq
        %v1055 = vshrl.u32 %v1054, 7
        %v1056 = vsub.s32 0, %v1055
        %v1057 = vrot.slane %v1052, %v1056
        %1059 = vmatprep.subr.mxu0 0.0
        %1060 = vmatpush1.msra.mxu0 %v1036
        %1061 = vmatprep.subr.mxu0 0.0
        %1062 = vmatpush1.msra.mxu0 %v1037
        %1063 = vmatprep.subr.mxu0 0.0
        %1064 = vmatpush1.msra.mxu0 %v1038
        %1065 = vmatprep.subr.mxu0 0.0
        %1066 = vmatpush1.msra.mxu0 %v1039
        %1067 = vmatprep.subr.mxu0 0.0
        %1068 = vmatpush1.msra.mxu0 %v1040
        %1069 = vmatprep.subr.mxu0 0.0
        %1070 = vmatpush1.msra.mxu0 %v1041
        %1071 = vmatprep.subr.mxu0 0.0
        %1072 = vmatpush1.msra.mxu0 %v1042
        %1073 = vmatprep.subr.mxu0 0.0
        %1074 = vmatpush1.msra.mxu0 %v1043
        %1075 = vmatprep.subr.mxu0 0.0
        %1076 = vmatpush1.msra.mxu0 %v1044
        %1077 = vmatprep.subr.mxu0 0.0
        %1078 = vmatpush1.msra.mxu0 %v1045
        %1079 = vmatprep.subr.mxu0 0.0
        %1080 = vmatpush1.msra.mxu0 %v1046
        %1081 = vmatprep.subr.mxu0 0.0
        %1082 = vmatpush1.msra.mxu0 %v1047
        %1083 = vmatprep.subr.mxu0 0.0
        %1084 = vmatpush1.msra.mxu0 %v1048
        %1085 = vmatprep.subr.mxu0 0.0
        %1086 = vmatpush1.msra.mxu0 %v1049
        %1087 = vmatprep.subr.mxu0 0.0
        %1088 = vmatpush1.msra.mxu0 %v1050
        %1089 = vmatprep.subr.mxu0 0.0
        %1090 = vmatpush1.msra.mxu0 %v1051
        %1091 = vmatprep.subr.mxu0 0.0
        %1092 = vmatpush1.msra.mxu0 0.0
        %1093 = vmatprep.subr.mxu0 0.0
        %1094 = vmatpush1.msra.mxu0 0.0
        %1095 = vmatprep.subr.mxu0 0.0
        %1096 = vmatpush1.msra.mxu0 0.0
        %1097 = vmatprep.subr.mxu0 0.0
        %1098 = vmatpush1.msra.mxu0 0.0
        %1099 = vmatprep.subr.mxu0 0.0
        %1100 = vmatpush1.msra.mxu0 0.0
        %1101 = vmatprep.subr.mxu0 0.0
        %1102 = vmatpush1.msra.mxu0 0.0
        %1103 = vmatprep.subr.mxu0 0.0
        %1104 = vmatpush1.msra.mxu0 0.0
        %1105 = vmatprep.subr.mxu0 0.0
        %1106 = vmatpush1.msra.mxu0 0.0
        %1107 = vmatprep.subr.mxu0 0.0
        %1108 = vmatpush1.msra.mxu0 0.0
        %1109 = vmatprep.subr.mxu0 0.0
        %1110 = vmatpush1.msra.mxu0 0.0
        %1111 = vmatprep.subr.mxu0 0.0
        %1112 = vmatpush1.msra.mxu0 0.0
        %1113 = vmatprep.subr.mxu0 0.0
        %1114 = vmatpush1.msra.mxu0 0.0
        %1115 = vmatprep.subr.mxu0 0.0
        %1116 = vmatpush1.msra.mxu0 0.0
        %1117 = vmatprep.subr.mxu0 0.0
        %1118 = vmatpush1.msra.mxu0 0.0
        %1119 = vmatprep.subr.mxu0 0.0
        %1120 = vmatpush1.msra.mxu0 0.0
        %1121 = vmatprep.subr.mxu0 0.0
        %1122 = vmatpush1.msra.mxu0 0.0
        %1123 = vmatprep.mubr.f32.mxu0 0.0
        %1124 = vmatmul.mubr.f32.gmra.mrb[0].mxu0 %v1029
        %v1125 = vpop.f32.mrb[0].mxu0
        %v1126 = vadd.f32 %v1057, %v1125
        %v1127 = vpop.f32.mrb[0].mxu0
        %1128 = vmatprep.mubr.f32.mxu0 0.0
        %1129 = vmatmul.mubr.f32.gmra.mrb[0].mxu0 %v1030
        %v1130 = vpop.f32.mrb[0].mxu0
        %v1131 = vadd.f32 %v1057, %v1130
        %v1132 = vpop.f32.mrb[0].mxu0
        %1133 = vdwg.mxu0
        %v1134 = vmul.f32 %v1126, 0.35355338
        %v1135 = vmul.f32 %v1131, 0.35355338
        %v1136 = vld [vmem:[%s874] sm:$0xff]
        %v1137 = vld [vmem:[%s874 + $0x8] sm:$0xff]
        %v1138 = vld [vmem:[%s874 + $0x10] sm:$0xff]
        %v1139 = vld [vmem:[%s874 + $0x18] sm:$0xff]
        %v1140 = vld [vmem:[%s874 + $0x20] sm:$0xff]
        %v1141 = vld [vmem:[%s874 + $0x28] sm:$0xff]
        %v1142 = vld [vmem:[%s874 + $0x30] sm:$0xff]
        %v1143 = vld [vmem:[%s874 + $0x38] sm:$0xff]
        %v1144 = vld [vmem:[%s874 + $0x40] sm:$0xff]
        %v1145 = vld [vmem:[%s874 + $0x48] sm:$0xff]
        %v1146 = vld [vmem:[%s874 + $0x50] sm:$0xff]
        %v1147 = vld [vmem:[%s874 + $0x58] sm:$0xff]
        %v1148 = vld [vmem:[%s874 + $0x60] sm:$0xff]
        %v1149 = vld [vmem:[%s874 + $0x68] sm:$0xff]
        %v1150 = vld [vmem:[%s874 + $0x70] sm:$0xff]
        %v1151 = vld [vmem:[%s874 + $0x78] sm:$0xff]
        %v1152 = vld [vmem:[%s877] sm:$0x1]
        %v1154 = vlaneseq
        %v1155 = vshrl.u32 %v1154, 7
        %v1156 = vsub.s32 0, %v1155
        %v1157 = vrot.slane %v1152, %v1156
        %1159 = vmatprep.subr.mxu0 0.0
        %1160 = vmatpush1.msra.mxu0 %v1136
        %1161 = vmatprep.subr.mxu0 0.0
        %1162 = vmatpush1.msra.mxu0 %v1137
        %1163 = vmatprep.subr.mxu0 0.0
        %1164 = vmatpush1.msra.mxu0 %v1138
        %1165 = vmatprep.subr.mxu0 0.0
        %1166 = vmatpush1.msra.mxu0 %v1139
        %1167 = vmatprep.subr.mxu0 0.0
        %1168 = vmatpush1.msra.mxu0 %v1140
        %1169 = vmatprep.subr.mxu0 0.0
        %1170 = vmatpush1.msra.mxu0 %v1141
        %1171 = vmatprep.subr.mxu0 0.0
        %1172 = vmatpush1.msra.mxu0 %v1142
        %1173 = vmatprep.subr.mxu0 0.0
        %1174 = vmatpush1.msra.mxu0 %v1143
        %1175 = vmatprep.subr.mxu0 0.0
        %1176 = vmatpush1.msra.mxu0 %v1144
        %1177 = vmatprep.subr.mxu0 0.0
        %1178 = vmatpush1.msra.mxu0 %v1145
        %1179 = vmatprep.subr.mxu0 0.0
        %1180 = vmatpush1.msra.mxu0 %v1146
        %1181 = vmatprep.subr.mxu0 0.0
        %1182 = vmatpush1.msra.mxu0 %v1147
        %1183 = vmatprep.subr.mxu0 0.0
        %1184 = vmatpush1.msra.mxu0 %v1148
        %1185 = vmatprep.subr.mxu0 0.0
        %1186 = vmatpush1.msra.mxu0 %v1149
        %1187 = vmatprep.subr.mxu0 0.0
        %1188 = vmatpush1.msra.mxu0 %v1150
        %1189 = vmatprep.subr.mxu0 0.0
        %1190 = vmatpush1.msra.mxu0 %v1151
        %1191 = vmatprep.subr.mxu0 0.0
        %1192 = vmatpush1.msra.mxu0 0.0
        %1193 = vmatprep.subr.mxu0 0.0
        %1194 = vmatpush1.msra.mxu0 0.0
        %1195 = vmatprep.subr.mxu0 0.0
        %1196 = vmatpush1.msra.mxu0 0.0
        %1197 = vmatprep.subr.mxu0 0.0
        %1198 = vmatpush1.msra.mxu0 0.0
        %1199 = vmatprep.subr.mxu0 0.0
        %1200 = vmatpush1.msra.mxu0 0.0
        %1201 = vmatprep.subr.mxu0 0.0
        %1202 = vmatpush1.msra.mxu0 0.0
        %1203 = vmatprep.subr.mxu0 0.0
        %1204 = vmatpush1.msra.mxu0 0.0
        %1205 = vmatprep.subr.mxu0 0.0
        %1206 = vmatpush1.msra.mxu0 0.0
        %1207 = vmatprep.subr.mxu0 0.0
        %1208 = vmatpush1.msra.mxu0 0.0
        %1209 = vmatprep.subr.mxu0 0.0
        %1210 = vmatpush1.msra.mxu0 0.0
        %1211 = vmatprep.subr.mxu0 0.0
        %1212 = vmatpush1.msra.mxu0 0.0
        %1213 = vmatprep.subr.mxu0 0.0
        %1214 = vmatpush1.msra.mxu0 0.0
        %1215 = vmatprep.subr.mxu0 0.0
        %1216 = vmatpush1.msra.mxu0 0.0
        %1217 = vmatprep.subr.mxu0 0.0
        %1218 = vmatpush1.msra.mxu0 0.0
        %1219 = vmatprep.subr.mxu0 0.0
        %1220 = vmatpush1.msra.mxu0 0.0
        %1221 = vmatprep.subr.mxu0 0.0
        %1222 = vmatpush1.msra.mxu0 0.0
        %1223 = vmatprep.mubr.f32.mxu0 0.0
        %1224 = vmatmul.mubr.f32.gmra.mrb[0].mxu0 %v1029
        %v1225 = vpop.f32.mrb[0].mxu0
        %v1226 = vadd.f32 %v1157, %v1225
        %v1227 = vpop.f32.mrb[0].mxu0
        %1228 = vmatprep.mubr.f32.mxu0 0.0
        %1229 = vmatmul.mubr.f32.gmra.mrb[0].mxu0 %v1030
        %v1230 = vpop.f32.mrb[0].mxu0
        %v1231 = vadd.f32 %v1157, %v1230
        %v1232 = vpop.f32.mrb[0].mxu0
        %1233 = vdwg.mxu0
        %v1234 = vld [vmem:[%s882] sm:$0xff]
        %v1235 = vld [vmem:[%s882 + $0x8] sm:$0xff]
        %v1236 = vld [vmem:[%s882 + $0x10] sm:$0xff]
        %v1237 = vld [vmem:[%s882 + $0x18] sm:$0xff]
        %v1238 = vld [vmem:[%s882 + $0x20] sm:$0xff]
        %v1239 = vld [vmem:[%s882 + $0x28] sm:$0xff]
        %v1240 = vld [vmem:[%s882 + $0x30] sm:$0xff]
        %v1241 = vld [vmem:[%s882 + $0x38] sm:$0xff]
        %v1242 = vld [vmem:[%s882 + $0x40] sm:$0xff]
        %v1243 = vld [vmem:[%s882 + $0x48] sm:$0xff]
        %v1244 = vld [vmem:[%s882 + $0x50] sm:$0xff]
        %v1245 = vld [vmem:[%s882 + $0x58] sm:$0xff]
        %v1246 = vld [vmem:[%s882 + $0x60] sm:$0xff]
        %v1247 = vld [vmem:[%s882 + $0x68] sm:$0xff]
        %v1248 = vld [vmem:[%s882 + $0x70] sm:$0xff]
        %v1249 = vld [vmem:[%s882 + $0x78] sm:$0xff]
        %v1250 = vld [vmem:[%s885] sm:$0x1]
        %v1252 = vlaneseq
        %v1253 = vshrl.u32 %v1252, 7
        %v1254 = vsub.s32 0, %v1253
        %v1255 = vrot.slane %v1250, %v1254
        %1257 = vmatprep.subr.mxu0 0.0
        %1258 = vmatpush1.msra.mxu0 %v1234
        %1259 = vmatprep.subr.mxu0 0.0
        %1260 = vmatpush1.msra.mxu0 %v1235
        %1261 = vmatprep.subr.mxu0 0.0
        %1262 = vmatpush1.msra.mxu0 %v1236
        %1263 = vmatprep.subr.mxu0 0.0
        %1264 = vmatpush1.msra.mxu0 %v1237
        %1265 = vmatprep.subr.mxu0 0.0
        %1266 = vmatpush1.msra.mxu0 %v1238
        %1267 = vmatprep.subr.mxu0 0.0
        %1268 = vmatpush1.msra.mxu0 %v1239
        %1269 = vmatprep.subr.mxu0 0.0
        %1270 = vmatpush1.msra.mxu0 %v1240
        %1271 = vmatprep.subr.mxu0 0.0
        %1272 = vmatpush1.msra.mxu0 %v1241
        %1273 = vmatprep.subr.mxu0 0.0
        %1274 = vmatpush1.msra.mxu0 %v1242
        %1275 = vmatprep.subr.mxu0 0.0
        %1276 = vmatpush1.msra.mxu0 %v1243
        %1277 = vmatprep.subr.mxu0 0.0
        %1278 = vmatpush1.msra.mxu0 %v1244
        %1279 = vmatprep.subr.mxu0 0.0
        %1280 = vmatpush1.msra.mxu0 %v1245
        %1281 = vmatprep.subr.mxu0 0.0
        %1282 = vmatpush1.msra.mxu0 %v1246
        %1283 = vmatprep.subr.mxu0 0.0
        %1284 = vmatpush1.msra.mxu0 %v1247
        %1285 = vmatprep.subr.mxu0 0.0
        %1286 = vmatpush1.msra.mxu0 %v1248
        %1287 = vmatprep.subr.mxu0 0.0
        %1288 = vmatpush1.msra.mxu0 %v1249
        %1289 = vmatprep.subr.mxu0 0.0
        %1290 = vmatpush1.msra.mxu0 0.0
        %1291 = vmatprep.subr.mxu0 0.0
        %1292 = vmatpush1.msra.mxu0 0.0
        %1293 = vmatprep.subr.mxu0 0.0
        %1294 = vmatpush1.msra.mxu0 0.0
        %1295 = vmatprep.subr.mxu0 0.0
        %1296 = vmatpush1.msra.mxu0 0.0
        %1297 = vmatprep.subr.mxu0 0.0
        %1298 = vmatpush1.msra.mxu0 0.0
        %1299 = vmatprep.subr.mxu0 0.0
        %1300 = vmatpush1.msra.mxu0 0.0
        %1301 = vmatprep.subr.mxu0 0.0
        %1302 = vmatpush1.msra.mxu0 0.0
        %1303 = vmatprep.subr.mxu0 0.0
        %1304 = vmatpush1.msra.mxu0 0.0
        %1305 = vmatprep.subr.mxu0 0.0
        %1306 = vmatpush1.msra.mxu0 0.0
        %1307 = vmatprep.subr.mxu0 0.0
        %1308 = vmatpush1.msra.mxu0 0.0
        %1309 = vmatprep.subr.mxu0 0.0
        %1310 = vmatpush1.msra.mxu0 0.0
        %1311 = vmatprep.subr.mxu0 0.0
        %1312 = vmatpush1.msra.mxu0 0.0
        %1313 = vmatprep.subr.mxu0 0.0
        %1314 = vmatpush1.msra.mxu0 0.0
        %1315 = vmatprep.subr.mxu0 0.0
        %1316 = vmatpush1.msra.mxu0 0.0
        %1317 = vmatprep.subr.mxu0 0.0
        %1318 = vmatpush1.msra.mxu0 0.0
        %1319 = vmatprep.subr.mxu0 0.0
        %1320 = vmatpush1.msra.mxu0 0.0
        %1321 = vmatprep.mubr.f32.mxu0 0.0
        %1322 = vmatmul.mubr.f32.gmra.mrb[0].mxu0 %v1029
        %v1323 = vpop.f32.mrb[0].mxu0
        %v1324 = vadd.f32 %v1255, %v1323
        %v1325 = vpop.f32.mrb[0].mxu0
        %1326 = vmatprep.mubr.f32.mxu0 0.0
        %1327 = vmatmul.mubr.f32.gmra.mrb[0].mxu0 %v1030
        %v1328 = vpop.f32.mrb[0].mxu0
        %v1329 = vadd.f32 %v1255, %v1328
        %v1330 = vpop.f32.mrb[0].mxu0
        %1331 = vdwg.mxu0
        %vm1332 = vcmp.ge.s32.totalorder %v1032, 0
        %vm1333 = vcmp.lt.s32.totalorder %v1032, 8
        %vm1334 = vmand %vm1332, %vm1333
        %v1335 = vsel %vm1334, 1, 0
        %v1336 = vcvt.s32.f32 %v1335
        %vm1337 = vcmp.ge.s32.totalorder %v1032, 8
        %vm1338 = vcmp.lt.s32.totalorder %v1032, 16
        %vm1339 = vmand %vm1337, %vm1338
        %v1340 = vsel %vm1339, 1, 0
        %v1341 = vcvt.s32.f32 %v1340
        %vm1342 = vcmp.ge.s32.totalorder %v1032, 16
        %vm1343 = vcmp.lt.s32.totalorder %v1032, 24
        %vm1344 = vmand %vm1342, %vm1343
        %v1345 = vsel %vm1344, 1, 0
        %v1346 = vcvt.s32.f32 %v1345
        %vm1347 = vcmp.ge.s32.totalorder %v1032, 24
        %vm1348 = vmand %vm1347, %vm1033
        %v1349 = vsel %vm1348, 1, 0
        %v1350 = vcvt.s32.f32 %v1349
        %v1351 = vmul.f32 %v1134, %v1336
        %1352 = vmatprep.subr.mxu0 0.0
        %1353 = vmatpush1.xpose.msra.mxu0 %v1226
        %1354 = vmatprep.subr.mxu0 0.0
        %1355 = vmatpush1.xpose.msra.mxu0 0.0
        %1356 = vmatprep.subr.mxu0 0.0
        %1357 = vmatpush1.xpose.msra.mxu0 0.0
        %1358 = vmatprep.subr.mxu0 0.0
        %1359 = vmatpush1.xpose.msra.mxu0 0.0
        %1360 = vmatprep.subr.mxu0 0.0
        %1361 = vmatpush1.xpose.msra.mxu0 0.0
        %1362 = vmatprep.subr.mxu0 0.0
        %1363 = vmatpush1.xpose.msra.mxu0 0.0
        %1364 = vmatprep.subr.mxu0 0.0
        %1365 = vmatpush1.xpose.msra.mxu0 0.0
        %1366 = vmatprep.subr.mxu0 0.0
        %1367 = vmatpush1.xpose.msra.mxu0 0.0
        %1368 = vmatprep.subr.mxu0 0.0
        %1369 = vmatpush1.xpose.msra.mxu0 0.0
        %1370 = vmatprep.subr.mxu0 0.0
        %1371 = vmatpush1.xpose.msra.mxu0 0.0
        %1372 = vmatprep.subr.mxu0 0.0
        %1373 = vmatpush1.xpose.msra.mxu0 0.0
        %1374 = vmatprep.subr.mxu0 0.0
        %1375 = vmatpush1.xpose.msra.mxu0 0.0
        %1376 = vmatprep.subr.mxu0 0.0
        %1377 = vmatpush1.xpose.msra.mxu0 0.0
        %1378 = vmatprep.subr.mxu0 0.0
        %1379 = vmatpush1.xpose.msra.mxu0 0.0
        %1380 = vmatprep.subr.mxu0 0.0
        %1381 = vmatpush1.xpose.msra.mxu0 0.0
        %1382 = vmatprep.subr.mxu0 0.0
        %1383 = vmatpush1.xpose.msra.mxu0 0.0
        %1384 = vmatprep.subr.mxu0 0.0
        %1385 = vmatpush1.xpose.msra.mxu0 0.0
        %1386 = vmatprep.subr.mxu0 0.0
        %1387 = vmatpush1.xpose.msra.mxu0 0.0
        %1388 = vmatprep.subr.mxu0 0.0
        %1389 = vmatpush1.xpose.msra.mxu0 0.0
        %1390 = vmatprep.subr.mxu0 0.0
        %1391 = vmatpush1.xpose.msra.mxu0 0.0
        %1392 = vmatprep.subr.mxu0 0.0
        %1393 = vmatpush1.xpose.msra.mxu0 0.0
        %1394 = vmatprep.subr.mxu0 0.0
        %1395 = vmatpush1.xpose.msra.mxu0 0.0
        %1396 = vmatprep.subr.mxu0 0.0
        %1397 = vmatpush1.xpose.msra.mxu0 0.0
        %1398 = vmatprep.subr.mxu0 0.0
        %1399 = vmatpush1.xpose.msra.mxu0 0.0
        %1400 = vmatprep.subr.mxu0 0.0
        %1401 = vmatpush1.xpose.msra.mxu0 0.0
        %1402 = vmatprep.subr.mxu0 0.0
        %1403 = vmatpush1.xpose.msra.mxu0 0.0
        %1404 = vmatprep.subr.mxu0 0.0
        %1405 = vmatpush1.xpose.msra.mxu0 0.0
        %1406 = vmatprep.subr.mxu0 0.0
        %1407 = vmatpush1.xpose.msra.mxu0 0.0
        %1408 = vmatprep.subr.mxu0 0.0
        %1409 = vmatpush1.xpose.msra.mxu0 0.0
        %1410 = vmatprep.subr.mxu0 0.0
        %1411 = vmatpush1.xpose.msra.mxu0 0.0
        %1412 = vmatprep.subr.mxu0 0.0
        %1413 = vmatpush1.xpose.msra.mxu0 0.0
        %1414 = vmatprep.subr.mxu0 0.0
        %1415 = vmatpush1.xpose.msra.mxu0 0.0
        %1416 = vmatprep.mubr.f32.mxu0 0.0
        %1417 = vmatmul.mubr.f32.gmra.mrb[0].mxu0 %v1351
        %v1418 = vpop.f32.mrb[0].mxu0
        %v1419 = vadd.f32 0.0, %v1418
        %v1420 = vpop.f32.mrb[0].mxu0
        %1421 = vdwg.mxu0
        %vm1422 = vcmask 64512
        %v1423 = vsel %vm1422, %v1419, -inf
        %1424 = vmax.xlane.f32.xlu0 %v1423
        %v1425 = vpop.xlane.xlu0 %1424
        %v1426 = vsub.f32 %v1419, %v1425
        %v1427 = vmul.f32 %v1426, 1.442695
        %v1428 = vpow.pop %v1427
        %v1429 = vsel %vm1422, %v1428, 0.0
        %1430 = vadd.xlane.f32.xlu0 %v1429
        %v1431 = vpop.xlane.xlu0 %1430
        %v1432 = vrcp.pop %v1431
        %v1433 = vmul.f32 %v1428, %v1432
        %v1434 = vmul.f32 %v1324, %v1336
        %v1435 = vmul.f32 %v1134, %v1341
        %1436 = vmatprep.subr.mxu0 0.0
        %1437 = vmatpush1.xpose.msra.mxu0 %v1226
        %1438 = vmatprep.subr.mxu0 0.0
        %1439 = vmatpush1.xpose.msra.mxu0 0.0
        %1440 = vmatprep.subr.mxu0 0.0
        %1441 = vmatpush1.xpose.msra.mxu0 0.0
        %1442 = vmatprep.subr.mxu0 0.0
        %1443 = vmatpush1.xpose.msra.mxu0 0.0
        %1444 = vmatprep.subr.mxu0 0.0
        %1445 = vmatpush1.xpose.msra.mxu0 0.0
        %1446 = vmatprep.subr.mxu0 0.0
        %1447 = vmatpush1.xpose.msra.mxu0 0.0
        %1448 = vmatprep.subr.mxu0 0.0
        %1449 = vmatpush1.xpose.msra.mxu0 0.0
        %1450 = vmatprep.subr.mxu0 0.0
        %1451 = vmatpush1.xpose.msra.mxu0 0.0
        %1452 = vmatprep.subr.mxu0 0.0
        %1453 = vmatpush1.xpose.msra.mxu0 0.0
        %1454 = vmatprep.subr.mxu0 0.0
        %1455 = vmatpush1.xpose.msra.mxu0 0.0
        %1456 = vmatprep.subr.mxu0 0.0
        %1457 = vmatpush1.xpose.msra.mxu0 0.0
        %1458 = vmatprep.subr.mxu0 0.0
        %1459 = vmatpush1.xpose.msra.mxu0 0.0
        %1460 = vmatprep.subr.mxu0 0.0
        %1461 = vmatpush1.xpose.msra.mxu0 0.0
        %1462 = vmatprep.subr.mxu0 0.0
        %1463 = vmatpush1.xpose.msra.mxu0 0.0
        %1464 = vmatprep.subr.mxu0 0.0
        %1465 = vmatpush1.xpose.msra.mxu0 0.0
        %1466 = vmatprep.subr.mxu0 0.0
        %1467 = vmatpush1.xpose.msra.mxu0 0.0
        %1468 = vmatprep.subr.mxu0 0.0
        %1469 = vmatpush1.xpose.msra.mxu0 0.0
        %1470 = vmatprep.subr.mxu0 0.0
        %1471 = vmatpush1.xpose.msra.mxu0 0.0
        %1472 = vmatprep.subr.mxu0 0.0
        %1473 = vmatpush1.xpose.msra.mxu0 0.0
        %1474 = vmatprep.subr.mxu0 0.0
        %1475 = vmatpush1.xpose.msra.mxu0 0.0
        %1476 = vmatprep.subr.mxu0 0.0
        %1477 = vmatpush1.xpose.msra.mxu0 0.0
        %1478 = vmatprep.subr.mxu0 0.0
        %1479 = vmatpush1.xpose.msra.mxu0 0.0
        %1480 = vmatprep.subr.mxu0 0.0
        %1481 = vmatpush1.xpose.msra.mxu0 0.0
        %1482 = vmatprep.subr.mxu0 0.0
        %1483 = vmatpush1.xpose.msra.mxu0 0.0
        %1484 = vmatprep.subr.mxu0 0.0
        %1485 = vmatpush1.xpose.msra.mxu0 0.0
        %1486 = vmatprep.subr.mxu0 0.0
        %1487 = vmatpush1.xpose.msra.mxu0 0.0
        %1488 = vmatprep.subr.mxu0 0.0
        %1489 = vmatpush1.xpose.msra.mxu0 0.0
        %1490 = vmatprep.subr.mxu0 0.0
        %1491 = vmatpush1.xpose.msra.mxu0 0.0
        %1492 = vmatprep.subr.mxu0 0.0
        %1493 = vmatpush1.xpose.msra.mxu0 0.0
        %1494 = vmatprep.subr.mxu0 0.0
        %1495 = vmatpush1.xpose.msra.mxu0 0.0
        %1496 = vmatprep.subr.mxu0 0.0
        %1497 = vmatpush1.xpose.msra.mxu0 0.0
        %1498 = vmatprep.subr.mxu0 0.0
        %1499 = vmatpush1.xpose.msra.mxu0 0.0
        %1500 = vmatprep.mubr.f32.mxu0 0.0
        %1501 = vmatmul.mubr.f32.gmra.mrb[0].mxu0 %v1435
        %v1502 = vpop.f32.mrb[0].mxu0
        %v1503 = vadd.f32 0.0, %v1502
        %v1504 = vpop.f32.mrb[0].mxu0
        %1505 = vdwg.mxu0
        %v1506 = vsel %vm1422, %v1503, -inf
        %1507 = vmax.xlane.f32.xlu0 %v1506
        %v1508 = vpop.xlane.xlu0 %1507
        %v1509 = vsub.f32 %v1503, %v1508
        %v1510 = vmul.f32 %v1509, 1.442695
        %v1511 = vpow.pop %v1510
        %v1512 = vsel %vm1422, %v1511, 0.0
        %1513 = vadd.xlane.f32.xlu0 %v1512
        %v1514 = vpop.xlane.xlu0 %1513
        %v1515 = vrcp.pop %v1514
        %v1516 = vmul.f32 %v1511, %v1515
        %v1517 = vmul.f32 %v1324, %v1341
        %v1519 = vsel %vm1422, %v1516, 0
        %1521 = vmatprep.subr.mxu0 0.0
        %1522 = vmatpush1.msra.mxu0 %v1517
        %1523 = vmatprep.subr.mxu0 0.0
        %1524 = vmatpush1.msra.mxu0 0.0
        %1525 = vmatprep.subr.mxu0 0.0
        %1526 = vmatpush1.msra.mxu0 0.0
        %1527 = vmatprep.subr.mxu0 0.0
        %1528 = vmatpush1.msra.mxu0 0.0
        %1529 = vmatprep.subr.mxu0 0.0
        %1530 = vmatpush1.msra.mxu0 0.0
        %1531 = vmatprep.subr.mxu0 0.0
        %1532 = vmatpush1.msra.mxu0 0.0
        %1533 = vmatprep.subr.mxu0 0.0
        %1534 = vmatpush1.msra.mxu0 0.0
        %1535 = vmatprep.subr.mxu0 0.0
        %1536 = vmatpush1.msra.mxu0 0.0
        %1537 = vmatprep.subr.mxu0 0.0
        %1538 = vmatpush1.msra.mxu0 0.0
        %1539 = vmatprep.subr.mxu0 0.0
        %1540 = vmatpush1.msra.mxu0 0.0
        %1541 = vmatprep.subr.mxu0 0.0
        %1542 = vmatpush1.msra.mxu0 0.0
        %1543 = vmatprep.subr.mxu0 0.0
        %1544 = vmatpush1.msra.mxu0 0.0
        %1545 = vmatprep.subr.mxu0 0.0
        %1546 = vmatpush1.msra.mxu0 0.0
        %1547 = vmatprep.subr.mxu0 0.0
        %1548 = vmatpush1.msra.mxu0 0.0
        %1549 = vmatprep.subr.mxu0 0.0
        %1550 = vmatpush1.msra.mxu0 0.0
        %1551 = vmatprep.subr.mxu0 0.0
        %1552 = vmatpush1.msra.mxu0 0.0
        %1553 = vmatprep.subr.mxu0 0.0
        %1554 = vmatpush1.msra.mxu0 0.0
        %1555 = vmatprep.subr.mxu0 0.0
        %1556 = vmatpush1.msra.mxu0 0.0
        %1557 = vmatprep.subr.mxu0 0.0
        %1558 = vmatpush1.msra.mxu0 0.0
        %1559 = vmatprep.subr.mxu0 0.0
        %1560 = vmatpush1.msra.mxu0 0.0
        %1561 = vmatprep.subr.mxu0 0.0
        %1562 = vmatpush1.msra.mxu0 0.0
        %1563 = vmatprep.subr.mxu0 0.0
        %1564 = vmatpush1.msra.mxu0 0.0
        %1565 = vmatprep.subr.mxu0 0.0
        %1566 = vmatpush1.msra.mxu0 0.0
        %1567 = vmatprep.subr.mxu0 0.0
        %1568 = vmatpush1.msra.mxu0 0.0
        %1569 = vmatprep.subr.mxu0 0.0
        %1570 = vmatpush1.msra.mxu0 0.0
        %1571 = vmatprep.subr.mxu0 0.0
        %1572 = vmatpush1.msra.mxu0 0.0
        %1573 = vmatprep.subr.mxu0 0.0
        %1574 = vmatpush1.msra.mxu0 0.0
        %1575 = vmatprep.subr.mxu0 0.0
        %1576 = vmatpush1.msra.mxu0 0.0
        %1577 = vmatprep.subr.mxu0 0.0
        %1578 = vmatpush1.msra.mxu0 0.0
        %1579 = vmatprep.subr.mxu0 0.0
        %1580 = vmatpush1.msra.mxu0 0.0
        %1581 = vmatprep.subr.mxu0 0.0
        %1582 = vmatpush1.msra.mxu0 0.0
        %1583 = vmatprep.subr.mxu0 0.0
        %1584 = vmatpush1.msra.mxu0 0.0
        %1585 = vmatprep.mubr.f32.mxu0 0.0
        %1586 = vmatmul.mubr.f32.gmra.mrb[0].mxu0 %v1519
        %v1587 = vpop.f32.mrb[0].mxu0
        %v1588 = vadd.f32 0.0, %v1587
        %v1589 = vpop.f32.mrb[0].mxu0
        %1590 = vdwg.mxu0
        %v1592 = vsel %vm1422, %v1433, 0
        %1594 = vmatprep.subr.mxu0 0.0
        %1595 = vmatpush1.msra.mxu0 %v1434
        %1596 = vmatprep.subr.mxu0 0.0
        %1597 = vmatpush1.msra.mxu0 0.0
        %1598 = vmatprep.subr.mxu0 0.0
        %1599 = vmatpush1.msra.mxu0 0.0
        %1600 = vmatprep.subr.mxu0 0.0
        %1601 = vmatpush1.msra.mxu0 0.0
        %1602 = vmatprep.subr.mxu0 0.0
        %1603 = vmatpush1.msra.mxu0 0.0
        %1604 = vmatprep.subr.mxu0 0.0
        %1605 = vmatpush1.msra.mxu0 0.0
        %1606 = vmatprep.subr.mxu0 0.0
        %1607 = vmatpush1.msra.mxu0 0.0
        %1608 = vmatprep.subr.mxu0 0.0
        %1609 = vmatpush1.msra.mxu0 0.0
        %1610 = vmatprep.subr.mxu0 0.0
        %1611 = vmatpush1.msra.mxu0 0.0
        %1612 = vmatprep.subr.mxu0 0.0
        %1613 = vmatpush1.msra.mxu0 0.0
        %1614 = vmatprep.subr.mxu0 0.0
        %1615 = vmatpush1.msra.mxu0 0.0
        %1616 = vmatprep.subr.mxu0 0.0
        %1617 = vmatpush1.msra.mxu0 0.0
        %1618 = vmatprep.subr.mxu0 0.0
        %1619 = vmatpush1.msra.mxu0 0.0
        %1620 = vmatprep.subr.mxu0 0.0
        %1621 = vmatpush1.msra.mxu0 0.0
        %1622 = vmatprep.subr.mxu0 0.0
        %1623 = vmatpush1.msra.mxu0 0.0
        %1624 = vmatprep.subr.mxu0 0.0
        %1625 = vmatpush1.msra.mxu0 0.0
        %1626 = vmatprep.subr.mxu0 0.0
        %1627 = vmatpush1.msra.mxu0 0.0
        %1628 = vmatprep.subr.mxu0 0.0
        %1629 = vmatpush1.msra.mxu0 0.0
        %1630 = vmatprep.subr.mxu0 0.0
        %1631 = vmatpush1.msra.mxu0 0.0
        %1632 = vmatprep.subr.mxu0 0.0
        %1633 = vmatpush1.msra.mxu0 0.0
        %1634 = vmatprep.subr.mxu0 0.0
        %1635 = vmatpush1.msra.mxu0 0.0
        %1636 = vmatprep.subr.mxu0 0.0
        %1637 = vmatpush1.msra.mxu0 0.0
        %1638 = vmatprep.subr.mxu0 0.0
        %1639 = vmatpush1.msra.mxu0 0.0
        %1640 = vmatprep.subr.mxu0 0.0
        %1641 = vmatpush1.msra.mxu0 0.0
        %1642 = vmatprep.subr.mxu0 0.0
        %1643 = vmatpush1.msra.mxu0 0.0
        %1644 = vmatprep.subr.mxu0 0.0
        %1645 = vmatpush1.msra.mxu0 0.0
        %1646 = vmatprep.subr.mxu0 0.0
        %1647 = vmatpush1.msra.mxu0 0.0
        %1648 = vmatprep.subr.mxu0 0.0
        %1649 = vmatpush1.msra.mxu0 0.0
        %1650 = vmatprep.subr.mxu0 0.0
        %1651 = vmatpush1.msra.mxu0 0.0
        %1652 = vmatprep.subr.mxu0 0.0
        %1653 = vmatpush1.msra.mxu0 0.0
        %1654 = vmatprep.subr.mxu0 0.0
        %1655 = vmatpush1.msra.mxu0 0.0
        %1656 = vmatprep.subr.mxu0 0.0
        %1657 = vmatpush1.msra.mxu0 0.0
        %1658 = vmatprep.mubr.f32.mxu0 0.0
        %1659 = vmatmul.mubr.f32.gmra.mrb[0].mxu0 %v1592
        %v1660 = vpop.f32.mrb[0].mxu0
        %v1661 = vadd.f32 %v1588, %v1660
        %v1662 = vpop.f32.mrb[0].mxu0
        %1663 = vdwg.mxu0
        %v1664 = vmul.f32 %v1134, %v1346
        %1665 = vmatprep.subr.mxu0 0.0
        %1666 = vmatpush1.xpose.msra.mxu0 %v1226
        %1667 = vmatprep.subr.mxu0 0.0
        %1668 = vmatpush1.xpose.msra.mxu0 0.0
        %1669 = vmatprep.subr.mxu0 0.0
        %1670 = vmatpush1.xpose.msra.mxu0 0.0
        %1671 = vmatprep.subr.mxu0 0.0
        %1672 = vmatpush1.xpose.msra.mxu0 0.0
        %1673 = vmatprep.subr.mxu0 0.0
        %1674 = vmatpush1.xpose.msra.mxu0 0.0
        %1675 = vmatprep.subr.mxu0 0.0
        %1676 = vmatpush1.xpose.msra.mxu0 0.0
        %1677 = vmatprep.subr.mxu0 0.0
        %1678 = vmatpush1.xpose.msra.mxu0 0.0
        %1679 = vmatprep.subr.mxu0 0.0
        %1680 = vmatpush1.xpose.msra.mxu0 0.0
        %1681 = vmatprep.subr.mxu0 0.0
        %1682 = vmatpush1.xpose.msra.mxu0 0.0
        %1683 = vmatprep.subr.mxu0 0.0
        %1684 = vmatpush1.xpose.msra.mxu0 0.0
        %1685 = vmatprep.subr.mxu0 0.0
        %1686 = vmatpush1.xpose.msra.mxu0 0.0
        %1687 = vmatprep.subr.mxu0 0.0
        %1688 = vmatpush1.xpose.msra.mxu0 0.0
        %1689 = vmatprep.subr.mxu0 0.0
        %1690 = vmatpush1.xpose.msra.mxu0 0.0
        %1691 = vmatprep.subr.mxu0 0.0
        %1692 = vmatpush1.xpose.msra.mxu0 0.0
        %1693 = vmatprep.subr.mxu0 0.0
        %1694 = vmatpush1.xpose.msra.mxu0 0.0
        %1695 = vmatprep.subr.mxu0 0.0
        %1696 = vmatpush1.xpose.msra.mxu0 0.0
        %1697 = vmatprep.subr.mxu0 0.0
        %1698 = vmatpush1.xpose.msra.mxu0 0.0
        %1699 = vmatprep.subr.mxu0 0.0
        %1700 = vmatpush1.xpose.msra.mxu0 0.0
        %1701 = vmatprep.subr.mxu0 0.0
        %1702 = vmatpush1.xpose.msra.mxu0 0.0
        %1703 = vmatprep.subr.mxu0 0.0
        %1704 = vmatpush1.xpose.msra.mxu0 0.0
        %1705 = vmatprep.subr.mxu0 0.0
        %1706 = vmatpush1.xpose.msra.mxu0 0.0
        %1707 = vmatprep.subr.mxu0 0.0
        %1708 = vmatpush1.xpose.msra.mxu0 0.0
        %1709 = vmatprep.subr.mxu0 0.0
        %1710 = vmatpush1.xpose.msra.mxu0 0.0
        %1711 = vmatprep.subr.mxu0 0.0
        %1712 = vmatpush1.xpose.msra.mxu0 0.0
        %1713 = vmatprep.subr.mxu0 0.0
        %1714 = vmatpush1.xpose.msra.mxu0 0.0
        %1715 = vmatprep.subr.mxu0 0.0
        %1716 = vmatpush1.xpose.msra.mxu0 0.0
        %1717 = vmatprep.subr.mxu0 0.0
        %1718 = vmatpush1.xpose.msra.mxu0 0.0
        %1719 = vmatprep.subr.mxu0 0.0
        %1720 = vmatpush1.xpose.msra.mxu0 0.0
        %1721 = vmatprep.subr.mxu0 0.0
        %1722 = vmatpush1.xpose.msra.mxu0 0.0
        %1723 = vmatprep.subr.mxu0 0.0
        %1724 = vmatpush1.xpose.msra.mxu0 0.0
        %1725 = vmatprep.subr.mxu0 0.0
        %1726 = vmatpush1.xpose.msra.mxu0 0.0
        %1727 = vmatprep.subr.mxu0 0.0
        %1728 = vmatpush1.xpose.msra.mxu0 0.0
        %1729 = vmatprep.mubr.f32.mxu0 0.0
        %1730 = vmatmul.mubr.f32.gmra.mrb[0].mxu0 %v1664
        %v1731 = vpop.f32.mrb[0].mxu0
        %v1732 = vadd.f32 0.0, %v1731
        %v1733 = vpop.f32.mrb[0].mxu0
        %1734 = vdwg.mxu0
        %v1735 = vsel %vm1422, %v1732, -inf
        %1736 = vmax.xlane.f32.xlu0 %v1735
        %v1737 = vpop.xlane.xlu0 %1736
        %v1738 = vsub.f32 %v1732, %v1737
        %v1739 = vmul.f32 %v1738, 1.442695
        %v1740 = vpow.pop %v1739
        %v1741 = vsel %vm1422, %v1740, 0.0
        %1742 = vadd.xlane.f32.xlu0 %v1741
        %v1743 = vpop.xlane.xlu0 %1742
        %v1744 = vrcp.pop %v1743
        %v1745 = vmul.f32 %v1740, %v1744
        %v1746 = vmul.f32 %v1324, %v1346
        %v1748 = vsel %vm1422, %v1745, 0
        %1750 = vmatprep.subr.mxu0 0.0
        %1751 = vmatpush1.msra.mxu0 %v1746
        %1752 = vmatprep.subr.mxu0 0.0
        %1753 = vmatpush1.msra.mxu0 0.0
        %1754 = vmatprep.subr.mxu0 0.0
        %1755 = vmatpush1.msra.mxu0 0.0
        %1756 = vmatprep.subr.mxu0 0.0
        %1757 = vmatpush1.msra.mxu0 0.0
        %1758 = vmatprep.subr.mxu0 0.0
        %1759 = vmatpush1.msra.mxu0 0.0
        %1760 = vmatprep.subr.mxu0 0.0
        %1761 = vmatpush1.msra.mxu0 0.0
        %1762 = vmatprep.subr.mxu0 0.0
        %1763 = vmatpush1.msra.mxu0 0.0
        %1764 = vmatprep.subr.mxu0 0.0
        %1765 = vmatpush1.msra.mxu0 0.0
        %1766 = vmatprep.subr.mxu0 0.0
        %1767 = vmatpush1.msra.mxu0 0.0
        %1768 = vmatprep.subr.mxu0 0.0
        %1769 = vmatpush1.msra.mxu0 0.0
        %1770 = vmatprep.subr.mxu0 0.0
        %1771 = vmatpush1.msra.mxu0 0.0
        %1772 = vmatprep.subr.mxu0 0.0
        %1773 = vmatpush1.msra.mxu0 0.0
        %1774 = vmatprep.subr.mxu0 0.0
        %1775 = vmatpush1.msra.mxu0 0.0
        %1776 = vmatprep.subr.mxu0 0.0
        %1777 = vmatpush1.msra.mxu0 0.0
        %1778 = vmatprep.subr.mxu0 0.0
        %1779 = vmatpush1.msra.mxu0 0.0
        %1780 = vmatprep.subr.mxu0 0.0
        %1781 = vmatpush1.msra.mxu0 0.0
        %1782 = vmatprep.subr.mxu0 0.0
        %1783 = vmatpush1.msra.mxu0 0.0
        %1784 = vmatprep.subr.mxu0 0.0
        %1785 = vmatpush1.msra.mxu0 0.0
        %1786 = vmatprep.subr.mxu0 0.0
        %1787 = vmatpush1.msra.mxu0 0.0
        %1788 = vmatprep.subr.mxu0 0.0
        %1789 = vmatpush1.msra.mxu0 0.0
        %1790 = vmatprep.subr.mxu0 0.0
        %1791 = vmatpush1.msra.mxu0 0.0
        %1792 = vmatprep.subr.mxu0 0.0
        %1793 = vmatpush1.msra.mxu0 0.0
        %1794 = vmatprep.subr.mxu0 0.0
        %1795 = vmatpush1.msra.mxu0 0.0
        %1796 = vmatprep.subr.mxu0 0.0
        %1797 = vmatpush1.msra.mxu0 0.0
        %1798 = vmatprep.subr.mxu0 0.0
        %1799 = vmatpush1.msra.mxu0 0.0
        %1800 = vmatprep.subr.mxu0 0.0
        %1801 = vmatpush1.msra.mxu0 0.0
        %1802 = vmatprep.subr.mxu0 0.0
        %1803 = vmatpush1.msra.mxu0 0.0
        %1804 = vmatprep.subr.mxu0 0.0
        %1805 = vmatpush1.msra.mxu0 0.0
        %1806 = vmatprep.subr.mxu0 0.0
        %1807 = vmatpush1.msra.mxu0 0.0
        %1808 = vmatprep.subr.mxu0 0.0
        %1809 = vmatpush1.msra.mxu0 0.0
        %1810 = vmatprep.subr.mxu0 0.0
        %1811 = vmatpush1.msra.mxu0 0.0
        %1812 = vmatprep.subr.mxu0 0.0
        %1813 = vmatpush1.msra.mxu0 0.0
        %1814 = vmatprep.mubr.f32.mxu0 0.0
        %1815 = vmatmul.mubr.f32.gmra.mrb[0].mxu0 %v1748
        %v1816 = vpop.f32.mrb[0].mxu0
        %v1817 = vadd.f32 0.0, %v1816
        %v1818 = vpop.f32.mrb[0].mxu0
        %1819 = vdwg.mxu0
        %v1820 = vadd.f32 %v1661, %v1817
        %v1821 = vmul.f32 %v1134, %v1350
        %1822 = vmatprep.subr.mxu0 0.0
        %1823 = vmatpush1.xpose.msra.mxu0 %v1226
        %1824 = vmatprep.subr.mxu0 0.0
        %1825 = vmatpush1.xpose.msra.mxu0 0.0
        %1826 = vmatprep.subr.mxu0 0.0
        %1827 = vmatpush1.xpose.msra.mxu0 0.0
        %1828 = vmatprep.subr.mxu0 0.0
        %1829 = vmatpush1.xpose.msra.mxu0 0.0
        %1830 = vmatprep.subr.mxu0 0.0
        %1831 = vmatpush1.xpose.msra.mxu0 0.0
        %1832 = vmatprep.subr.mxu0 0.0
        %1833 = vmatpush1.xpose.msra.mxu0 0.0
        %1834 = vmatprep.subr.mxu0 0.0
        %1835 = vmatpush1.xpose.msra.mxu0 0.0
        %1836 = vmatprep.subr.mxu0 0.0
        %1837 = vmatpush1.xpose.msra.mxu0 0.0
        %1838 = vmatprep.subr.mxu0 0.0
        %1839 = vmatpush1.xpose.msra.mxu0 0.0
        %1840 = vmatprep.subr.mxu0 0.0
        %1841 = vmatpush1.xpose.msra.mxu0 0.0
        %1842 = vmatprep.subr.mxu0 0.0
        %1843 = vmatpush1.xpose.msra.mxu0 0.0
        %1844 = vmatprep.subr.mxu0 0.0
        %1845 = vmatpush1.xpose.msra.mxu0 0.0
        %1846 = vmatprep.subr.mxu0 0.0
        %1847 = vmatpush1.xpose.msra.mxu0 0.0
        %1848 = vmatprep.subr.mxu0 0.0
        %1849 = vmatpush1.xpose.msra.mxu0 0.0
        %1850 = vmatprep.subr.mxu0 0.0
        %1851 = vmatpush1.xpose.msra.mxu0 0.0
        %1852 = vmatprep.subr.mxu0 0.0
        %1853 = vmatpush1.xpose.msra.mxu0 0.0
        %1854 = vmatprep.subr.mxu0 0.0
        %1855 = vmatpush1.xpose.msra.mxu0 0.0
        %1856 = vmatprep.subr.mxu0 0.0
        %1857 = vmatpush1.xpose.msra.mxu0 0.0
        %1858 = vmatprep.subr.mxu0 0.0
        %1859 = vmatpush1.xpose.msra.mxu0 0.0
        %1860 = vmatprep.subr.mxu0 0.0
        %1861 = vmatpush1.xpose.msra.mxu0 0.0
        %1862 = vmatprep.subr.mxu0 0.0
        %1863 = vmatpush1.xpose.msra.mxu0 0.0
        %1864 = vmatprep.subr.mxu0 0.0
        %1865 = vmatpush1.xpose.msra.mxu0 0.0
        %1866 = vmatprep.subr.mxu0 0.0
        %1867 = vmatpush1.xpose.msra.mxu0 0.0
        %1868 = vmatprep.subr.mxu0 0.0
        %1869 = vmatpush1.xpose.msra.mxu0 0.0
        %1870 = vmatprep.subr.mxu0 0.0
        %1871 = vmatpush1.xpose.msra.mxu0 0.0
        %1872 = vmatprep.subr.mxu0 0.0
        %1873 = vmatpush1.xpose.msra.mxu0 0.0
        %1874 = vmatprep.subr.mxu0 0.0
        %1875 = vmatpush1.xpose.msra.mxu0 0.0
        %1876 = vmatprep.subr.mxu0 0.0
        %1877 = vmatpush1.xpose.msra.mxu0 0.0
        %1878 = vmatprep.subr.mxu0 0.0
        %1879 = vmatpush1.xpose.msra.mxu0 0.0
        %1880 = vmatprep.subr.mxu0 0.0
        %1881 = vmatpush1.xpose.msra.mxu0 0.0
        %1882 = vmatprep.subr.mxu0 0.0
        %1883 = vmatpush1.xpose.msra.mxu0 0.0
        %1884 = vmatprep.subr.mxu0 0.0
        %1885 = vmatpush1.xpose.msra.mxu0 0.0
        %1886 = vmatprep.mubr.f32.mxu0 0.0
        %1887 = vmatmul.mubr.f32.gmra.mrb[0].mxu0 %v1821
        %v1888 = vpop.f32.mrb[0].mxu0
        %v1889 = vadd.f32 0.0, %v1888
        %v1890 = vpop.f32.mrb[0].mxu0
        %1891 = vdwg.mxu0
        %v1892 = vsel %vm1422, %v1889, -inf
        %1893 = vmax.xlane.f32.xlu0 %v1892
        %v1894 = vpop.xlane.xlu0 %1893
        %v1895 = vsub.f32 %v1889, %v1894
        %v1896 = vmul.f32 %v1895, 1.442695
        %v1897 = vpow.pop %v1896
        %v1898 = vsel %vm1422, %v1897, 0.0
        %1899 = vadd.xlane.f32.xlu0 %v1898
        %v1900 = vpop.xlane.xlu0 %1899
        %v1901 = vrcp.pop %v1900
        %v1902 = vmul.f32 %v1897, %v1901
        %v1903 = vmul.f32 %v1324, %v1350
        %v1905 = vsel %vm1422, %v1902, 0
        %1907 = vmatprep.subr.mxu0 0.0
        %1908 = vmatpush1.msra.mxu0 %v1903
        %1909 = vmatprep.subr.mxu0 0.0
        %1910 = vmatpush1.msra.mxu0 0.0
        %1911 = vmatprep.subr.mxu0 0.0
        %1912 = vmatpush1.msra.mxu0 0.0
        %1913 = vmatprep.subr.mxu0 0.0
        %1914 = vmatpush1.msra.mxu0 0.0
        %1915 = vmatprep.subr.mxu0 0.0
        %1916 = vmatpush1.msra.mxu0 0.0
        %1917 = vmatprep.subr.mxu0 0.0
        %1918 = vmatpush1.msra.mxu0 0.0
        %1919 = vmatprep.subr.mxu0 0.0
        %1920 = vmatpush1.msra.mxu0 0.0
        %1921 = vmatprep.subr.mxu0 0.0
        %1922 = vmatpush1.msra.mxu0 0.0
        %1923 = vmatprep.subr.mxu0 0.0
        %1924 = vmatpush1.msra.mxu0 0.0
        %1925 = vmatprep.subr.mxu0 0.0
        %1926 = vmatpush1.msra.mxu0 0.0
        %1927 = vmatprep.subr.mxu0 0.0
        %1928 = vmatpush1.msra.mxu0 0.0
        %1929 = vmatprep.subr.mxu0 0.0
        %1930 = vmatpush1.msra.mxu0 0.0
        %1931 = vmatprep.subr.mxu0 0.0
        %1932 = vmatpush1.msra.mxu0 0.0
        %1933 = vmatprep.subr.mxu0 0.0
        %1934 = vmatpush1.msra.mxu0 0.0
        %1935 = vmatprep.subr.mxu0 0.0
        %1936 = vmatpush1.msra.mxu0 0.0
        %1937 = vmatprep.subr.mxu0 0.0
        %1938 = vmatpush1.msra.mxu0 0.0
        %1939 = vmatprep.subr.mxu0 0.0
        %1940 = vmatpush1.msra.mxu0 0.0
        %1941 = vmatprep.subr.mxu0 0.0
        %1942 = vmatpush1.msra.mxu0 0.0
        %1943 = vmatprep.subr.mxu0 0.0
        %1944 = vmatpush1.msra.mxu0 0.0
        %1945 = vmatprep.subr.mxu0 0.0
        %1946 = vmatpush1.msra.mxu0 0.0
        %1947 = vmatprep.subr.mxu0 0.0
        %1948 = vmatpush1.msra.mxu0 0.0
        %1949 = vmatprep.subr.mxu0 0.0
        %1950 = vmatpush1.msra.mxu0 0.0
        %1951 = vmatprep.subr.mxu0 0.0
        %1952 = vmatpush1.msra.mxu0 0.0
        %1953 = vmatprep.subr.mxu0 0.0
        %1954 = vmatpush1.msra.mxu0 0.0
        %1955 = vmatprep.subr.mxu0 0.0
        %1956 = vmatpush1.msra.mxu0 0.0
        %1957 = vmatprep.subr.mxu0 0.0
        %1958 = vmatpush1.msra.mxu0 0.0
        %1959 = vmatprep.subr.mxu0 0.0
        %1960 = vmatpush1.msra.mxu0 0.0
        %1961 = vmatprep.subr.mxu0 0.0
        %1962 = vmatpush1.msra.mxu0 0.0
        %1963 = vmatprep.subr.mxu0 0.0
        %1964 = vmatpush1.msra.mxu0 0.0
        %1965 = vmatprep.subr.mxu0 0.0
        %1966 = vmatpush1.msra.mxu0 0.0
        %1967 = vmatprep.subr.mxu0 0.0
        %1968 = vmatpush1.msra.mxu0 0.0
        %1969 = vmatprep.subr.mxu0 0.0
        %1970 = vmatpush1.msra.mxu0 0.0
        %1971 = vmatprep.mubr.f32.mxu0 0.0
        %1972 = vmatmul.mubr.f32.gmra.mrb[0].mxu0 %v1905
        %v1973 = vpop.f32.mrb[0].mxu0
        %v1974 = vadd.f32 0.0, %v1973
        %v1975 = vpop.f32.mrb[0].mxu0
        %1976 = vdwg.mxu0
        %v1977 = vadd.f32 %v1820, %v1974
        %1978 = vst [vmem:[#allocation3] sm:$0xff] %v1977
        %v1979 = vmul.f32 %v1135, %v1336
        %1980 = vmatprep.subr.mxu0 0.0
        %1981 = vmatpush1.xpose.msra.mxu0 %v1231
        %1982 = vmatprep.subr.mxu0 0.0
        %1983 = vmatpush1.xpose.msra.mxu0 0.0
        %1984 = vmatprep.subr.mxu0 0.0
        %1985 = vmatpush1.xpose.msra.mxu0 0.0
        %1986 = vmatprep.subr.mxu0 0.0
        %1987 = vmatpush1.xpose.msra.mxu0 0.0
        %1988 = vmatprep.subr.mxu0 0.0
        %1989 = vmatpush1.xpose.msra.mxu0 0.0
        %1990 = vmatprep.subr.mxu0 0.0
        %1991 = vmatpush1.xpose.msra.mxu0 0.0
        %1992 = vmatprep.subr.mxu0 0.0
        %1993 = vmatpush1.xpose.msra.mxu0 0.0
        %1994 = vmatprep.subr.mxu0 0.0
        %1995 = vmatpush1.xpose.msra.mxu0 0.0
        %1996 = vmatprep.subr.mxu0 0.0
        %1997 = vmatpush1.xpose.msra.mxu0 0.0
        %1998 = vmatprep.subr.mxu0 0.0
        %1999 = vmatpush1.xpose.msra.mxu0 0.0
        %2000 = vmatprep.subr.mxu0 0.0
        %2001 = vmatpush1.xpose.msra.mxu0 0.0
        %2002 = vmatprep.subr.mxu0 0.0
        %2003 = vmatpush1.xpose.msra.mxu0 0.0
        %2004 = vmatprep.subr.mxu0 0.0
        %2005 = vmatpush1.xpose.msra.mxu0 0.0
        %2006 = vmatprep.subr.mxu0 0.0
        %2007 = vmatpush1.xpose.msra.mxu0 0.0
        %2008 = vmatprep.subr.mxu0 0.0
        %2009 = vmatpush1.xpose.msra.mxu0 0.0
        %2010 = vmatprep.subr.mxu0 0.0
        %2011 = vmatpush1.xpose.msra.mxu0 0.0
        %2012 = vmatprep.subr.mxu0 0.0
        %2013 = vmatpush1.xpose.msra.mxu0 0.0
        %2014 = vmatprep.subr.mxu0 0.0
        %2015 = vmatpush1.xpose.msra.mxu0 0.0
        %2016 = vmatprep.subr.mxu0 0.0
        %2017 = vmatpush1.xpose.msra.mxu0 0.0
        %2018 = vmatprep.subr.mxu0 0.0
        %2019 = vmatpush1.xpose.msra.mxu0 0.0
        %2020 = vmatprep.subr.mxu0 0.0
        %2021 = vmatpush1.xpose.msra.mxu0 0.0
        %2022 = vmatprep.subr.mxu0 0.0
        %2023 = vmatpush1.xpose.msra.mxu0 0.0
        %2024 = vmatprep.subr.mxu0 0.0
        %2025 = vmatpush1.xpose.msra.mxu0 0.0
        %2026 = vmatprep.subr.mxu0 0.0
        %2027 = vmatpush1.xpose.msra.mxu0 0.0
        %2028 = vmatprep.subr.mxu0 0.0
        %2029 = vmatpush1.xpose.msra.mxu0 0.0
        %2030 = vmatprep.subr.mxu0 0.0
        %2031 = vmatpush1.xpose.msra.mxu0 0.0
        %2032 = vmatprep.subr.mxu0 0.0
        %2033 = vmatpush1.xpose.msra.mxu0 0.0
        %2034 = vmatprep.subr.mxu0 0.0
        %2035 = vmatpush1.xpose.msra.mxu0 0.0
        %2036 = vmatprep.subr.mxu0 0.0
        %2037 = vmatpush1.xpose.msra.mxu0 0.0
        %2038 = vmatprep.subr.mxu0 0.0
        %2039 = vmatpush1.xpose.msra.mxu0 0.0
        %2040 = vmatprep.subr.mxu0 0.0
        %2041 = vmatpush1.xpose.msra.mxu0 0.0
        %2042 = vmatprep.subr.mxu0 0.0
        %2043 = vmatpush1.xpose.msra.mxu0 0.0
        %2044 = vmatprep.mubr.f32.mxu0 0.0
        %2045 = vmatmul.mubr.f32.gmra.mrb[0].mxu0 %v1979
        %v2046 = vpop.f32.mrb[0].mxu0
        %v2047 = vadd.f32 0.0, %v2046
        %v2048 = vpop.f32.mrb[0].mxu0
        %2049 = vdwg.mxu0
        %v2050 = vsel %vm1422, %v2047, -inf
        %2051 = vmax.xlane.f32.xlu0 %v2050
        %v2052 = vpop.xlane.xlu0 %2051
        %v2053 = vsub.f32 %v2047, %v2052
        %v2054 = vmul.f32 %v2053, 1.442695
        %v2055 = vpow.pop %v2054
        %v2056 = vsel %vm1422, %v2055, 0.0
        %2057 = vadd.xlane.f32.xlu0 %v2056
        %v2058 = vpop.xlane.xlu0 %2057
        %v2059 = vrcp.pop %v2058
        %v2060 = vmul.f32 %v2055, %v2059
        %v2061 = vmul.f32 %v1329, %v1336
        %v2062 = vmul.f32 %v1135, %v1341
        %2063 = vmatprep.subr.mxu0 0.0
        %2064 = vmatpush1.xpose.msra.mxu0 %v1231
        %2065 = vmatprep.subr.mxu0 0.0
        %2066 = vmatpush1.xpose.msra.mxu0 0.0
        %2067 = vmatprep.subr.mxu0 0.0
        %2068 = vmatpush1.xpose.msra.mxu0 0.0
        %2069 = vmatprep.subr.mxu0 0.0
        %2070 = vmatpush1.xpose.msra.mxu0 0.0
        %2071 = vmatprep.subr.mxu0 0.0
        %2072 = vmatpush1.xpose.msra.mxu0 0.0
        %2073 = vmatprep.subr.mxu0 0.0
        %2074 = vmatpush1.xpose.msra.mxu0 0.0
        %2075 = vmatprep.subr.mxu0 0.0
        %2076 = vmatpush1.xpose.msra.mxu0 0.0
        %2077 = vmatprep.subr.mxu0 0.0
        %2078 = vmatpush1.xpose.msra.mxu0 0.0
        %2079 = vmatprep.subr.mxu0 0.0
        %2080 = vmatpush1.xpose.msra.mxu0 0.0
        %2081 = vmatprep.subr.mxu0 0.0
        %2082 = vmatpush1.xpose.msra.mxu0 0.0
        %2083 = vmatprep.subr.mxu0 0.0
        %2084 = vmatpush1.xpose.msra.mxu0 0.0
        %2085 = vmatprep.subr.mxu0 0.0
        %2086 = vmatpush1.xpose.msra.mxu0 0.0
        %2087 = vmatprep.subr.mxu0 0.0
        %2088 = vmatpush1.xpose.msra.mxu0 0.0
        %2089 = vmatprep.subr.mxu0 0.0
        %2090 = vmatpush1.xpose.msra.mxu0 0.0
        %2091 = vmatprep.subr.mxu0 0.0
        %2092 = vmatpush1.xpose.msra.mxu0 0.0
        %2093 = vmatprep.subr.mxu0 0.0
        %2094 = vmatpush1.xpose.msra.mxu0 0.0
        %2095 = vmatprep.subr.mxu0 0.0
        %2096 = vmatpush1.xpose.msra.mxu0 0.0
        %2097 = vmatprep.subr.mxu0 0.0
        %2098 = vmatpush1.xpose.msra.mxu0 0.0
        %2099 = vmatprep.subr.mxu0 0.0
        %2100 = vmatpush1.xpose.msra.mxu0 0.0
        %2101 = vmatprep.subr.mxu0 0.0
        %2102 = vmatpush1.xpose.msra.mxu0 0.0
        %2103 = vmatprep.subr.mxu0 0.0
        %2104 = vmatpush1.xpose.msra.mxu0 0.0
        %2105 = vmatprep.subr.mxu0 0.0
        %2106 = vmatpush1.xpose.msra.mxu0 0.0
        %2107 = vmatprep.subr.mxu0 0.0
        %2108 = vmatpush1.xpose.msra.mxu0 0.0
        %2109 = vmatprep.subr.mxu0 0.0
        %2110 = vmatpush1.xpose.msra.mxu0 0.0
        %2111 = vmatprep.subr.mxu0 0.0
        %2112 = vmatpush1.xpose.msra.mxu0 0.0
        %2113 = vmatprep.subr.mxu0 0.0
        %2114 = vmatpush1.xpose.msra.mxu0 0.0
        %2115 = vmatprep.subr.mxu0 0.0
        %2116 = vmatpush1.xpose.msra.mxu0 0.0
        %2117 = vmatprep.subr.mxu0 0.0
        %2118 = vmatpush1.xpose.msra.mxu0 0.0
        %2119 = vmatprep.subr.mxu0 0.0
        %2120 = vmatpush1.xpose.msra.mxu0 0.0
        %2121 = vmatprep.subr.mxu0 0.0
        %2122 = vmatpush1.xpose.msra.mxu0 0.0
        %2123 = vmatprep.subr.mxu0 0.0
        %2124 = vmatpush1.xpose.msra.mxu0 0.0
        %2125 = vmatprep.subr.mxu0 0.0
        %2126 = vmatpush1.xpose.msra.mxu0 0.0
        %2127 = vmatprep.mubr.f32.mxu0 0.0
        %2128 = vmatmul.mubr.f32.gmra.mrb[0].mxu0 %v2062
        %v2129 = vpop.f32.mrb[0].mxu0
        %v2130 = vadd.f32 0.0, %v2129
        %v2131 = vpop.f32.mrb[0].mxu0
        %2132 = vdwg.mxu0
        %v2133 = vsel %vm1422, %v2130, -inf
        %2134 = vmax.xlane.f32.xlu0 %v2133
        %v2135 = vpop.xlane.xlu0 %2134
        %v2136 = vsub.f32 %v2130, %v2135
        %v2137 = vmul.f32 %v2136, 1.442695
        %v2138 = vpow.pop %v2137
        %v2139 = vsel %vm1422, %v2138, 0.0
        %2140 = vadd.xlane.f32.xlu0 %v2139
        %v2141 = vpop.xlane.xlu0 %2140
        %v2142 = vrcp.pop %v2141
        %v2143 = vmul.f32 %v2138, %v2142
        %v2144 = vmul.f32 %v1329, %v1341
        %v2146 = vsel %vm1422, %v2143, 0
        %2148 = vmatprep.subr.mxu0 0.0
        %2149 = vmatpush1.msra.mxu0 %v2144
        %2150 = vmatprep.subr.mxu0 0.0
        %2151 = vmatpush1.msra.mxu0 0.0
        %2152 = vmatprep.subr.mxu0 0.0
        %2153 = vmatpush1.msra.mxu0 0.0
        %2154 = vmatprep.subr.mxu0 0.0
        %2155 = vmatpush1.msra.mxu0 0.0
        %2156 = vmatprep.subr.mxu0 0.0
        %2157 = vmatpush1.msra.mxu0 0.0
        %2158 = vmatprep.subr.mxu0 0.0
        %2159 = vmatpush1.msra.mxu0 0.0
        %2160 = vmatprep.subr.mxu0 0.0
        %2161 = vmatpush1.msra.mxu0 0.0
        %2162 = vmatprep.subr.mxu0 0.0
        %2163 = vmatpush1.msra.mxu0 0.0
        %2164 = vmatprep.subr.mxu0 0.0
        %2165 = vmatpush1.msra.mxu0 0.0
        %2166 = vmatprep.subr.mxu0 0.0
        %2167 = vmatpush1.msra.mxu0 0.0
        %2168 = vmatprep.subr.mxu0 0.0
        %2169 = vmatpush1.msra.mxu0 0.0
        %2170 = vmatprep.subr.mxu0 0.0
        %2171 = vmatpush1.msra.mxu0 0.0
        %2172 = vmatprep.subr.mxu0 0.0
        %2173 = vmatpush1.msra.mxu0 0.0
        %2174 = vmatprep.subr.mxu0 0.0
        %2175 = vmatpush1.msra.mxu0 0.0
        %2176 = vmatprep.subr.mxu0 0.0
        %2177 = vmatpush1.msra.mxu0 0.0
        %2178 = vmatprep.subr.mxu0 0.0
        %2179 = vmatpush1.msra.mxu0 0.0
        %2180 = vmatprep.subr.mxu0 0.0
        %2181 = vmatpush1.msra.mxu0 0.0
        %2182 = vmatprep.subr.mxu0 0.0
        %2183 = vmatpush1.msra.mxu0 0.0
        %2184 = vmatprep.subr.mxu0 0.0
        %2185 = vmatpush1.msra.mxu0 0.0
        %2186 = vmatprep.subr.mxu0 0.0
        %2187 = vmatpush1.msra.mxu0 0.0
        %2188 = vmatprep.subr.mxu0 0.0
        %2189 = vmatpush1.msra.mxu0 0.0
        %2190 = vmatprep.subr.mxu0 0.0
        %2191 = vmatpush1.msra.mxu0 0.0
        %2192 = vmatprep.subr.mxu0 0.0
        %2193 = vmatpush1.msra.mxu0 0.0
        %2194 = vmatprep.subr.mxu0 0.0
        %2195 = vmatpush1.msra.mxu0 0.0
        %2196 = vmatprep.subr.mxu0 0.0
        %2197 = vmatpush1.msra.mxu0 0.0
        %2198 = vmatprep.subr.mxu0 0.0
        %2199 = vmatpush1.msra.mxu0 0.0
        %2200 = vmatprep.subr.mxu0 0.0
        %2201 = vmatpush1.msra.mxu0 0.0
        %2202 = vmatprep.subr.mxu0 0.0
        %2203 = vmatpush1.msra.mxu0 0.0
        %2204 = vmatprep.subr.mxu0 0.0
        %2205 = vmatpush1.msra.mxu0 0.0
        %2206 = vmatprep.subr.mxu0 0.0
        %2207 = vmatpush1.msra.mxu0 0.0
        %2208 = vmatprep.subr.mxu0 0.0
        %2209 = vmatpush1.msra.mxu0 0.0
        %2210 = vmatprep.subr.mxu0 0.0
        %2211 = vmatpush1.msra.mxu0 0.0
        %2212 = vmatprep.mubr.f32.mxu0 0.0
        %2213 = vmatmul.mubr.f32.gmra.mrb[0].mxu0 %v2146
        %v2214 = vpop.f32.mrb[0].mxu0
        %v2215 = vadd.f32 0.0, %v2214
        %v2216 = vpop.f32.mrb[0].mxu0
        %2217 = vdwg.mxu0
        %v2219 = vsel %vm1422, %v2060, 0
        %2221 = vmatprep.subr.mxu0 0.0
        %2222 = vmatpush1.msra.mxu0 %v2061
        %2223 = vmatprep.subr.mxu0 0.0
        %2224 = vmatpush1.msra.mxu0 0.0
        %2225 = vmatprep.subr.mxu0 0.0
        %2226 = vmatpush1.msra.mxu0 0.0
        %2227 = vmatprep.subr.mxu0 0.0
        %2228 = vmatpush1.msra.mxu0 0.0
        %2229 = vmatprep.subr.mxu0 0.0
        %2230 = vmatpush1.msra.mxu0 0.0
        %2231 = vmatprep.subr.mxu0 0.0
        %2232 = vmatpush1.msra.mxu0 0.0
        %2233 = vmatprep.subr.mxu0 0.0
        %2234 = vmatpush1.msra.mxu0 0.0
        %2235 = vmatprep.subr.mxu0 0.0
        %2236 = vmatpush1.msra.mxu0 0.0
        %2237 = vmatprep.subr.mxu0 0.0
        %2238 = vmatpush1.msra.mxu0 0.0
        %2239 = vmatprep.subr.mxu0 0.0
        %2240 = vmatpush1.msra.mxu0 0.0
        %2241 = vmatprep.subr.mxu0 0.0
        %2242 = vmatpush1.msra.mxu0 0.0
        %2243 = vmatprep.subr.mxu0 0.0
        %2244 = vmatpush1.msra.mxu0 0.0
        %2245 = vmatprep.subr.mxu0 0.0
        %2246 = vmatpush1.msra.mxu0 0.0
        %2247 = vmatprep.subr.mxu0 0.0
        %2248 = vmatpush1.msra.mxu0 0.0
        %2249 = vmatprep.subr.mxu0 0.0
        %2250 = vmatpush1.msra.mxu0 0.0
        %2251 = vmatprep.subr.mxu0 0.0
        %2252 = vmatpush1.msra.mxu0 0.0
        %2253 = vmatprep.subr.mxu0 0.0
        %2254 = vmatpush1.msra.mxu0 0.0
        %2255 = vmatprep.subr.mxu0 0.0
        %2256 = vmatpush1.msra.mxu0 0.0
        %2257 = vmatprep.subr.mxu0 0.0
        %2258 = vmatpush1.msra.mxu0 0.0
        %2259 = vmatprep.subr.mxu0 0.0
        %2260 = vmatpush1.msra.mxu0 0.0
        %2261 = vmatprep.subr.mxu0 0.0
        %2262 = vmatpush1.msra.mxu0 0.0
        %2263 = vmatprep.subr.mxu0 0.0
        %2264 = vmatpush1.msra.mxu0 0.0
        %2265 = vmatprep.subr.mxu0 0.0
        %2266 = vmatpush1.msra.mxu0 0.0
        %2267 = vmatprep.subr.mxu0 0.0
        %2268 = vmatpush1.msra.mxu0 0.0
        %2269 = vmatprep.subr.mxu0 0.0
        %2270 = vmatpush1.msra.mxu0 0.0
        %2271 = vmatprep.subr.mxu0 0.0
        %2272 = vmatpush1.msra.mxu0 0.0
        %2273 = vmatprep.subr.mxu0 0.0
        %2274 = vmatpush1.msra.mxu0 0.0
        %2275 = vmatprep.subr.mxu0 0.0
        %2276 = vmatpush1.msra.mxu0 0.0
        %2277 = vmatprep.subr.mxu0 0.0
        %2278 = vmatpush1.msra.mxu0 0.0
        %2279 = vmatprep.subr.mxu0 0.0
        %2280 = vmatpush1.msra.mxu0 0.0
        %2281 = vmatprep.subr.mxu0 0.0
        %2282 = vmatpush1.msra.mxu0 0.0
        %2283 = vmatprep.subr.mxu0 0.0
        %2284 = vmatpush1.msra.mxu0 0.0
        %2285 = vmatprep.mubr.f32.mxu0 0.0
        %2286 = vmatmul.mubr.f32.gmra.mrb[0].mxu0 %v2219
        %v2287 = vpop.f32.mrb[0].mxu0
        %v2288 = vadd.f32 %v2215, %v2287
        %v2289 = vpop.f32.mrb[0].mxu0
        %2290 = vdwg.mxu0
        %v2291 = vmul.f32 %v1135, %v1346
        %2292 = vmatprep.subr.mxu0 0.0
        %2293 = vmatpush1.xpose.msra.mxu0 %v1231
        %2294 = vmatprep.subr.mxu0 0.0
        %2295 = vmatpush1.xpose.msra.mxu0 0.0
        %2296 = vmatprep.subr.mxu0 0.0
        %2297 = vmatpush1.xpose.msra.mxu0 0.0
        %2298 = vmatprep.subr.mxu0 0.0
        %2299 = vmatpush1.xpose.msra.mxu0 0.0
        %2300 = vmatprep.subr.mxu0 0.0
        %2301 = vmatpush1.xpose.msra.mxu0 0.0
        %2302 = vmatprep.subr.mxu0 0.0
        %2303 = vmatpush1.xpose.msra.mxu0 0.0
        %2304 = vmatprep.subr.mxu0 0.0
        %2305 = vmatpush1.xpose.msra.mxu0 0.0
        %2306 = vmatprep.subr.mxu0 0.0
        %2307 = vmatpush1.xpose.msra.mxu0 0.0
        %2308 = vmatprep.subr.mxu0 0.0
        %2309 = vmatpush1.xpose.msra.mxu0 0.0
        %2310 = vmatprep.subr.mxu0 0.0
        %2311 = vmatpush1.xpose.msra.mxu0 0.0
        %2312 = vmatprep.subr.mxu0 0.0
        %2313 = vmatpush1.xpose.msra.mxu0 0.0
        %2314 = vmatprep.subr.mxu0 0.0
        %2315 = vmatpush1.xpose.msra.mxu0 0.0
        %2316 = vmatprep.subr.mxu0 0.0
        %2317 = vmatpush1.xpose.msra.mxu0 0.0
        %2318 = vmatprep.subr.mxu0 0.0
        %2319 = vmatpush1.xpose.msra.mxu0 0.0
        %2320 = vmatprep.subr.mxu0 0.0
        %2321 = vmatpush1.xpose.msra.mxu0 0.0
        %2322 = vmatprep.subr.mxu0 0.0
        %2323 = vmatpush1.xpose.msra.mxu0 0.0
        %2324 = vmatprep.subr.mxu0 0.0
        %2325 = vmatpush1.xpose.msra.mxu0 0.0
        %2326 = vmatprep.subr.mxu0 0.0
        %2327 = vmatpush1.xpose.msra.mxu0 0.0
        %2328 = vmatprep.subr.mxu0 0.0
        %2329 = vmatpush1.xpose.msra.mxu0 0.0
        %2330 = vmatprep.subr.mxu0 0.0
        %2331 = vmatpush1.xpose.msra.mxu0 0.0
        %2332 = vmatprep.subr.mxu0 0.0
        %2333 = vmatpush1.xpose.msra.mxu0 0.0
        %2334 = vmatprep.subr.mxu0 0.0
        %2335 = vmatpush1.xpose.msra.mxu0 0.0
        %2336 = vmatprep.subr.mxu0 0.0
        %2337 = vmatpush1.xpose.msra.mxu0 0.0
        %2338 = vmatprep.subr.mxu0 0.0
        %2339 = vmatpush1.xpose.msra.mxu0 0.0
        %2340 = vmatprep.subr.mxu0 0.0
        %2341 = vmatpush1.xpose.msra.mxu0 0.0
        %2342 = vmatprep.subr.mxu0 0.0
        %2343 = vmatpush1.xpose.msra.mxu0 0.0
        %2344 = vmatprep.subr.mxu0 0.0
        %2345 = vmatpush1.xpose.msra.mxu0 0.0
        %2346 = vmatprep.subr.mxu0 0.0
        %2347 = vmatpush1.xpose.msra.mxu0 0.0
        %2348 = vmatprep.subr.mxu0 0.0
        %2349 = vmatpush1.xpose.msra.mxu0 0.0
        %2350 = vmatprep.subr.mxu0 0.0
        %2351 = vmatpush1.xpose.msra.mxu0 0.0
        %2352 = vmatprep.subr.mxu0 0.0
        %2353 = vmatpush1.xpose.msra.mxu0 0.0
        %2354 = vmatprep.subr.mxu0 0.0
        %2355 = vmatpush1.xpose.msra.mxu0 0.0
        %2356 = vmatprep.mubr.f32.mxu0 0.0
        %2357 = vmatmul.mubr.f32.gmra.mrb[0].mxu0 %v2291
        %v2358 = vpop.f32.mrb[0].mxu0
        %v2359 = vadd.f32 0.0, %v2358
        %v2360 = vpop.f32.mrb[0].mxu0
        %2361 = vdwg.mxu0
        %v2362 = vsel %vm1422, %v2359, -inf
        %2363 = vmax.xlane.f32.xlu0 %v2362
        %v2364 = vpop.xlane.xlu0 %2363
        %v2365 = vsub.f32 %v2359, %v2364
        %v2366 = vmul.f32 %v2365, 1.442695
        %v2367 = vpow.pop %v2366
        %v2368 = vsel %vm1422, %v2367, 0.0
        %2369 = vadd.xlane.f32.xlu0 %v2368
        %v2370 = vpop.xlane.xlu0 %2369
        %v2371 = vrcp.pop %v2370
        %v2372 = vmul.f32 %v2367, %v2371
        %v2373 = vmul.f32 %v1329, %v1346
        %v2375 = vsel %vm1422, %v2372, 0
        %2377 = vmatprep.subr.mxu0 0.0
        %2378 = vmatpush1.msra.mxu0 %v2373
        %2379 = vmatprep.subr.mxu0 0.0
        %2380 = vmatpush1.msra.mxu0 0.0
        %2381 = vmatprep.subr.mxu0 0.0
        %2382 = vmatpush1.msra.mxu0 0.0
        %2383 = vmatprep.subr.mxu0 0.0
        %2384 = vmatpush1.msra.mxu0 0.0
        %2385 = vmatprep.subr.mxu0 0.0
        %2386 = vmatpush1.msra.mxu0 0.0
        %2387 = vmatprep.subr.mxu0 0.0
        %2388 = vmatpush1.msra.mxu0 0.0
        %2389 = vmatprep.subr.mxu0 0.0
        %2390 = vmatpush1.msra.mxu0 0.0
        %2391 = vmatprep.subr.mxu0 0.0
        %2392 = vmatpush1.msra.mxu0 0.0
        %2393 = vmatprep.subr.mxu0 0.0
        %2394 = vmatpush1.msra.mxu0 0.0
        %2395 = vmatprep.subr.mxu0 0.0
        %2396 = vmatpush1.msra.mxu0 0.0
        %2397 = vmatprep.subr.mxu0 0.0
        %2398 = vmatpush1.msra.mxu0 0.0
        %2399 = vmatprep.subr.mxu0 0.0
        %2400 = vmatpush1.msra.mxu0 0.0
        %2401 = vmatprep.subr.mxu0 0.0
        %2402 = vmatpush1.msra.mxu0 0.0
        %2403 = vmatprep.subr.mxu0 0.0
        %2404 = vmatpush1.msra.mxu0 0.0
        %2405 = vmatprep.subr.mxu0 0.0
        %2406 = vmatpush1.msra.mxu0 0.0
        %2407 = vmatprep.subr.mxu0 0.0
        %2408 = vmatpush1.msra.mxu0 0.0
        %2409 = vmatprep.subr.mxu0 0.0
        %2410 = vmatpush1.msra.mxu0 0.0
        %2411 = vmatprep.subr.mxu0 0.0
        %2412 = vmatpush1.msra.mxu0 0.0
        %2413 = vmatprep.subr.mxu0 0.0
        %2414 = vmatpush1.msra.mxu0 0.0
        %2415 = vmatprep.subr.mxu0 0.0
        %2416 = vmatpush1.msra.mxu0 0.0
        %2417 = vmatprep.subr.mxu0 0.0
        %2418 = vmatpush1.msra.mxu0 0.0
        %2419 = vmatprep.subr.mxu0 0.0
        %2420 = vmatpush1.msra.mxu0 0.0
        %2421 = vmatprep.subr.mxu0 0.0
        %2422 = vmatpush1.msra.mxu0 0.0
        %2423 = vmatprep.subr.mxu0 0.0
        %2424 = vmatpush1.msra.mxu0 0.0
        %2425 = vmatprep.subr.mxu0 0.0
        %2426 = vmatpush1.msra.mxu0 0.0
        %2427 = vmatprep.subr.mxu0 0.0
        %2428 = vmatpush1.msra.mxu0 0.0
        %2429 = vmatprep.subr.mxu0 0.0
        %2430 = vmatpush1.msra.mxu0 0.0
        %2431 = vmatprep.subr.mxu0 0.0
        %2432 = vmatpush1.msra.mxu0 0.0
        %2433 = vmatprep.subr.mxu0 0.0
        %2434 = vmatpush1.msra.mxu0 0.0
        %2435 = vmatprep.subr.mxu0 0.0
        %2436 = vmatpush1.msra.mxu0 0.0
        %2437 = vmatprep.subr.mxu0 0.0
        %2438 = vmatpush1.msra.mxu0 0.0
        %2439 = vmatprep.subr.mxu0 0.0
        %2440 = vmatpush1.msra.mxu0 0.0
        %2441 = vmatprep.mubr.f32.mxu0 0.0
        %2442 = vmatmul.mubr.f32.gmra.mrb[0].mxu0 %v2375
        %v2443 = vpop.f32.mrb[0].mxu0
        %v2444 = vadd.f32 0.0, %v2443
        %v2445 = vpop.f32.mrb[0].mxu0
        %2446 = vdwg.mxu0
        %v2447 = vadd.f32 %v2288, %v2444
        %v2448 = vmul.f32 %v1135, %v1350
        %2449 = vmatprep.subr.mxu0 0.0
        %2450 = vmatpush1.xpose.msra.mxu0 %v1231
        %2451 = vmatprep.subr.mxu0 0.0
        %2452 = vmatpush1.xpose.msra.mxu0 0.0
        %2453 = vmatprep.subr.mxu0 0.0
        %2454 = vmatpush1.xpose.msra.mxu0 0.0
        %2455 = vmatprep.subr.mxu0 0.0
        %2456 = vmatpush1.xpose.msra.mxu0 0.0
        %2457 = vmatprep.subr.mxu0 0.0
        %2458 = vmatpush1.xpose.msra.mxu0 0.0
        %2459 = vmatprep.subr.mxu0 0.0
        %2460 = vmatpush1.xpose.msra.mxu0 0.0
        %2461 = vmatprep.subr.mxu0 0.0
        %2462 = vmatpush1.xpose.msra.mxu0 0.0
        %2463 = vmatprep.subr.mxu0 0.0
        %2464 = vmatpush1.xpose.msra.mxu0 0.0
        %2465 = vmatprep.subr.mxu0 0.0
        %2466 = vmatpush1.xpose.msra.mxu0 0.0
        %2467 = vmatprep.subr.mxu0 0.0
        %2468 = vmatpush1.xpose.msra.mxu0 0.0
        %2469 = vmatprep.subr.mxu0 0.0
        %2470 = vmatpush1.xpose.msra.mxu0 0.0
        %2471 = vmatprep.subr.mxu0 0.0
        %2472 = vmatpush1.xpose.msra.mxu0 0.0
        %2473 = vmatprep.subr.mxu0 0.0
        %2474 = vmatpush1.xpose.msra.mxu0 0.0
        %2475 = vmatprep.subr.mxu0 0.0
        %2476 = vmatpush1.xpose.msra.mxu0 0.0
        %2477 = vmatprep.subr.mxu0 0.0
        %2478 = vmatpush1.xpose.msra.mxu0 0.0
        %2479 = vmatprep.subr.mxu0 0.0
        %2480 = vmatpush1.xpose.msra.mxu0 0.0
        %2481 = vmatprep.subr.mxu0 0.0
        %2482 = vmatpush1.xpose.msra.mxu0 0.0
        %2483 = vmatprep.subr.mxu0 0.0
        %2484 = vmatpush1.xpose.msra.mxu0 0.0
        %2485 = vmatprep.subr.mxu0 0.0
        %2486 = vmatpush1.xpose.msra.mxu0 0.0
        %2487 = vmatprep.subr.mxu0 0.0
        %2488 = vmatpush1.xpose.msra.mxu0 0.0
        %2489 = vmatprep.subr.mxu0 0.0
        %2490 = vmatpush1.xpose.msra.mxu0 0.0
        %2491 = vmatprep.subr.mxu0 0.0
        %2492 = vmatpush1.xpose.msra.mxu0 0.0
        %2493 = vmatprep.subr.mxu0 0.0
        %2494 = vmatpush1.xpose.msra.mxu0 0.0
        %2495 = vmatprep.subr.mxu0 0.0
        %2496 = vmatpush1.xpose.msra.mxu0 0.0
        %2497 = vmatprep.subr.mxu0 0.0
        %2498 = vmatpush1.xpose.msra.mxu0 0.0
        %2499 = vmatprep.subr.mxu0 0.0
        %2500 = vmatpush1.xpose.msra.mxu0 0.0
        %2501 = vmatprep.subr.mxu0 0.0
        %2502 = vmatpush1.xpose.msra.mxu0 0.0
        %2503 = vmatprep.subr.mxu0 0.0
        %2504 = vmatpush1.xpose.msra.mxu0 0.0
        %2505 = vmatprep.subr.mxu0 0.0
        %2506 = vmatpush1.xpose.msra.mxu0 0.0
        %2507 = vmatprep.subr.mxu0 0.0
        %2508 = vmatpush1.xpose.msra.mxu0 0.0
        %2509 = vmatprep.subr.mxu0 0.0
        %2510 = vmatpush1.xpose.msra.mxu0 0.0
        %2511 = vmatprep.subr.mxu0 0.0
        %2512 = vmatpush1.xpose.msra.mxu0 0.0
        %2513 = vmatprep.mubr.f32.mxu0 0.0
        %2514 = vmatmul.mubr.f32.gmra.mrb[0].mxu0 %v2448
        %v2515 = vpop.f32.mrb[0].mxu0
        %v2516 = vadd.f32 0.0, %v2515
        %v2517 = vpop.f32.mrb[0].mxu0
        %2518 = vdwg.mxu0
        %v2519 = vsel %vm1422, %v2516, -inf
        %2520 = vmax.xlane.f32.xlu0 %v2519
        %v2521 = vpop.xlane.xlu0 %2520
        %v2522 = vsub.f32 %v2516, %v2521
        %v2523 = vmul.f32 %v2522, 1.442695
        %v2524 = vpow.pop %v2523
        %v2525 = vsel %vm1422, %v2524, 0.0
        %2526 = vadd.xlane.f32.xlu0 %v2525
        %v2527 = vpop.xlane.xlu0 %2526
        %v2528 = vrcp.pop %v2527
        %v2529 = vmul.f32 %v2524, %v2528
        %v2530 = vmul.f32 %v1329, %v1350
        %v2532 = vsel %vm1422, %v2529, 0
        %2534 = vmatprep.subr.mxu0 0.0
        %2535 = vmatpush1.msra.mxu0 %v2530
        %2536 = vmatprep.subr.mxu0 0.0
        %2537 = vmatpush1.msra.mxu0 0.0
        %2538 = vmatprep.subr.mxu0 0.0
        %2539 = vmatpush1.msra.mxu0 0.0
        %2540 = vmatprep.subr.mxu0 0.0
        %2541 = vmatpush1.msra.mxu0 0.0
        %2542 = vmatprep.subr.mxu0 0.0
        %2543 = vmatpush1.msra.mxu0 0.0
        %2544 = vmatprep.subr.mxu0 0.0
        %2545 = vmatpush1.msra.mxu0 0.0
        %2546 = vmatprep.subr.mxu0 0.0
        %2547 = vmatpush1.msra.mxu0 0.0
        %2548 = vmatprep.subr.mxu0 0.0
        %2549 = vmatpush1.msra.mxu0 0.0
        %2550 = vmatprep.subr.mxu0 0.0
        %2551 = vmatpush1.msra.mxu0 0.0
        %2552 = vmatprep.subr.mxu0 0.0
        %2553 = vmatpush1.msra.mxu0 0.0
        %2554 = vmatprep.subr.mxu0 0.0
        %2555 = vmatpush1.msra.mxu0 0.0
        %2556 = vmatprep.subr.mxu0 0.0
        %2557 = vmatpush1.msra.mxu0 0.0
        %2558 = vmatprep.subr.mxu0 0.0
        %2559 = vmatpush1.msra.mxu0 0.0
        %2560 = vmatprep.subr.mxu0 0.0
        %2561 = vmatpush1.msra.mxu0 0.0
        %2562 = vmatprep.subr.mxu0 0.0
        %2563 = vmatpush1.msra.mxu0 0.0
        %2564 = vmatprep.subr.mxu0 0.0
        %2565 = vmatpush1.msra.mxu0 0.0
        %2566 = vmatprep.subr.mxu0 0.0
        %2567 = vmatpush1.msra.mxu0 0.0
        %2568 = vmatprep.subr.mxu0 0.0
        %2569 = vmatpush1.msra.mxu0 0.0
        %2570 = vmatprep.subr.mxu0 0.0
        %2571 = vmatpush1.msra.mxu0 0.0
        %2572 = vmatprep.subr.mxu0 0.0
        %2573 = vmatpush1.msra.mxu0 0.0
        %2574 = vmatprep.subr.mxu0 0.0
        %2575 = vmatpush1.msra.mxu0 0.0
        %2576 = vmatprep.subr.mxu0 0.0
        %2577 = vmatpush1.msra.mxu0 0.0
        %2578 = vmatprep.subr.mxu0 0.0
        %2579 = vmatpush1.msra.mxu0 0.0
        %2580 = vmatprep.subr.mxu0 0.0
        %2581 = vmatpush1.msra.mxu0 0.0
        %2582 = vmatprep.subr.mxu0 0.0
        %2583 = vmatpush1.msra.mxu0 0.0
        %2584 = vmatprep.subr.mxu0 0.0
        %2585 = vmatpush1.msra.mxu0 0.0
        %2586 = vmatprep.subr.mxu0 0.0
        %2587 = vmatpush1.msra.mxu0 0.0
        %2588 = vmatprep.subr.mxu0 0.0
        %2589 = vmatpush1.msra.mxu0 0.0
        %2590 = vmatprep.subr.mxu0 0.0
        %2591 = vmatpush1.msra.mxu0 0.0
        %2592 = vmatprep.subr.mxu0 0.0
        %2593 = vmatpush1.msra.mxu0 0.0
        %2594 = vmatprep.subr.mxu0 0.0
        %2595 = vmatpush1.msra.mxu0 0.0
        %2596 = vmatprep.subr.mxu0 0.0
        %2597 = vmatpush1.msra.mxu0 0.0
        %2598 = vmatprep.mubr.f32.mxu0 0.0
        %2599 = vmatmul.mubr.f32.gmra.mrb[0].mxu0 %v2532
        %v2600 = vpop.f32.mrb[0].mxu0
        %v2601 = vadd.f32 0.0, %v2600
        %v2602 = vpop.f32.mrb[0].mxu0
        %2603 = vdwg.mxu0
        %v2604 = vadd.f32 %v2447, %v2601
        %2605 = vst [vmem:[#allocation3 + $0x8] sm:$0xff] %v2604
        %v2606 = vld [vmem:[#allocation3] sm:$0xff]
        %v2607 = vld [vmem:[#allocation3 + $0x8] sm:$0xff]
        %v2608 = vld [vmem:[%s890] sm:$0xff]
        %v2609 = vld [vmem:[%s890 + $0x8] sm:$0xff]
        %v2610 = vld [vmem:[%s890 + $0x10] sm:$0xff]
        %v2611 = vld [vmem:[%s890 + $0x18] sm:$0xff]
        %v2612 = vld [vmem:[%s890 + $0x20] sm:$0xff]
        %v2613 = vld [vmem:[%s890 + $0x28] sm:$0xff]
        %v2614 = vld [vmem:[%s890 + $0x30] sm:$0xff]
        %v2615 = vld [vmem:[%s890 + $0x38] sm:$0xff]
        %v2616 = vld [vmem:[%s890 + $0x40] sm:$0xff]
        %v2617 = vld [vmem:[%s890 + $0x48] sm:$0xff]
        %v2618 = vld [vmem:[%s890 + $0x50] sm:$0xff]
        %v2619 = vld [vmem:[%s890 + $0x58] sm:$0xff]
        %v2620 = vld [vmem:[%s890 + $0x60] sm:$0xff]
        %v2621 = vld [vmem:[%s890 + $0x68] sm:$0xff]
        %v2622 = vld [vmem:[%s890 + $0x70] sm:$0xff]
        %v2623 = vld [vmem:[%s890 + $0x78] sm:$0xff]
        %v2624 = vld [vmem:[%s893] sm:$0x1]
        %v2626 = vlaneseq
        %v2627 = vshrl.u32 %v2626, 7
        %v2628 = vsub.s32 0, %v2627
        %v2629 = vrot.slane %v2624, %v2628
        %2631 = vmatprep.subr.mxu0 0.0
        %2632 = vmatpush1.msra.mxu0 %v2608
        %2633 = vmatprep.subr.mxu0 0.0
        %2634 = vmatpush1.msra.mxu0 %v2609
        %2635 = vmatprep.subr.mxu0 0.0
        %2636 = vmatpush1.msra.mxu0 %v2610
        %2637 = vmatprep.subr.mxu0 0.0
        %2638 = vmatpush1.msra.mxu0 %v2611
        %2639 = vmatprep.subr.mxu0 0.0
        %2640 = vmatpush1.msra.mxu0 %v2612
        %2641 = vmatprep.subr.mxu0 0.0
        %2642 = vmatpush1.msra.mxu0 %v2613
        %2643 = vmatprep.subr.mxu0 0.0
        %2644 = vmatpush1.msra.mxu0 %v2614
        %2645 = vmatprep.subr.mxu0 0.0
        %2646 = vmatpush1.msra.mxu0 %v2615
        %2647 = vmatprep.subr.mxu0 0.0
        %2648 = vmatpush1.msra.mxu0 %v2616
        %2649 = vmatprep.subr.mxu0 0.0
        %2650 = vmatpush1.msra.mxu0 %v2617
        %2651 = vmatprep.subr.mxu0 0.0
        %2652 = vmatpush1.msra.mxu0 %v2618
        %2653 = vmatprep.subr.mxu0 0.0
        %2654 = vmatpush1.msra.mxu0 %v2619
        %2655 = vmatprep.subr.mxu0 0.0
        %2656 = vmatpush1.msra.mxu0 %v2620
        %2657 = vmatprep.subr.mxu0 0.0
        %2658 = vmatpush1.msra.mxu0 %v2621
        %2659 = vmatprep.subr.mxu0 0.0
        %2660 = vmatpush1.msra.mxu0 %v2622
        %2661 = vmatprep.subr.mxu0 0.0
        %2662 = vmatpush1.msra.mxu0 %v2623
        %2663 = vmatprep.subr.mxu0 0.0
        %2664 = vmatpush1.msra.mxu0 0.0
        %2665 = vmatprep.subr.mxu0 0.0
        %2666 = vmatpush1.msra.mxu0 0.0
        %2667 = vmatprep.subr.mxu0 0.0
        %2668 = vmatpush1.msra.mxu0 0.0
        %2669 = vmatprep.subr.mxu0 0.0
        %2670 = vmatpush1.msra.mxu0 0.0
        %2671 = vmatprep.subr.mxu0 0.0
        %2672 = vmatpush1.msra.mxu0 0.0
        %2673 = vmatprep.subr.mxu0 0.0
        %2674 = vmatpush1.msra.mxu0 0.0
        %2675 = vmatprep.subr.mxu0 0.0
        %2676 = vmatpush1.msra.mxu0 0.0
        %2677 = vmatprep.subr.mxu0 0.0
        %2678 = vmatpush1.msra.mxu0 0.0
        %2679 = vmatprep.subr.mxu0 0.0
        %2680 = vmatpush1.msra.mxu0 0.0
        %2681 = vmatprep.subr.mxu0 0.0
        %2682 = vmatpush1.msra.mxu0 0.0
        %2683 = vmatprep.subr.mxu0 0.0
        %2684 = vmatpush1.msra.mxu0 0.0
        %2685 = vmatprep.subr.mxu0 0.0
        %2686 = vmatpush1.msra.mxu0 0.0
        %2687 = vmatprep.subr.mxu0 0.0
        %2688 = vmatpush1.msra.mxu0 0.0
        %2689 = vmatprep.subr.mxu0 0.0
        %2690 = vmatpush1.msra.mxu0 0.0
        %2691 = vmatprep.subr.mxu0 0.0
        %2692 = vmatpush1.msra.mxu0 0.0
        %2693 = vmatprep.subr.mxu0 0.0
        %2694 = vmatpush1.msra.mxu0 0.0
        %2695 = vmatprep.mubr.f32.mxu0 0.0
        %2696 = vmatmul.mubr.f32.gmra.mrb[0].mxu0 %v2606
        %v2697 = vpop.f32.mrb[0].mxu0
        %v2698 = vadd.f32 %v2629, %v2697
        %v2699 = vpop.f32.mrb[0].mxu0
        %2700 = vmatprep.mubr.f32.mxu0 0.0
        %2701 = vmatmul.mubr.f32.gmra.mrb[0].mxu0 %v2607
        %v2702 = vpop.f32.mrb[0].mxu0
        %v2703 = vadd.f32 %v2629, %v2702
        %v2704 = vpop.f32.mrb[0].mxu0
        %2705 = vdwg.mxu0
        %v2706 = vadd.f32 %v1029, %v2698
        %v2707 = vadd.f32 %v1030, %v2703
        %v2708 = vld [vmem:[%s896] sm:$0x1]
        %v2709 = vld [vmem:[%s899] sm:$0x1]
        %v2710 = vmul.f32 %v2706, %v1035
        %v2711 = vmul.f32 %v2707, %v1035
        %2712 = vadd.xlane.f32.xlu0 %v2710
        %v2713 = vpop.xlane.xlu0 %2712
        %2714 = vadd.xlane.f32.xlu0 %v2711
        %v2715 = vpop.xlane.xlu0 %2714
        %v2716 = vmul.f32 %v2713, 0.03125
        %v2717 = vmul.f32 %v2715, 0.03125
        %v2718 = vsub.f32 %v2706, %v2716
        %v2719 = vsub.f32 %v2707, %v2717
        %v2720 = vmul.f32 %v2718, %v1035
        %v2721 = vmul.f32 %v2719, %v1035
        %v2722 = vmul.f32 %v2720, %v2720
        %v2723 = vmul.f32 %v2721, %v2721
        %2724 = vadd.xlane.f32.xlu0 %v2722
        %v2725 = vpop.xlane.xlu0 %2724
        %2726 = vadd.xlane.f32.xlu0 %v2723
        %v2727 = vpop.xlane.xlu0 %2726
        %v2728 = vmul.f32 %v2725, 0.03125
        %v2729 = vmul.f32 %v2727, 0.03125
        %v2730 = vadd.f32 %v2728, 1e-12
        %v2731 = vadd.f32 %v2729, 1e-12
        %v2732 = vrsqrt.pop %v2730
        %v2733 = vrsqrt.pop %v2731
        %v2734 = vmul.f32 %v2720, %v2732
        %v2735 = vmul.f32 %v2721, %v2733
        %v2737 = vlaneseq
        %v2738 = vshrl.u32 %v2737, 7
        %v2739 = vsub.s32 0, %v2738
        %v2740 = vrot.slane %v2708, %v2739
        %v2742 = vmul.f32 %v2734, %v2740
        %v2743 = vmul.f32 %v2735, %v2740
        %v2745 = vlaneseq
        %v2746 = vshrl.u32 %v2745, 7
        %v2747 = vsub.s32 0, %v2746
        %v2748 = vrot.slane %v2709, %v2747
        %v2750 = vadd.f32 %v2742, %v2748
        %v2751 = vadd.f32 %v2743, %v2748
        %v2752 = vld [vmem:[%s904] sm:$0xff]
        %v2753 = vld [vmem:[%s904 + $0x8] sm:$0xff]
        %v2754 = vld [vmem:[%s904 + $0x10] sm:$0xff]
        %v2755 = vld [vmem:[%s904 + $0x18] sm:$0xff]
        %v2756 = vld [vmem:[%s904 + $0x20] sm:$0xff]
        %v2757 = vld [vmem:[%s904 + $0x28] sm:$0xff]
        %v2758 = vld [vmem:[%s904 + $0x30] sm:$0xff]
        %v2759 = vld [vmem:[%s904 + $0x38] sm:$0xff]
        %v2760 = vld [vmem:[%s904 + $0x40] sm:$0xff]
        %v2761 = vld [vmem:[%s904 + $0x48] sm:$0xff]
        %v2762 = vld [vmem:[%s904 + $0x50] sm:$0xff]
        %v2763 = vld [vmem:[%s904 + $0x58] sm:$0xff]
        %v2764 = vld [vmem:[%s904 + $0x60] sm:$0xff]
        %v2765 = vld [vmem:[%s904 + $0x68] sm:$0xff]
        %v2766 = vld [vmem:[%s904 + $0x70] sm:$0xff]
        %v2767 = vld [vmem:[%s904 + $0x78] sm:$0xff]
        %v2768 = vld [vmem:[%s907] sm:$0x1]
        %v2770 = vlaneseq
        %v2771 = vshrl.u32 %v2770, 7
        %v2772 = vsub.s32 0, %v2771
        %v2773 = vrot.slane %v2768, %v2772
        %2775 = vmatprep.subr.mxu0 0.0
        %2776 = vmatpush1.msra.mxu0 %v2752
        %2777 = vmatprep.subr.mxu0 0.0
        %2778 = vmatpush1.msra.mxu0 %v2753
        %2779 = vmatprep.subr.mxu0 0.0
        %2780 = vmatpush1.msra.mxu0 %v2754
        %2781 = vmatprep.subr.mxu0 0.0
        %2782 = vmatpush1.msra.mxu0 %v2755
        %2783 = vmatprep.subr.mxu0 0.0
        %2784 = vmatpush1.msra.mxu0 %v2756
        %2785 = vmatprep.subr.mxu0 0.0
        %2786 = vmatpush1.msra.mxu0 %v2757
        %2787 = vmatprep.subr.mxu0 0.0
        %2788 = vmatpush1.msra.mxu0 %v2758
        %2789 = vmatprep.subr.mxu0 0.0
        %2790 = vmatpush1.msra.mxu0 %v2759
        %2791 = vmatprep.subr.mxu0 0.0
        %2792 = vmatpush1.msra.mxu0 %v2760
        %2793 = vmatprep.subr.mxu0 0.0
        %2794 = vmatpush1.msra.mxu0 %v2761
        %2795 = vmatprep.subr.mxu0 0.0
        %2796 = vmatpush1.msra.mxu0 %v2762
        %2797 = vmatprep.subr.mxu0 0.0
        %2798 = vmatpush1.msra.mxu0 %v2763
        %2799 = vmatprep.subr.mxu0 0.0
        %2800 = vmatpush1.msra.mxu0 %v2764
        %2801 = vmatprep.subr.mxu0 0.0
        %2802 = vmatpush1.msra.mxu0 %v2765
        %2803 = vmatprep.subr.mxu0 0.0
        %2804 = vmatpush1.msra.mxu0 %v2766
        %2805 = vmatprep.subr.mxu0 0.0
        %2806 = vmatpush1.msra.mxu0 %v2767
        %2807 = vmatprep.subr.mxu0 0.0
        %2808 = vmatpush1.msra.mxu0 0.0
        %2809 = vmatprep.subr.mxu0 0.0
        %2810 = vmatpush1.msra.mxu0 0.0
        %2811 = vmatprep.subr.mxu0 0.0
        %2812 = vmatpush1.msra.mxu0 0.0
        %2813 = vmatprep.subr.mxu0 0.0
        %2814 = vmatpush1.msra.mxu0 0.0
        %2815 = vmatprep.subr.mxu0 0.0
        %2816 = vmatpush1.msra.mxu0 0.0
        %2817 = vmatprep.subr.mxu0 0.0
        %2818 = vmatpush1.msra.mxu0 0.0
        %2819 = vmatprep.subr.mxu0 0.0
        %2820 = vmatpush1.msra.mxu0 0.0
        %2821 = vmatprep.subr.mxu0 0.0
        %2822 = vmatpush1.msra.mxu0 0.0
        %2823 = vmatprep.subr.mxu0 0.0
        %2824 = vmatpush1.msra.mxu0 0.0
        %2825 = vmatprep.subr.mxu0 0.0
        %2826 = vmatpush1.msra.mxu0 0.0
        %2827 = vmatprep.subr.mxu0 0.0
        %2828 = vmatpush1.msra.mxu0 0.0
        %2829 = vmatprep.subr.mxu0 0.0
        %2830 = vmatpush1.msra.mxu0 0.0
        %2831 = vmatprep.subr.mxu0 0.0
        %2832 = vmatpush1.msra.mxu0 0.0
        %2833 = vmatprep.subr.mxu0 0.0
        %2834 = vmatpush1.msra.mxu0 0.0
        %2835 = vmatprep.subr.mxu0 0.0
        %2836 = vmatpush1.msra.mxu0 0.0
        %2837 = vmatprep.subr.mxu0 0.0
        %2838 = vmatpush1.msra.mxu0 0.0
        %2839 = vmatprep.mubr.f32.mxu0 0.0
        %2840 = vmatmul.mubr.f32.gmra.mrb[0].mxu0 %v2750
        %v2841 = vpop.f32.mrb[0].mxu0
        %v2842 = vadd.f32 %v2773, %v2841
        %v2843 = vpop.f32.mrb[0].mxu0
        %2844 = vmatprep.mubr.f32.mxu0 0.0
        %2845 = vmatmul.mubr.f32.gmra.mrb[0].mxu0 %v2751
        %v2846 = vpop.f32.mrb[0].mxu0
        %v2847 = vadd.f32 %v2773, %v2846
        %v2848 = vpop.f32.mrb[0].mxu0
        %2849 = vdwg.mxu0
        %v2850 = vmul.f32 %v2842, %v2842
        %v2851 = vmul.f32 %v2847, %v2847
        %v2852 = vmul.f32 %v2842, %v2850
        %v2853 = vmul.f32 %v2847, %v2851
        %v2854 = vmul.f32 %v2852, 0.044715
        %v2855 = vmul.f32 %v2853, 0.044715
        %v2856 = vadd.f32 %v2842, %v2854
        %v2857 = vadd.f32 %v2847, %v2855
        %v2858 = vmul.f32 %v2856, 0.7978846
        %v2859 = vmul.f32 %v2857, 0.7978846
        %v2860 = vtanh.pop %v2858
        %v2861 = vtanh.pop %v2859
        %v2862 = vadd.f32 %v2860, 1.0
        %v2863 = vadd.f32 %v2861, 1.0
        %v2864 = vmul.f32 %v2862, 0.5
        %v2865 = vmul.f32 %v2863, 0.5
        %v2866 = vmul.f32 %v2842, %v2864
        %v2867 = vmul.f32 %v2847, %v2865
        %v2868 = vld [vmem:[%s912] sm:$0xff]
        %v2869 = vld [vmem:[%s912 + $0x8] sm:$0xff]
        %v2870 = vld [vmem:[%s912 + $0x10] sm:$0xff]
        %v2871 = vld [vmem:[%s912 + $0x18] sm:$0xff]
        %v2872 = vld [vmem:[%s912 + $0x20] sm:$0xff]
        %v2873 = vld [vmem:[%s912 + $0x28] sm:$0xff]
        %v2874 = vld [vmem:[%s912 + $0x30] sm:$0xff]
        %v2875 = vld [vmem:[%s912 + $0x38] sm:$0xff]
        %v2876 = vld [vmem:[%s912 + $0x40] sm:$0xff]
        %v2877 = vld [vmem:[%s912 + $0x48] sm:$0xff]
        %v2878 = vld [vmem:[%s912 + $0x50] sm:$0xff]
        %v2879 = vld [vmem:[%s912 + $0x58] sm:$0xff]
        %v2880 = vld [vmem:[%s912 + $0x60] sm:$0xff]
        %v2881 = vld [vmem:[%s912 + $0x68] sm:$0xff]
        %v2882 = vld [vmem:[%s912 + $0x70] sm:$0xff]
        %v2883 = vld [vmem:[%s912 + $0x78] sm:$0xff]
        %v2884 = vld [vmem:[%s915] sm:$0x1]
        %v2886 = vlaneseq
        %v2887 = vshrl.u32 %v2886, 7
        %v2888 = vsub.s32 0, %v2887
        %v2889 = vrot.slane %v2884, %v2888
        %2891 = vmatprep.subr.mxu0 0.0
        %2892 = vmatpush1.msra.mxu0 %v2868
        %2893 = vmatprep.subr.mxu0 0.0
        %2894 = vmatpush1.msra.mxu0 %v2869
        %2895 = vmatprep.subr.mxu0 0.0
        %2896 = vmatpush1.msra.mxu0 %v2870
        %2897 = vmatprep.subr.mxu0 0.0
        %2898 = vmatpush1.msra.mxu0 %v2871
        %2899 = vmatprep.subr.mxu0 0.0
        %2900 = vmatpush1.msra.mxu0 %v2872
        %2901 = vmatprep.subr.mxu0 0.0
        %2902 = vmatpush1.msra.mxu0 %v2873
        %2903 = vmatprep.subr.mxu0 0.0
        %2904 = vmatpush1.msra.mxu0 %v2874
        %2905 = vmatprep.subr.mxu0 0.0
        %2906 = vmatpush1.msra.mxu0 %v2875
        %2907 = vmatprep.subr.mxu0 0.0
        %2908 = vmatpush1.msra.mxu0 %v2876
        %2909 = vmatprep.subr.mxu0 0.0
        %2910 = vmatpush1.msra.mxu0 %v2877
        %2911 = vmatprep.subr.mxu0 0.0
        %2912 = vmatpush1.msra.mxu0 %v2878
        %2913 = vmatprep.subr.mxu0 0.0
        %2914 = vmatpush1.msra.mxu0 %v2879
        %2915 = vmatprep.subr.mxu0 0.0
        %2916 = vmatpush1.msra.mxu0 %v2880
        %2917 = vmatprep.subr.mxu0 0.0
        %2918 = vmatpush1.msra.mxu0 %v2881
        %2919 = vmatprep.subr.mxu0 0.0
        %2920 = vmatpush1.msra.mxu0 %v2882
        %2921 = vmatprep.subr.mxu0 0.0
        %2922 = vmatpush1.msra.mxu0 %v2883
        %2923 = vmatprep.subr.mxu0 0.0
        %2924 = vmatpush1.msra.mxu0 0.0
        %2925 = vmatprep.subr.mxu0 0.0
        %2926 = vmatpush1.msra.mxu0 0.0
        %2927 = vmatprep.subr.mxu0 0.0
        %2928 = vmatpush1.msra.mxu0 0.0
        %2929 = vmatprep.subr.mxu0 0.0
        %2930 = vmatpush1.msra.mxu0 0.0
        %2931 = vmatprep.subr.mxu0 0.0
        %2932 = vmatpush1.msra.mxu0 0.0
        %2933 = vmatprep.subr.mxu0 0.0
        %2934 = vmatpush1.msra.mxu0 0.0
        %2935 = vmatprep.subr.mxu0 0.0
        %2936 = vmatpush1.msra.mxu0 0.0
        %2937 = vmatprep.subr.mxu0 0.0
        %2938 = vmatpush1.msra.mxu0 0.0
        %2939 = vmatprep.subr.mxu0 0.0
        %2940 = vmatpush1.msra.mxu0 0.0
        %2941 = vmatprep.subr.mxu0 0.0
        %2942 = vmatpush1.msra.mxu0 0.0
        %2943 = vmatprep.subr.mxu0 0.0
        %2944 = vmatpush1.msra.mxu0 0.0
        %2945 = vmatprep.subr.mxu0 0.0
        %2946 = vmatpush1.msra.mxu0 0.0
        %2947 = vmatprep.subr.mxu0 0.0
        %2948 = vmatpush1.msra.mxu0 0.0
        %2949 = vmatprep.subr.mxu0 0.0
        %2950 = vmatpush1.msra.mxu0 0.0
        %2951 = vmatprep.subr.mxu0 0.0
        %2952 = vmatpush1.msra.mxu0 0.0
        %2953 = vmatprep.subr.mxu0 0.0
        %2954 = vmatpush1.msra.mxu0 0.0
        %2955 = vmatprep.mubr.f32.mxu0 0.0
        %2956 = vmatmul.mubr.f32.gmra.mrb[0].mxu0 %v2866
        %v2957 = vpop.f32.mrb[0].mxu0
        %v2958 = vadd.f32 %v2889, %v2957
        %v2959 = vpop.f32.mrb[0].mxu0
        %2960 = vmatprep.mubr.f32.mxu0 0.0
        %2961 = vmatmul.mubr.f32.gmra.mrb[0].mxu0 %v2867
        %v2962 = vpop.f32.mrb[0].mxu0
        %v2963 = vadd.f32 %v2889, %v2962
        %v2964 = vpop.f32.mrb[0].mxu0
        %2965 = vdwg.mxu0
        %v2966 = vadd.f32 %v2750, %v2958
        %v2967 = vadd.f32 %v2751, %v2963
        %v2968 = vld [vmem:[%s918] sm:$0x1]
        %v2969 = vld [vmem:[%s921] sm:$0x1]
        %v2970 = vmul.f32 %v2966, %v1035
        %v2971 = vmul.f32 %v2967, %v1035
        %2972 = vadd.xlane.f32.xlu0 %v2970
        %v2973 = vpop.xlane.xlu0 %2972
        %2974 = vadd.xlane.f32.xlu0 %v2971
        %v2975 = vpop.xlane.xlu0 %2974
        %v2976 = vmul.f32 %v2973, 0.03125
        %v2977 = vmul.f32 %v2975, 0.03125
        %v2978 = vsub.f32 %v2966, %v2976
        %v2979 = vsub.f32 %v2967, %v2977
        %v2980 = vmul.f32 %v2978, %v1035
        %v2981 = vmul.f32 %v2979, %v1035
        %v2982 = vmul.f32 %v2980, %v2980
        %v2983 = vmul.f32 %v2981, %v2981
        %2984 = vadd.xlane.f32.xlu0 %v2982
        %v2985 = vpop.xlane.xlu0 %2984
        %2986 = vadd.xlane.f32.xlu0 %v2983
        %v2987 = vpop.xlane.xlu0 %2986
        %v2988 = vmul.f32 %v2985, 0.03125
        %v2989 = vmul.f32 %v2987, 0.03125
        %v2990 = vadd.f32 %v2988, 1e-12
        %v2991 = vadd.f32 %v2989, 1e-12
        %v2992 = vrsqrt.pop %v2990
        %v2993 = vrsqrt.pop %v2991
        %v2994 = vmul.f32 %v2980, %v2992
        %v2995 = vmul.f32 %v2981, %v2993
        %v2997 = vlaneseq
        %v2998 = vshrl.u32 %v2997, 7
        %v2999 = vsub.s32 0, %v2998
        %v3000 = vrot.slane %v2968, %v2999
        %v3002 = vmul.f32 %v2994, %v3000
        %v3003 = vmul.f32 %v2995, %v3000
        %v3005 = vlaneseq
        %v3006 = vshrl.u32 %v3005, 7
        %v3007 = vsub.s32 0, %v3006
        %v3008 = vrot.slane %v2969, %v3007
        %v3010 = vadd.f32 %v3002, %v3008
        %v3011 = vadd.f32 %v3003, %v3008
        %3012 = vst [vmem:[#allocation2] sm:$0xff] %v3010
        %3013 = vst [vmem:[#allocation2 + $0x8] sm:$0xff] %v3011
        %p3014 = scmp.eq.s32.totalorder %s38, 1
        // Predicated region
        $region109: #{scbert_word_forward.1} parent=103 // pred_check
          %p3015 = pneg %p3014
        $region110: #{scbert_word_forward.1} parent=103 // pred_check_branch
          %3017 = sbr.rel (%p3015) target = $region112
        $region111: #{scbert_word_forward.1} parent=103 // pred_region
          %v3018 = vld [vmem:[%s19] sm:$0xff]
          %v3019 = vld [vmem:[%s19 + $0x8] sm:$0xff]
          %v3020 = vld [vmem:[%s19 + $0x10] sm:$0xff]
          %v3021 = vld [vmem:[%s19 + $0x18] sm:$0xff]
          %v3022 = vld [vmem:[%s19 + $0x20] sm:$0xff]
          %v3023 = vld [vmem:[%s19 + $0x28] sm:$0xff]
          %v3024 = vld [vmem:[%s19 + $0x30] sm:$0xff]
          %v3025 = vld [vmem:[%s19 + $0x38] sm:$0xff]
          %v3026 = vld [vmem:[%s19 + $0x40] sm:$0xff]
          %v3027 = vld [vmem:[%s19 + $0x48] sm:$0xff]
          %v3028 = vld [vmem:[%s19 + $0x50] sm:$0xff]
          %v3029 = vld [vmem:[%s19 + $0x58] sm:$0xff]
          %v3030 = vld [vmem:[%s19 + $0x60] sm:$0xff]
          %v3031 = vld [vmem:[%s19 + $0x68] sm:$0xff]
          %v3032 = vld [vmem:[%s19 + $0x70] sm:$0xff]
          %v3033 = vld [vmem:[%s19 + $0x78] sm:$0xff]
          %v3034 = vld [vmem:[%s20] sm:$0x1]
          %v3036 = vlaneseq
          %v3037 = vshrl.u32 %v3036, 7
          %v3038 = vsub.s32 0, %v3037
          %v3039 = vrot.slane %v3034, %v3038
          %3041 = vmatprep.subr.mxu0 0.0
          %3042 = vmatpush1.msra.mxu0 %v3018
          %3043 = vmatprep.subr.mxu0 0.0
          %3044 = vmatpush1.msra.mxu0 %v3019
          %3045 = vmatprep.subr.mxu0 0.0
          %3046 = vmatpush1.msra.mxu0 %v3020
          %3047 = vmatprep.subr.mxu0 0.0
          %3048 = vmatpush1.msra.mxu0 %v3021
          %3049 = vmatprep.subr.mxu0 0.0
          %3050 = vmatpush1.msra.mxu0 %v3022
          %3051 = vmatprep.subr.mxu0 0.0
          %3052 = vmatpush1.msra.mxu0 %v3023
          %3053 = vmatprep.subr.mxu0 0.0
          %3054 = vmatpush1.msra.mxu0 %v3024
          %3055 = vmatprep.subr.mxu0 0.0
          %3056 = vmatpush1.msra.mxu0 %v3025
          %3057 = vmatprep.subr.mxu0 0.0
          %3058 = vmatpush1.msra.mxu0 %v3026
          %3059 = vmatprep.subr.mxu0 0.0
          %3060 = vmatpush1.msra.mxu0 %v3027
          %3061 = vmatprep.subr.mxu0 0.0
          %3062 = vmatpush1.msra.mxu0 %v3028
          %3063 = vmatprep.subr.mxu0 0.0
          %3064 = vmatpush1.msra.mxu0 %v3029
          %3065 = vmatprep.subr.mxu0 0.0
          %3066 = vmatpush1.msra.mxu0 %v3030
          %3067 = vmatprep.subr.mxu0 0.0
          %3068 = vmatpush1.msra.mxu0 %v3031
          %3069 = vmatprep.subr.mxu0 0.0
          %3070 = vmatpush1.msra.mxu0 %v3032
          %3071 = vmatprep.subr.mxu0 0.0
          %3072 = vmatpush1.msra.mxu0 %v3033
          %3073 = vmatprep.subr.mxu0 0.0
          %3074 = vmatpush1.msra.mxu0 0.0
          %3075 = vmatprep.subr.mxu0 0.0
          %3076 = vmatpush1.msra.mxu0 0.0
          %3077 = vmatprep.subr.mxu0 0.0
          %3078 = vmatpush1.msra.mxu0 0.0
          %3079 = vmatprep.subr.mxu0 0.0
          %3080 = vmatpush1.msra.mxu0 0.0
          %3081 = vmatprep.subr.mxu0 0.0
          %3082 = vmatpush1.msra.mxu0 0.0
          %3083 = vmatprep.subr.mxu0 0.0
          %3084 = vmatpush1.msra.mxu0 0.0
          %3085 = vmatprep.subr.mxu0 0.0
          %3086 = vmatpush1.msra.mxu0 0.0
          %3087 = vmatprep.subr.mxu0 0.0
          %3088 = vmatpush1.msra.mxu0 0.0
          %3089 = vmatprep.subr.mxu0 0.0
          %3090 = vmatpush1.msra.mxu0 0.0
          %3091 = vmatprep.subr.mxu0 0.0
          %3092 = vmatpush1.msra.mxu0 0.0
          %3093 = vmatprep.subr.mxu0 0.0
          %3094 = vmatpush1.msra.mxu0 0.0
          %3095 = vmatprep.subr.mxu0 0.0
          %3096 = vmatpush1.msra.mxu0 0.0
          %3097 = vmatprep.subr.mxu0 0.0
          %3098 = vmatpush1.msra.mxu0 0.0
          %3099 = vmatprep.subr.mxu0 0.0
          %3100 = vmatpush1.msra.mxu0 0.0
          %3101 = vmatprep.subr.mxu0 0.0
          %3102 = vmatpush1.msra.mxu0 0.0
          %3103 = vmatprep.subr.mxu0 0.0
          %3104 = vmatpush1.msra.mxu0 0.0
          %3105 = vmatprep.mubr.f32.mxu0 0.0
          %3106 = vmatmul.mubr.f32.gmra.mrb[0].mxu0 %v3010
          %v3107 = vpop.f32.mrb[0].mxu0
          %v3108 = vadd.f32 %v3039, %v3107
          %v3109 = vpop.f32.mrb[0].mxu0
          %3110 = vmatprep.mubr.f32.mxu0 0.0
          %3111 = vmatmul.mubr.f32.gmra.mrb[0].mxu0 %v3011
          %v3112 = vpop.f32.mrb[0].mxu0
          %v3113 = vadd.f32 %v3039, %v3112
          %v3114 = vpop.f32.mrb[0].mxu0
          %3115 = vdwg.mxu0
          %3116 = vst [vmem:[#allocation4] sm:$0xff] %v3108
          %3117 = vst [vmem:[#allocation4 + $0x8] sm:$0xff] %v3113
        $region112: #{scbert_word_forward.1} parent=103 // pred_fallthru
          _
        // Predicated region
        $region113: #{scbert_word_forward.1} parent=103 // pred_check
          %p3118 = pneg %p589
        $region114: #{scbert_word_forward.1} parent=103 // pred_check_branch
          %3120 = sbr.rel (%p3118) target = $region116
        $region115: #{scbert_word_forward.1} parent=103 // pred_region
          %s3121 = smul.u32 2, %s37
          %s3123 = ssub.s32 256, 256
          %3124 = vsyncadd [#allocation5], %s3123
          %s3125 = smul.addr %s3121, 128
          %s3126 = scalar_lea.hbm %s21, %s3125
          %s3127 = sshll.u32 [#allocation4], 4
          %s3128 = int_to_ptr.vmem [resolvable:$true] %s3127
          %3133 = dma.vmem_to_hbm [thread:$0]  %s3128, 256, %s3126, [#allocation5], 128, 128, 8
        $region116: #{scbert_word_forward.1} parent=103 // pred_fallthru
          _
        // Predicated region
        $region117: #{scbert_word_forward.1} parent=103 // pred_check
          %p3134 = pneg %p589
        $region118: #{scbert_word_forward.1} parent=103 // pred_check_branch
          %3136 = sbr.rel (%p3134) target = $region120
        $region119: #{scbert_word_forward.1} parent=103 // pred_region
          %3137 = dma.done [#allocation5], 256
        $region120: #{scbert_word_forward.1} parent=103 // pred_fallthru
          _
      $region104: #{scbert_word_forward.1} parent=5 // pred_fallthru
        _
      %p3138 = scmp.le.s32.totalorder 2, %s28
      // Predicated region
      $region121: #{scbert_word_forward.1} parent=5 // pred_check
        %p3139 = pneg %p3138
      $region122: #{scbert_word_forward.1} parent=5 // pred_check_branch
        %3141 = sbr.rel (%p3139) target = $region124
      $region123: #{scbert_word_forward.1} parent=5 // pred_region
        %s3142 = ssub.s32 %s28, 2
      $region124: #{scbert_word_forward.1} parent=5 // pred_fallthru
        _
    $region6: #{scbert_word_forward.1} parent=1 // loop_footer
      %s32 = sadd.s32 1, %s28
    $region7: #{scbert_word_forward.1} parent=1 // loop_footer_branch
      %27 = sbr.rel target = $region3
    $region8: #{scbert_word_forward.1} parent=1 // loop_exit
      _
    %3143 = vsyncpa [#allocation5], 1
    %s3144 = scalar_lea.sflag [#allocation5], 1
    %3145 = vsyncpa %s3144, 1

</llo_original>
